<compile_context>
chip_gen: v6e
topology: v6e:2x2x1
jax: 0.10.0
libtpu: 0.0.40
codegen_flags: <defaults>
</compile_context>

<pallas_src>
import functools

import jax
import jax.numpy as jnp
import numpy as np
from jax import lax
from jax.experimental import pallas as pl
from jax.experimental.pallas import tpu as pltpu

BN_EPS = 1e-5


# ----------------------------------------------------------------------------
# Fused BasicBlock kernel
# ----------------------------------------------------------------------------
def _fused_block_kernel(*refs, taps1, wp, rows_out, wo, project, emit_preact):
    """One BasicBlock for one image (grid axis 0) and one conv2 Cout tile
    (grid axis 1, 'arbitrary').

    refs = (x_planes, w1, b1, w2, b2, sc[, wsc], out[, preact], h1_scratch)

    x_planes : (P, R1, Cin)   bf16 flat padded input (P=1 stride-1, P=4 phase
                              planes for stride-2), tap -> (plane, offset).
    h1_scratch:((Ho+3)*wp, planes) bf16, conv1 output in conv2's padded layout.
    """
    if project:
        x_ref, w1_ref, b1_ref, w2_ref, b2_ref, sc_ref, wsc_ref = refs[:7]
        rest = refs[7:]
    else:
        x_ref, w1_ref, b1_ref, w2_ref, b2_ref, sc_ref = refs[:6]
        wsc_ref = None
        rest = refs[6:]
    if emit_preact:
        out_ref, pre_ref, h1_ref = rest
    else:
        (out_ref, h1_ref), pre_ref = rest, None

    ct = pl.program_id(1)

    # ---- conv1 + bn1 + relu: once per image, into the padded VMEM scratch ----
    @pl.when(ct == 0)
    def _():
        h1_ref[...] = jnp.zeros_like(h1_ref)            # zero halo rows/cols
        acc = None
        for di in range(3):
            parts = []
            for dj in range(3):
                plane, off = taps1[3 * di + dj]
                parts.append(x_ref[plane, pl.ds(off, rows_out), :])
            xt = jnp.concatenate(parts, axis=-1)         # K-packed (rows, 3*Cin)
            c = jnp.dot(xt, w1_ref[di], preferred_element_type=jnp.float32)
            acc = c if acc is None else acc + c
        h1 = jnp.maximum(acc + b1_ref[...], 0.0)
        # Zero junk columns (col >= wo) so conv2's halo taps read clean zeros.
        col = lax.broadcasted_iota(jnp.int32, (rows_out, 1), 0) % wp
        h1 = jnp.where(col < wo, h1, 0.0)
        h1_ref[pl.ds(wp + 1, rows_out), :] = h1.astype(h1_ref.dtype)

    # ---- conv2 + bn2 + shortcut + relu for this Cout tile --------------------
    acc2 = None
    for di in range(3):
        parts = [h1_ref[pl.ds(di * wp + dj, rows_out), :] for dj in range(3)]
        xt = jnp.concatenate(parts, axis=-1)             # (rows, 3*planes)
        c = jnp.dot(xt, w2_ref[di], preferred_element_type=jnp.float32)
        acc2 = c if acc2 is None else acc2 + c
    acc2 = acc2 + b2_ref[...]
    if project:                                          # fused 1x1 proj + BN
        acc2 = acc2 + jnp.dot(sc_ref[...], wsc_ref[...],
                              preferred_element_type=jnp.float32)
    else:                                                # identity shortcut
        acc2 = acc2 + sc_ref[...].astype(jnp.float32)
    if emit_preact:
        pre_ref[...] = acc2.astype(pre_ref.dtype)
    out_ref[...] = jnp.maximum(acc2, 0.0).astype(out_ref.dtype)


# ----------------------------------------------------------------------------
# Helpers: BN folding, weight packing, layout choices
# ----------------------------------------------------------------------------
def _round_up(a, b):
    return (a + b - 1) // b * b


def _choose_wp(wo):
    """Flat row pitch (= padded width).  Prefer a multiple of 8 (sublane
    aligned di*wp tap offsets) but never at >~15% extra junk columns."""
    base = wo + 2
    aligned = _round_up(base, 8)
    return aligned if (aligned - base) <= 0.15 * wo else base


def fold_bn(gamma, beta, mean, var, eps=BN_EPS):
    scale = gamma / jnp.sqrt(var + eps)
    bias = beta - mean * scale
    return scale, bias


def _fold_w3x3_packed(w_oihw, scale):
    """(Cout,Cin,3,3) -> (3, 3*Cin, Cout) bf16, BN scale folded, dj-major K."""
    cout, cin = w_oihw.shape[:2]
    w = jnp.transpose(w_oihw, (2, 3, 1, 0)) * scale      # (3,3,Cin,Cout)
    return w.reshape(3, 3 * cin, cout).astype(jnp.bfloat16)


def fold_w1x1(w_oihw, scale):
    """(Cout,Cin,1,1) -> (Cin,Cout) bf16, BN scale folded."""
    return (jnp.transpose(w_oihw[:, :, 0, 0], (1, 0)) * scale).astype(jnp.bfloat16)


# ----------------------------------------------------------------------------
# BasicBlock forward — NHWC native path (use this across consecutive blocks)
# ----------------------------------------------------------------------------
def basic_block_forward_nhwc(x_nhwc, params, *, stride=1, is_last=False):
    N, H, W, Cin = x_nhwc.shape
    planes = params["conv1_w"].shape[0]
    has_proj = "sc_w" in params
    assert stride in (1, 2), "BasicBlock uses stride 1 or 2"
    if not has_proj:
        assert stride == 1 and Cin == planes, \
            "identity shortcut requires stride == 1 and in_planes == planes"
    if stride == 2:
        assert H % 2 == 0 and W % 2 == 0, "stride-2 path assumes even H, W"

    Ho = (H - 1) // stride + 1
    Wo = (W - 1) // stride + 1
    wp = _choose_wp(Wo)                 # flat row pitch shared by h1 / outputs
    rows_out = Ho * wp

    xb = x_nhwc.astype(jnp.bfloat16)

    # ---- build the flat padded input plane(s) and the static tap map --------
    if stride == 1:
        # (N, H+3, wp, Cin): pad rows (1,2), cols (1, wp-1-W); flat width == wp.
        xp = jnp.pad(xb, ((0, 0), (1, 2), (1, wp - 1 - W), (0, 0)))
        x_planes = xp.reshape(N, 1, (H + 3) * wp, Cin)
        r1 = (H + 3) * wp
        num_planes = 1
        taps1 = tuple((0, di * wp + dj) for di in range(3) for dj in range(3))
    else:
        # Polyphase decomposition: padded input split into its 4 phase planes
        # (each (Ho+2, wp, Cin)); every stride-2 tap is a shifted window of one
        # plane.  Only ~1x HBM traffic (vs. 9x for an im2col fallback).
        hp, wpp = 2 * (Ho + 2), 2 * wp
        xp = jnp.pad(xb, ((0, 0), (1, hp - 1 - H), (1, wpp - 1 - W), (0, 0)))
        phases = [xp[:, a::2, b::2, :] for a in (0, 1) for b in (0, 1)]
        x_planes = jnp.stack(phases, axis=1).reshape(N, 4, (Ho + 2) * wp, Cin)
        r1 = (Ho + 2) * wp
        num_planes = 4
        taps1 = tuple((2 * (di % 2) + (dj % 2), (di // 2) * wp + (dj // 2))
                      for di in range(3) for dj in range(3))

    # ---- fold BN into weights / biases ---------------------------------------
    s1, b1 = fold_bn(*params["bn1"])
    s2, b2 = fold_bn(*params["bn2"])
    w1 = _fold_w3x3_packed(params["conv1_w"], s1)         # (3, 3*Cin, planes)
    w2 = _fold_w3x3_packed(params["conv2_w"], s2)         # (3, 3*planes, planes)

    if has_proj:
        ssc, bsc = fold_bn(*params["sc_bn"])
        wsc = fold_w1x1(params["sc_w"], ssc)               # (Cin, planes)
        bias2 = b2 + bsc                                    # fold both biases
        xs = x_nhwc[:, ::stride, ::stride, :].astype(jnp.bfloat16)
    else:
        wsc = None
        bias2 = b2
        xs = xb
    sc_flat = jnp.pad(xs, ((0, 0), (0, 0), (0, wp - Wo), (0, 0))).reshape(
        N, rows_out, xs.shape[-1])

    # ---- pallas_call ---------------------------------------------------------
    t_cout = 128 if planes % 128 == 0 else planes
    n_ct = planes // t_cout

    kernel = functools.partial(_fused_block_kernel, taps1=taps1, wp=wp,
                               rows_out=rows_out, wo=Wo, project=has_proj,
                               emit_preact=is_last)

    in_specs = [
        pl.BlockSpec((None, num_planes, r1, Cin), lambda n, ct: (n, 0, 0, 0)),
        pl.BlockSpec((3, 3 * Cin, planes), lambda n, ct: (0, 0, 0)),
        pl.BlockSpec((1, planes), lambda n, ct: (0, 0)),
        pl.BlockSpec((3, 3 * planes, t_cout), lambda n, ct: (0, 0, ct)),
        pl.BlockSpec((1, t_cout), lambda n, ct: (0, ct)),
    ]
    args = [x_planes, w1, b1.reshape(1, -1), w2, bias2.reshape(1, -1)]
    if has_proj:
        in_specs.append(pl.BlockSpec((None, rows_out, Cin), lambda n, ct: (n, 0, 0)))
        args.append(sc_flat)
        in_specs.append(pl.BlockSpec((Cin, t_cout), lambda n, ct: (0, ct)))
        args.append(wsc)
    else:
        in_specs.append(pl.BlockSpec((None, rows_out, t_cout), lambda n, ct: (n, 0, ct)))
        args.append(sc_flat)

    o_spec = pl.BlockSpec((None, rows_out, t_cout), lambda n, ct: (n, 0, ct))
    out_bf16 = jax.ShapeDtypeStruct((N, rows_out, planes), jnp.bfloat16)
    if is_last:
        out_shape = (out_bf16,
                     jax.ShapeDtypeStruct((N, rows_out, planes), jnp.float32))
        out_specs = (o_spec, o_spec)
    else:
        out_shape, out_specs = out_bf16, o_spec

    res = pl.pallas_call(
        kernel,
        out_shape=out_shape,
        grid=(N, n_ct),
        in_specs=in_specs,
        out_specs=out_specs,
        scratch_shapes=[pltpu.VMEM(((Ho + 3) * wp, planes), jnp.bfloat16)],
        compiler_params=pltpu.CompilerParams(
            dimension_semantics=("parallel", "arbitrary")),
    )(*args)

    def crop(t):                       # drop junk cols -> (N, Ho, Wo, planes)
        return t.reshape(N, Ho, wp, planes)[:, :, :Wo, :]

    if is_last:
        out, pre = res
        return crop(out).astype(jnp.float32), crop(pre)
    return crop(res).astype(jnp.float32)


# ----------------------------------------------------------------------------
# NCHW adapter (module-parity entry point; transposes only at the boundary)
# ----------------------------------------------------------------------------
def basic_block_forward(x_nchw, params, *, stride=1, is_last=False):
    x = jnp.transpose(x_nchw, (0, 2, 3, 1))
    res = basic_block_forward_nhwc(x, params, stride=stride, is_last=is_last)
    to_nchw = lambda t: jnp.transpose(t, (0, 3, 1, 2))
    if is_last:
        out, pre = res
        return to_nchw(out), to_nchw(pre)
    return to_nchw(res)


# ----------------------------------------------------------------------------
# Pure-JAX reference (lax.conv), mirroring the kernel's bf16 quantization points
# ----------------------------------------------------------------------------
def _conv_ref(x_nhwc, w_hwio, stride, padding):
    return lax.conv_general_dilated(
        x_nhwc, w_hwio, (stride, stride),
        [(padding, padding), (padding, padding)],
        dimension_numbers=("NHWC", "HWIO", "NHWC"),
        precision=lax.Precision.HIGHEST)


def basic_block_ref(x_nchw, params, *, stride=1, is_last=False):
    q = lambda t: t.astype(jnp.bfloat16).astype(jnp.float32)
    x = jnp.transpose(x_nchw, (0, 2, 3, 1)).astype(jnp.float32)

    s1, b1 = fold_bn(*params["bn1"])
    w1 = jnp.transpose(params["conv1_w"], (2, 3, 1, 0)) * s1
    h1 = q(jax.nn.relu(_conv_ref(q(x), q(w1), stride, 1) + b1))

    s2, b2 = fold_bn(*params["bn2"])
    w2 = jnp.transpose(params["conv2_w"], (2, 3, 1, 0)) * s2
    h2 = _conv_ref(h1, q(w2), 1, 1) + b2

    if "sc_w" in params:
        ssc, bsc = fold_bn(*params["sc_bn"])
        wsc = jnp.transpose(params["sc_w"], (2, 3, 1, 0)) * ssc
        sc = _conv_ref(q(x), q(wsc), stride, 0) + bsc
    else:
        sc = q(x)

    pre = h2 + sc
    out = q(jax.nn.relu(pre))          # kernel stores `out` in bf16
    out = jnp.transpose(out, (0, 3, 1, 2))
    pre = jnp.transpose(pre, (0, 3, 1, 2))
    return (out, pre) if is_last else out


# ----------------------------------------------------------------------------
# Deterministic parameter construction
# ----------------------------------------------------------------------------
def init_params(key, in_planes, planes, stride):
    ks = jax.random.split(key, 6)

    def conv_w(k, co, ci, kh, kw):
        return jax.random.normal(k, (co, ci, kh, kw), jnp.float32) * 0.1

    def bn_p(k, c):
        k0, k1, k2, k3 = jax.random.split(k, 4)
        gamma = jax.random.uniform(k0, (c,), jnp.float32, 0.5, 1.5)
        beta = jax.random.normal(k1, (c,), jnp.float32) * 0.1
        mean = jax.random.normal(k2, (c,), jnp.float32) * 0.1
        var = jax.random.uniform(k3, (c,), jnp.float32, 0.5, 1.5)
        return (gamma, beta, mean, var)

    params = {
        "conv1_w": conv_w(ks[0], planes, in_planes, 3, 3),
        "bn1": bn_p(ks[1], planes),
        "conv2_w": conv_w(ks[2], planes, planes, 3, 3),
        "bn2": bn_p(ks[3], planes),
    }
    if stride != 1 or in_planes != planes:
        params["sc_w"] = conv_w(ks[4], planes, in_planes, 1, 1)
        params["sc_bn"] = bn_p(ks[5], planes)
    return params


# ----------------------------------------------------------------------------
if __name__ == "__main__":
    key = jax.random.PRNGKey(0)
    k_x, k_p1, k_p2 = jax.random.split(key, 3)

    x = jax.random.normal(k_x, (2, 4, 16, 16), jnp.float32)   # NCHW

    # Config A: identity shortcut, stride=1, is_last=True
    # (fully fused block, preact emitted).
    params_a = init_params(k_p1, 4, 4, 1)
    fwd_a = jax.jit(functools.partial(basic_block_forward, stride=1, is_last=True))
    out_a, pre_a = jax.block_until_ready(fwd_a(x, params_a))
    ref_out_a, ref_pre_a = basic_block_ref(x, params_a, stride=1, is_last=True)
    np.testing.assert_allclose(np.asarray(out_a), np.asarray(ref_out_a),
                               rtol=1e-2, atol=1e-2)
    np.testing.assert_allclose(np.asarray(pre_a), np.asarray(ref_pre_a),
                               rtol=1e-2, atol=1e-2)

    # Config B: projection shortcut, stride=2, is_last=False
    # (polyphase stride-2 conv1 + fused 1x1 projection, single bf16 output).
    params_b = init_params(k_p2, 4, 8, 2)
    fwd_b = jax.jit(functools.partial(basic_block_forward, stride=2, is_last=False))
    out_b = jax.block_until_ready(fwd_b(x, params_b))
    ref_out_b = basic_block_ref(x, params_b, stride=2, is_last=False)
    np.testing.assert_allclose(np.asarray(out_b), np.asarray(ref_out_b),
                               rtol=1e-2, atol=1e-2)

    print("KERNEL_OK")
</pallas_src>

<mosaic_0001>
module attributes {stable_mosaic.version = 11 : i64} {
  func.func @_fused_block_kernel(%arg0: i32, %arg1: i32, %arg2: memref<1x1x342x4xbf16, #tpu.memory_space<vmem>>, %arg3: memref<3x12x4xbf16, #tpu.memory_space<vmem>>, %arg4: memref<1x4xf32, #tpu.memory_space<vmem>>, %arg5: memref<3x12x4xbf16, #tpu.memory_space<vmem>>, %arg6: memref<1x4xf32, #tpu.memory_space<vmem>>, %arg7: memref<1x288x4xbf16, #tpu.memory_space<vmem>>, %arg8: memref<1x288x4xbf16, #tpu.memory_space<vmem>>, %arg9: memref<1x288x4xf32, #tpu.memory_space<vmem>>, %arg10: memref<342x4xbf16, #tpu.memory_space<vmem>>) attributes {dimension_semantics = [#tpu.dimension_semantics<parallel>, #tpu.dimension_semantics<arbitrary>], iteration_bounds = array<i64: 2, 1>, scalar_prefetch = 0 : i64, scratch_operands = 1 : i64, tpu.core_type = #tpu.core_type<tc>, window_params = [{transform_indices = @transform_0, window_bounds = array<i64: 1, 1, 342, 4>}, {pipeline_mode = #tpu.pipeline_mode<synchronous>, transform_indices = @transform_1, window_bounds = array<i64: 3, 12, 4>}, {pipeline_mode = #tpu.pipeline_mode<synchronous>, transform_indices = @transform_2, window_bounds = array<i64: 1, 4>}, {transform_indices = @transform_3, window_bounds = array<i64: 3, 12, 4>}, {transform_indices = @transform_4, window_bounds = array<i64: 1, 4>}, {transform_indices = @transform_5, window_bounds = array<i64: 1, 288, 4>}, {transform_indices = @transform_6, window_bounds = array<i64: 1, 288, 4>}, {transform_indices = @transform_7, window_bounds = array<i64: 1, 288, 4>}]} {
    %c0_i32 = arith.constant 0 : i32
    %0 = arith.cmpi eq, %arg1, %c0_i32 : i32
    %1 = arith.extui %0 : i1 to i32
    %c0_i32_0 = arith.constant 0 : i32
    %2 = arith.cmpi ne, %1, %c0_i32_0 : i32
    scf.if %2 {
      %cst_33 = arith.constant 0.000000e+00 : bf16
      %42 = vector.broadcast %cst_33 : bf16 to vector<342x4xbf16>
      %c0_34 = arith.constant 0 : index
      %c0_35 = arith.constant 0 : index
      %43 = vector.load %arg10[%c0_34, %c0_35] : memref<342x4xbf16, #tpu.memory_space<vmem>>, vector<342x4xbf16>
      tpu.vector_store %arg10[%c0_34, %c0_35], %42 {strides = array<i32>} : memref<342x4xbf16, #tpu.memory_space<vmem>>, vector<342x4xbf16>,
      %c0_36 = arith.constant 0 : index
      %c0_37 = arith.constant 0 : index
      %c0_38 = arith.constant 0 : index
      %c0_39 = arith.constant 0 : index
      %44 = vector.load %arg2[%c0_36, %c0_37, %c0_38, %c0_39] : memref<1x1x342x4xbf16, #tpu.memory_space<vmem>>, vector<1x1x288x4xbf16>
      %45 = vector.shape_cast %44 : vector<1x1x288x4xbf16> to vector<288x4xbf16>
      %c0_40 = arith.constant 0 : index
      %c0_41 = arith.constant 0 : index
      %c1_42 = arith.constant 1 : index
      %c0_43 = arith.constant 0 : index
      %46 = vector.load %arg2[%c0_40, %c0_41, %c1_42, %c0_43] : memref<1x1x342x4xbf16, #tpu.memory_space<vmem>>, vector<1x1x288x4xbf16>
      %47 = vector.shape_cast %46 : vector<1x1x288x4xbf16> to vector<288x4xbf16>
      %c0_44 = arith.constant 0 : index
      %c0_45 = arith.constant 0 : index
      %c2_46 = arith.constant 2 : index
      %c0_47 = arith.constant 0 : index
      %48 = vector.load %arg2[%c0_44, %c0_45, %c2_46, %c0_47] : memref<1x1x342x4xbf16, #tpu.memory_space<vmem>>, vector<1x1x288x4xbf16>
      %49 = vector.shape_cast %48 : vector<1x1x288x4xbf16> to vector<288x4xbf16>
      %50 = tpu.concatenate %45, %47, %49 in 1 : vector<288x4xbf16>, vector<288x4xbf16>, vector<288x4xbf16> -> vector<288x12xbf16>
      %c0_48 = arith.constant 0 : index
      %c0_49 = arith.constant 0 : index
      %c0_50 = arith.constant 0 : index
      %51 = vector.load %arg3[%c0_48, %c0_49, %c0_50] : memref<3x12x4xbf16, #tpu.memory_space<vmem>>, vector<1x12x4xbf16>
      %52 = vector.shape_cast %51 : vector<1x12x4xbf16> to vector<12x4xbf16>
      %cst_51 = arith.constant dense<0.000000e+00> : vector<288x4xf32>
      %53 = tpu.matmul %50, %52, %cst_51 {dimension_numbers = #tpu.dot_dimension_numbers<[1], [0], [0], [1], [0, 0, 1, 1], [], []>} : vector<288x12xbf16>, vector<12x4xbf16>, vector<288x4xf32> -> vector<288x4xf32>
      %c0_52 = arith.constant 0 : index
      %c0_53 = arith.constant 0 : index
      %c18_54 = arith.constant 18 : index
      %c0_55 = arith.constant 0 : index
      %54 = vector.load %arg2[%c0_52, %c0_53, %c18_54, %c0_55] : memref<1x1x342x4xbf16, #tpu.memory_space<vmem>>, vector<1x1x288x4xbf16>
      %55 = vector.shape_cast %54 : vector<1x1x288x4xbf16> to vector<288x4xbf16>
      %c0_56 = arith.constant 0 : index
      %c0_57 = arith.constant 0 : index
      %c19_58 = arith.constant 19 : index
      %c0_59 = arith.constant 0 : index
      %56 = vector.load %arg2[%c0_56, %c0_57, %c19_58, %c0_59] : memref<1x1x342x4xbf16, #tpu.memory_space<vmem>>, vector<1x1x288x4xbf16>
      %57 = vector.shape_cast %56 : vector<1x1x288x4xbf16> to vector<288x4xbf16>
      %c0_60 = arith.constant 0 : index
      %c0_61 = arith.constant 0 : index
      %c20_62 = arith.constant 20 : index
      %c0_63 = arith.constant 0 : index
      %58 = vector.load %arg2[%c0_60, %c0_61, %c20_62, %c0_63] : memref<1x1x342x4xbf16, #tpu.memory_space<vmem>>, vector<1x1x288x4xbf16>
      %59 = vector.shape_cast %58 : vector<1x1x288x4xbf16> to vector<288x4xbf16>
      %60 = tpu.concatenate %55, %57, %59 in 1 : vector<288x4xbf16>, vector<288x4xbf16>, vector<288x4xbf16> -> vector<288x12xbf16>
      %c1_64 = arith.constant 1 : index
      %c0_65 = arith.constant 0 : index
      %c0_66 = arith.constant 0 : index
      %61 = vector.load %arg3[%c1_64, %c0_65, %c0_66] : memref<3x12x4xbf16, #tpu.memory_space<vmem>>, vector<1x12x4xbf16>
      %62 = vector.shape_cast %61 : vector<1x12x4xbf16> to vector<12x4xbf16>
      %cst_67 = arith.constant dense<0.000000e+00> : vector<288x4xf32>
      %63 = tpu.matmul %60, %62, %cst_67 {dimension_numbers = #tpu.dot_dimension_numbers<[1], [0], [0], [1], [0, 0, 1, 1], [], []>} : vector<288x12xbf16>, vector<12x4xbf16>, vector<288x4xf32> -> vector<288x4xf32>
      %64 = arith.addf %53, %63 : vector<288x4xf32>
      %c0_68 = arith.constant 0 : index
      %c0_69 = arith.constant 0 : index
      %c36_70 = arith.constant 36 : index
      %c0_71 = arith.constant 0 : index
      %65 = vector.load %arg2[%c0_68, %c0_69, %c36_70, %c0_71] : memref<1x1x342x4xbf16, #tpu.memory_space<vmem>>, vector<1x1x288x4xbf16>
      %66 = vector.shape_cast %65 : vector<1x1x288x4xbf16> to vector<288x4xbf16>
      %c0_72 = arith.constant 0 : index
      %c0_73 = arith.constant 0 : index
      %c37_74 = arith.constant 37 : index
      %c0_75 = arith.constant 0 : index
      %67 = vector.load %arg2[%c0_72, %c0_73, %c37_74, %c0_75] : memref<1x1x342x4xbf16, #tpu.memory_space<vmem>>, vector<1x1x288x4xbf16>
      %68 = vector.shape_cast %67 : vector<1x1x288x4xbf16> to vector<288x4xbf16>
      %c0_76 = arith.constant 0 : index
      %c0_77 = arith.constant 0 : index
      %c38_78 = arith.constant 38 : index
      %c0_79 = arith.constant 0 : index
      %69 = vector.load %arg2[%c0_76, %c0_77, %c38_78, %c0_79] : memref<1x1x342x4xbf16, #tpu.memory_space<vmem>>, vector<1x1x288x4xbf16>
      %70 = vector.shape_cast %69 : vector<1x1x288x4xbf16> to vector<288x4xbf16>
      %71 = tpu.concatenate %66, %68, %70 in 1 : vector<288x4xbf16>, vector<288x4xbf16>, vector<288x4xbf16> -> vector<288x12xbf16>
      %c2_80 = arith.constant 2 : index
      %c0_81 = arith.constant 0 : index
      %c0_82 = arith.constant 0 : index
      %72 = vector.load %arg3[%c2_80, %c0_81, %c0_82] : memref<3x12x4xbf16, #tpu.memory_space<vmem>>, vector<1x12x4xbf16>
      %73 = vector.shape_cast %72 : vector<1x12x4xbf16> to vector<12x4xbf16>
      %cst_83 = arith.constant dense<0.000000e+00> : vector<288x4xf32>
      %74 = tpu.matmul %71, %73, %cst_83 {dimension_numbers = #tpu.dot_dimension_numbers<[1], [0], [0], [1], [0, 0, 1, 1], [], []>} : vector<288x12xbf16>, vector<12x4xbf16>, vector<288x4xf32> -> vector<288x4xf32>
      %75 = arith.addf %64, %74 : vector<288x4xf32>
      %c0_84 = arith.constant 0 : index
      %c0_85 = arith.constant 0 : index
      %76 = vector.load %arg4[%c0_84, %c0_85] : memref<1x4xf32, #tpu.memory_space<vmem>>, vector<1x4xf32>
      %77 = vector.broadcast %76 : vector<1x4xf32> to vector<288x4xf32>
      %78 = arith.addf %75, %77 : vector<288x4xf32>
      %cst_86 = arith.constant 0.000000e+00 : f32
      %79 = vector.broadcast %cst_86 : f32 to vector<288x4xf32>
      %80 = arith.maximumf %78, %79 : vector<288x4xf32>
      %81 = tpu.iota {dimensions = array<i32: 0>} : vector<288x1xi32>
      %c18_i32 = arith.constant 18 : i32
      %c0_i32_87 = arith.constant 0 : i32
      %82 = arith.cmpi eq, %c18_i32, %c0_i32_87 : i32
      %c1_i32 = arith.constant 1 : i32
      %83 = arith.select %82, %c1_i32, %c18_i32 : i32
      %84 = vector.broadcast %83 : i32 to vector<288x1xi32>
      %85 = arith.remsi %81, %84 : vector<288x1xi32>
      %c0_i32_88 = arith.constant 0 : i32
      %86 = vector.broadcast %c0_i32_88 : i32 to vector<288x1xi32>
      %87 = arith.cmpi ne, %85, %86 : vector<288x1xi32>
      %c0_i32_89 = arith.constant 0 : i32
      %88 = vector.broadcast %c0_i32_89 : i32 to vector<288x1xi32>
      %89 = arith.cmpi slt, %85, %88 : vector<288x1xi32>
      %c0_i32_90 = arith.constant 0 : i32
      %90 = arith.cmpi slt, %83, %c0_i32_90 : i32
      %91 = vector.broadcast %90 : i1 to vector<288x1xi1>
      %92 = vector.broadcast %91 : vector<288x1xi1> to vector<288x1xi1>
      %93 = arith.xori %89, %92 : vector<288x1xi1>
      %94 = arith.andi %93, %87 : vector<288x1xi1>
      %95 = vector.broadcast %83 : i32 to vector<288x1xi32>
      %96 = arith.addi %85, %95 : vector<288x1xi32>
      %97 = arith.select %94, %96, %85 : vector<288x1xi1>, vector<288x1xi32>
      %c16_i32 = arith.constant 16 : i32
      %98 = vector.broadcast %c16_i32 : i32 to vector<288x1xi32>
      %99 = arith.cmpi slt, %97, %98 : vector<288x1xi32>
      %cst_91 = arith.constant 0.000000e+00 : f32
      %100 = vector.shape_cast %99 : vector<288x1xi1> to vector<288x1xi1>
      %101 = vector.broadcast %100 : vector<288x1xi1> to vector<288x4xi1>
      %102 = vector.broadcast %cst_91 : f32 to vector<288x4xf32>
      %103 = arith.select %101, %80, %102 : vector<288x4xi1>, vector<288x4xf32>
      %104 = arith.truncf %103 : vector<288x4xf32> to vector<288x4xbf16>
      %c19_92 = arith.constant 19 : index
      %c0_93 = arith.constant 0 : index
      %105 = vector.load %arg10[%c19_92, %c0_93] : memref<342x4xbf16, #tpu.memory_space<vmem>>, vector<288x4xbf16>
      tpu.vector_store %arg10[%c19_92, %c0_93], %104 {strides = array<i32>} : memref<342x4xbf16, #tpu.memory_space<vmem>>, vector<288x4xbf16>,
    } else {
    }
    %c0 = arith.constant 0 : index
    %c0_1 = arith.constant 0 : index
    %3 = vector.load %arg10[%c0, %c0_1] : memref<342x4xbf16, #tpu.memory_space<vmem>>, vector<288x4xbf16>
    %c1 = arith.constant 1 : index
    %c0_2 = arith.constant 0 : index
    %4 = vector.load %arg10[%c1, %c0_2] : memref<342x4xbf16, #tpu.memory_space<vmem>>, vector<288x4xbf16>
    %c2 = arith.constant 2 : index
    %c0_3 = arith.constant 0 : index
    %5 = vector.load %arg10[%c2, %c0_3] : memref<342x4xbf16, #tpu.memory_space<vmem>>, vector<288x4xbf16>
    %6 = tpu.concatenate %3, %4, %5 in 1 : vector<288x4xbf16>, vector<288x4xbf16>, vector<288x4xbf16> -> vector<288x12xbf16>
    %c0_4 = arith.constant 0 : index
    %c0_5 = arith.constant 0 : index
    %c0_6 = arith.constant 0 : index
    %7 = vector.load %arg5[%c0_4, %c0_5, %c0_6] : memref<3x12x4xbf16, #tpu.memory_space<vmem>>, vector<1x12x4xbf16>
    %8 = vector.shape_cast %7 : vector<1x12x4xbf16> to vector<12x4xbf16>
    %cst = arith.constant dense<0.000000e+00> : vector<288x4xf32>
    %9 = tpu.matmul %6, %8, %cst {dimension_numbers = #tpu.dot_dimension_numbers<[1], [0], [0], [1], [0, 0, 1, 1], [], []>} : vector<288x12xbf16>, vector<12x4xbf16>, vector<288x4xf32> -> vector<288x4xf32>
    %c18 = arith.constant 18 : index
    %c0_7 = arith.constant 0 : index
    %10 = vector.load %arg10[%c18, %c0_7] : memref<342x4xbf16, #tpu.memory_space<vmem>>, vector<288x4xbf16>
    %c19 = arith.constant 19 : index
    %c0_8 = arith.constant 0 : index
    %11 = vector.load %arg10[%c19, %c0_8] : memref<342x4xbf16, #tpu.memory_space<vmem>>, vector<288x4xbf16>
    %c20 = arith.constant 20 : index
    %c0_9 = arith.constant 0 : index
    %12 = vector.load %arg10[%c20, %c0_9] : memref<342x4xbf16, #tpu.memory_space<vmem>>, vector<288x4xbf16>
    %13 = tpu.concatenate %10, %11, %12 in 1 : vector<288x4xbf16>, vector<288x4xbf16>, vector<288x4xbf16> -> vector<288x12xbf16>
    %c1_10 = arith.constant 1 : index
    %c0_11 = arith.constant 0 : index
    %c0_12 = arith.constant 0 : index
    %14 = vector.load %arg5[%c1_10, %c0_11, %c0_12] : memref<3x12x4xbf16, #tpu.memory_space<vmem>>, vector<1x12x4xbf16>
    %15 = vector.shape_cast %14 : vector<1x12x4xbf16> to vector<12x4xbf16>
    %cst_13 = arith.constant dense<0.000000e+00> : vector<288x4xf32>
    %16 = tpu.matmul %13, %15, %cst_13 {dimension_numbers = #tpu.dot_dimension_numbers<[1], [0], [0], [1], [0, 0, 1, 1], [], []>} : vector<288x12xbf16>, vector<12x4xbf16>, vector<288x4xf32> -> vector<288x4xf32>
    %17 = arith.addf %9, %16 : vector<288x4xf32>
    %c36 = arith.constant 36 : index
    %c0_14 = arith.constant 0 : index
    %18 = vector.load %arg10[%c36, %c0_14] : memref<342x4xbf16, #tpu.memory_space<vmem>>, vector<288x4xbf16>
    %c37 = arith.constant 37 : index
    %c0_15 = arith.constant 0 : index
    %19 = vector.load %arg10[%c37, %c0_15] : memref<342x4xbf16, #tpu.memory_space<vmem>>, vector<288x4xbf16>
    %c38 = arith.constant 38 : index
    %c0_16 = arith.constant 0 : index
    %20 = vector.load %arg10[%c38, %c0_16] : memref<342x4xbf16, #tpu.memory_space<vmem>>, vector<288x4xbf16>
    %21 = tpu.concatenate %18, %19, %20 in 1 : vector<288x4xbf16>, vector<288x4xbf16>, vector<288x4xbf16> -> vector<288x12xbf16>
    %c2_17 = arith.constant 2 : index
    %c0_18 = arith.constant 0 : index
    %c0_19 = arith.constant 0 : index
    %22 = vector.load %arg5[%c2_17, %c0_18, %c0_19] : memref<3x12x4xbf16, #tpu.memory_space<vmem>>, vector<1x12x4xbf16>
    %23 = vector.shape_cast %22 : vector<1x12x4xbf16> to vector<12x4xbf16>
    %cst_20 = arith.constant dense<0.000000e+00> : vector<288x4xf32>
    %24 = tpu.matmul %21, %23, %cst_20 {dimension_numbers = #tpu.dot_dimension_numbers<[1], [0], [0], [1], [0, 0, 1, 1], [], []>} : vector<288x12xbf16>, vector<12x4xbf16>, vector<288x4xf32> -> vector<288x4xf32>
    %25 = arith.addf %17, %24 : vector<288x4xf32>
    %c0_21 = arith.constant 0 : index
    %c0_22 = arith.constant 0 : index
    %26 = vector.load %arg6[%c0_21, %c0_22] : memref<1x4xf32, #tpu.memory_space<vmem>>, vector<1x4xf32>
    %27 = vector.broadcast %26 : vector<1x4xf32> to vector<288x4xf32>
    %28 = arith.addf %25, %27 : vector<288x4xf32>
    %c0_23 = arith.constant 0 : index
    %c0_24 = arith.constant 0 : index
    %c0_25 = arith.constant 0 : index
    %29 = vector.load %arg7[%c0_23, %c0_24, %c0_25] : memref<1x288x4xbf16, #tpu.memory_space<vmem>>, vector<1x288x4xbf16>
    %30 = vector.shape_cast %29 : vector<1x288x4xbf16> to vector<288x4xbf16>
    %31 = arith.extf %30 : vector<288x4xbf16> to vector<288x4xf32>
    %32 = arith.addf %28, %31 : vector<288x4xf32>
    %c0_26 = arith.constant 0 : index
    %c0_27 = arith.constant 0 : index
    %c0_28 = arith.constant 0 : index
    %33 = vector.load %arg9[%c0_26, %c0_27, %c0_28] : memref<1x288x4xf32, #tpu.memory_space<vmem>>, vector<1x288x4xf32>
    %34 = vector.shape_cast %33 : vector<1x288x4xf32> to vector<288x4xf32>
    %35 = vector.shape_cast %32 : vector<288x4xf32> to vector<1x288x4xf32>
    tpu.vector_store %arg9[%c0_26, %c0_27, %c0_28], %35 {strides = array<i32>} : memref<1x288x4xf32, #tpu.memory_space<vmem>>, vector<1x288x4xf32>,
    %cst_29 = arith.constant 0.000000e+00 : f32
    %36 = vector.broadcast %cst_29 : f32 to vector<288x4xf32>
    %37 = arith.maximumf %32, %36 : vector<288x4xf32>
    %38 = arith.truncf %37 : vector<288x4xf32> to vector<288x4xbf16>
    %c0_30 = arith.constant 0 : index
    %c0_31 = arith.constant 0 : index
    %c0_32 = arith.constant 0 : index
    %39 = vector.load %arg8[%c0_30, %c0_31, %c0_32] : memref<1x288x4xbf16, #tpu.memory_space<vmem>>, vector<1x288x4xbf16>
    %40 = vector.shape_cast %39 : vector<1x288x4xbf16> to vector<288x4xbf16>
    %41 = vector.shape_cast %38 : vector<288x4xbf16> to vector<1x288x4xbf16>
    tpu.vector_store %arg8[%c0_30, %c0_31, %c0_32], %41 {strides = array<i32>} : memref<1x288x4xbf16, #tpu.memory_space<vmem>>, vector<1x288x4xbf16>,
    return
  }
  func.func @transform_0(%arg0: i32, %arg1: i32) -> (i32, i32, i32, i32) {
    %c0_i32 = arith.constant 0 : i32
    %c0_i32_0 = arith.constant 0 : i32
    %c0_i32_1 = arith.constant 0 : i32
    %c0_i32_2 = arith.constant 0 : i32
    return %arg0, %c0_i32, %c0_i32_0, %c0_i32_1 : i32, i32, i32, i32
  }
  func.func @transform_1(%arg0: i32, %arg1: i32) -> (i32, i32, i32) {
    %c0_i32 = arith.constant 0 : i32
    %c0_i32_0 = arith.constant 0 : i32
    %c0_i32_1 = arith.constant 0 : i32
    %c0_i32_2 = arith.constant 0 : i32
    return %c0_i32, %c0_i32_0, %c0_i32_1 : i32, i32, i32
  }
  func.func @transform_2(%arg0: i32, %arg1: i32) -> (i32, i32) {
    %c0_i32 = arith.constant 0 : i32
    %c0_i32_0 = arith.constant 0 : i32
    %c0_i32_1 = arith.constant 0 : i32
    return %c0_i32, %c0_i32_0 : i32, i32
  }
  func.func @transform_3(%arg0: i32, %arg1: i32) -> (i32, i32, i32) {
    %c0_i32 = arith.constant 0 : i32
    %c0_i32_0 = arith.constant 0 : i32
    %c0_i32_1 = arith.constant 0 : i32
    return %c0_i32, %c0_i32_0, %arg1 : i32, i32, i32
  }
  func.func @transform_4(%arg0: i32, %arg1: i32) -> (i32, i32) {
    %c0_i32 = arith.constant 0 : i32
    %c0_i32_0 = arith.constant 0 : i32
    return %c0_i32, %arg1 : i32, i32
  }
  func.func @transform_5(%arg0: i32, %arg1: i32) -> (i32, i32, i32) {
    %c0_i32 = arith.constant 0 : i32
    %c0_i32_0 = arith.constant 0 : i32
    return %arg0, %c0_i32, %arg1 : i32, i32, i32
  }
  func.func @transform_6(%arg0: i32, %arg1: i32) -> (i32, i32, i32) {
    %c0_i32 = arith.constant 0 : i32
    %c0_i32_0 = arith.constant 0 : i32
    return %arg0, %c0_i32, %arg1 : i32, i32, i32
  }
  func.func @transform_7(%arg0: i32, %arg1: i32) -> (i32, i32, i32) {
    %c0_i32 = arith.constant 0 : i32
    %c0_i32_0 = arith.constant 0 : i32
    return %arg0, %c0_i32, %arg1 : i32, i32, i32
  }
}

</mosaic_0001>

<llo_original>
// kernel: basic_block_forward.1
$region0: #{basic_block_forward.1}
  #allocation0 [shape = 'u32[]', space=smem, size = 0x4, offset = 0x4, fixed_abs, tag = 'smem constant byte address 0x4 - core index']
  #allocation1 [shape = 'u32[144,128]{1,0:T(1,128)}', space=vmem, size = 0x12000, scoped, tag = 'internal scratch']
  #allocation2 [shape = 'bf16[342,4]{1,0:T(8,128)(2,1)}', space=vmem, size = 0x15800, scoped, tag = 'scratch operand']
  %s0 = inlined_call_operand.vmem [shape: bf16[2,1,342,4], index: 0, kind: input, shape index: {}]
  %s1 = inlined_call_operand.vmem [shape: bf16[3,12,4], index: 1, kind: input, shape index: {}]
  %s2 = inlined_call_operand.vmem [shape: f32[1,4], index: 2, kind: input, shape index: {}]
  %s3 = inlined_call_operand.vmem [shape: bf16[3,12,4], index: 3, kind: input, shape index: {}]
  %s4 = inlined_call_operand.vmem [shape: f32[1,4], index: 4, kind: input, shape index: {}]
  %s5 = inlined_call_operand.vmem [shape: bf16[2,288,4], index: 5, kind: input, shape index: {}]
  %s6 = inlined_call_operand.vmem [shape: bf16[2,288,4], index: 6, kind: output, shape index: {0}]
  %s7 = inlined_call_operand.vmem [shape: f32[2,288,4], index: 7, kind: output, shape index: {1}]
  %8 = xla_tuple %s6, %s7
  %s9 = sld [smem:[#allocation0]]
  $region69: #{basic_block_forward.1} parent=0
    _
  %s11 = ssub.s32 1, %s9
  %s12 = scalar_select 0, %s11, %s9
  loop: start=0, step=1, limit=4
  $region2: #{basic_block_forward.1} parent=0 // loop_pre_header
    _
  $region3: #{basic_block_forward.1} parent=0 // loop_header
    %s14 = sphi 0, %s18
    %p15 = scmp.ge.s32.totalorder %s14, 4
    %s21 = sphi 0, %s33
    %s22 = sphi 0, %s29
    %s23 = sphi 0, %s21
    %s24 = sphi 0, %s22
    %s25 = sphi 0, %s23
    %s26 = sphi 0, %s24
    %s36 = sphi 0, %s38
    %s39 = sphi 0, %s36
    %s40 = sphi 0, %s39
    %s56 = sphi 0, %s40
    %s60 = sphi 0, %s60
    %s62 = sphi 0, %s60
    %s63 = sphi 0, %s62
    %s77 = sphi 0, %s63
    %s81 = sphi 0, %s81
    %s83 = sphi 0, %s81
    %s84 = sphi 0, %s83
    %s98 = sphi 0, %s84
    %s104 = sphi 0, %s106
    %s107 = sphi 0, %s104
    %s108 = sphi 0, %s107
    %s124 = sphi 0, %s108
    %s130 = sphi 0, %s132
    %s133 = sphi 0, %s130
    %s134 = sphi 0, %s133
    %s150 = sphi 0, %s134
    %s158 = sphi 0, %s160
    %s161 = sphi 0, %s158
    %s162 = sphi 0, %s161
    %s178 = sphi 0, %s162
    %s186 = sphi 0, %s188
    %s189 = sphi 0, %s186
    %s190 = sphi 0, %s189
    %s206 = sphi 0, %s190
    %s214 = sphi 0, %s216
    %s217 = sphi 0, %s214
    %s218 = sphi 0, %s217
    %s234 = sphi 0, %s218
  $region4: #{basic_block_forward.1} parent=0 // loop_header_branch
    %17 = sbr.rel (%p15) target = $region8
  $region5: #{basic_block_forward.1} parent=0 // loop_body
    %s19 = ssub.s32 %s14, 1
    %s20 = ssub.s32 %s14, 2
    %s27 = sadd.s32 1, %s22
    %p28 = scmp.ge.s32.totalorder %s27, 1
    %s29 = scalar_select %p28, 0, %s27
    %s30 = sadd.s32 1, %s21
    %s31 = scalar_select %p28, %s30, %s21
    %p32 = scmp.ge.s32.totalorder %s31, 2
    %s33 = scalar_select %p32, 0, %s31
    %s34 = ssub.s32 %s21, %s33
    %p35 = scmp.eq.s32.totalorder %s34, 0
    %s37 = sadd.s32 %s36, 1
    %s38 = scalar_select %p35, %s36, %s37
    %p41 = pneg %p35
    %p42 = scmp.eq.s32.totalorder %s14, 1
    %p43 = por %p41, %p42
    %p44 = scmp.ne.s32.totalorder %s36, %s39
    %p45 = scmp.eq.s32.totalorder %s14, 0
    %p46 = por %p44, %p45
    %p47 = scmp.ne.s32.totalorder %s36, %s39
    %p48 = scmp.eq.s32.totalorder %s19, 1
    %p49 = por %p47, %p48
    %p50 = scmp.ne.s32.totalorder %s39, %s40
    %p51 = scmp.eq.s32.totalorder %s19, 0
    %p52 = por %p50, %p51
    %p53 = scmp.ne.s32.totalorder %s39, %s40
    %p54 = scmp.eq.s32.totalorder %s20, 1
    %p55 = por %p53, %p54
    %p57 = scmp.ne.s32.totalorder %s40, %s56
    %p58 = scmp.eq.s32.totalorder %s20, 0
    %p59 = por %p57, %p58
    %s61 = sadd.s32 %s60, 1
    %p64 = scmp.eq.s32.totalorder %s14, 1
    %p65 = scmp.ne.s32.totalorder %s60, %s62
    %p66 = scmp.eq.s32.totalorder %s14, 0
    %p67 = por %p65, %p66
    %p68 = scmp.ne.s32.totalorder %s60, %s62
    %p69 = scmp.eq.s32.totalorder %s19, 1
    %p70 = por %p68, %p69
    %p71 = scmp.ne.s32.totalorder %s62, %s63
    %p72 = scmp.eq.s32.totalorder %s19, 0
    %p73 = por %p71, %p72
    %p74 = scmp.ne.s32.totalorder %s62, %s63
    %p75 = scmp.eq.s32.totalorder %s20, 1
    %p76 = por %p74, %p75
    %p78 = scmp.ne.s32.totalorder %s63, %s77
    %p79 = scmp.eq.s32.totalorder %s20, 0
    %p80 = por %p78, %p79
    %s82 = sadd.s32 %s81, 1
    %p85 = scmp.eq.s32.totalorder %s14, 1
    %p86 = scmp.ne.s32.totalorder %s81, %s83
    %p87 = scmp.eq.s32.totalorder %s14, 0
    %p88 = por %p86, %p87
    %p89 = scmp.ne.s32.totalorder %s81, %s83
    %p90 = scmp.eq.s32.totalorder %s19, 1
    %p91 = por %p89, %p90
    %p92 = scmp.ne.s32.totalorder %s83, %s84
    %p93 = scmp.eq.s32.totalorder %s19, 0
    %p94 = por %p92, %p93
    %p95 = scmp.ne.s32.totalorder %s83, %s84
    %p96 = scmp.eq.s32.totalorder %s20, 1
    %p97 = por %p95, %p96
    %p99 = scmp.ne.s32.totalorder %s84, %s98
    %p100 = scmp.eq.s32.totalorder %s20, 0
    %p101 = por %p99, %p100
    %s102 = ssub.s32 %s22, %s29
    %p103 = scmp.eq.s32.totalorder %s102, 0
    %s105 = sadd.s32 %s104, 1
    %s106 = scalar_select %p103, %s104, %s105
    %p109 = pneg %p103
    %p110 = scmp.eq.s32.totalorder %s14, 1
    %p111 = por %p109, %p110
    %p112 = scmp.ne.s32.totalorder %s104, %s107
    %p113 = scmp.eq.s32.totalorder %s14, 0
    %p114 = por %p112, %p113
    %p115 = scmp.ne.s32.totalorder %s104, %s107
    %p116 = scmp.eq.s32.totalorder %s19, 1
    %p117 = por %p115, %p116
    %p118 = scmp.ne.s32.totalorder %s107, %s108
    %p119 = scmp.eq.s32.totalorder %s19, 0
    %p120 = por %p118, %p119
    %p121 = scmp.ne.s32.totalorder %s107, %s108
    %p122 = scmp.eq.s32.totalorder %s20, 1
    %p123 = por %p121, %p122
    %p125 = scmp.ne.s32.totalorder %s108, %s124
    %p126 = scmp.eq.s32.totalorder %s20, 0
    %p127 = por %p125, %p126
    %s128 = ssub.s32 %s22, %s29
    %p129 = scmp.eq.s32.totalorder %s128, 0
    %s131 = sadd.s32 %s130, 1
    %s132 = scalar_select %p129, %s130, %s131
    %p135 = pneg %p129
    %p136 = scmp.eq.s32.totalorder %s14, 1
    %p137 = por %p135, %p136
    %p138 = scmp.ne.s32.totalorder %s130, %s133
    %p139 = scmp.eq.s32.totalorder %s14, 0
    %p140 = por %p138, %p139
    %p141 = scmp.ne.s32.totalorder %s130, %s133
    %p142 = scmp.eq.s32.totalorder %s19, 1
    %p143 = por %p141, %p142
    %p144 = scmp.ne.s32.totalorder %s133, %s134
    %p145 = scmp.eq.s32.totalorder %s19, 0
    %p146 = por %p144, %p145
    %p147 = scmp.ne.s32.totalorder %s133, %s134
    %p148 = scmp.eq.s32.totalorder %s20, 1
    %p149 = por %p147, %p148
    %p151 = scmp.ne.s32.totalorder %s134, %s150
    %p152 = scmp.eq.s32.totalorder %s20, 0
    %p153 = por %p151, %p152
    %s154 = ssub.s32 %s21, %s33
    %s155 = ssub.s32 %s22, %s29
    %s156 = sor.u32 %s154, %s155
    %p157 = scmp.eq.s32.totalorder %s156, 0
    %s159 = sadd.s32 %s158, 1
    %s160 = scalar_select %p157, %s158, %s159
    %p163 = pneg %p157
    %p164 = scmp.eq.s32.totalorder %s14, 1
    %p165 = por %p163, %p164
    %p166 = scmp.ne.s32.totalorder %s158, %s161
    %p167 = scmp.eq.s32.totalorder %s14, 0
    %p168 = por %p166, %p167
    %p169 = scmp.ne.s32.totalorder %s158, %s161
    %p170 = scmp.eq.s32.totalorder %s19, 1
    %p171 = por %p169, %p170
    %p172 = scmp.ne.s32.totalorder %s161, %s162
    %p173 = scmp.eq.s32.totalorder %s19, 0
    %p174 = por %p172, %p173
    %p175 = scmp.ne.s32.totalorder %s161, %s162
    %p176 = scmp.eq.s32.totalorder %s20, 1
    %p177 = por %p175, %p176
    %p179 = scmp.ne.s32.totalorder %s162, %s178
    %p180 = scmp.eq.s32.totalorder %s20, 0
    %p181 = por %p179, %p180
    %s182 = ssub.s32 %s21, %s33
    %s183 = ssub.s32 %s22, %s29
    %s184 = sor.u32 %s182, %s183
    %p185 = scmp.eq.s32.totalorder %s184, 0
    %s187 = sadd.s32 %s186, 1
    %s188 = scalar_select %p185, %s186, %s187
    %p191 = pneg %p185
    %p192 = scmp.eq.s32.totalorder %s14, 1
    %p193 = por %p191, %p192
    %p194 = scmp.ne.s32.totalorder %s186, %s189
    %p195 = scmp.eq.s32.totalorder %s14, 0
    %p196 = por %p194, %p195
    %p197 = scmp.ne.s32.totalorder %s186, %s189
    %p198 = scmp.eq.s32.totalorder %s19, 1
    %p199 = por %p197, %p198
    %p200 = scmp.ne.s32.totalorder %s189, %s190
    %p201 = scmp.eq.s32.totalorder %s19, 0
    %p202 = por %p200, %p201
    %p203 = scmp.ne.s32.totalorder %s189, %s190
    %p204 = scmp.eq.s32.totalorder %s20, 1
    %p205 = por %p203, %p204
    %p207 = scmp.ne.s32.totalorder %s190, %s206
    %p208 = scmp.eq.s32.totalorder %s20, 0
    %p209 = por %p207, %p208
    %s210 = ssub.s32 %s21, %s33
    %s211 = ssub.s32 %s22, %s29
    %s212 = sor.u32 %s210, %s211
    %p213 = scmp.eq.s32.totalorder %s212, 0
    %s215 = sadd.s32 %s214, 1
    %s216 = scalar_select %p213, %s214, %s215
    %p219 = pneg %p213
    %p220 = scmp.eq.s32.totalorder %s14, 1
    %p221 = por %p219, %p220
    %p222 = scmp.ne.s32.totalorder %s214, %s217
    %p223 = scmp.eq.s32.totalorder %s14, 0
    %p224 = por %p222, %p223
    %p225 = scmp.ne.s32.totalorder %s214, %s217
    %p226 = scmp.eq.s32.totalorder %s19, 1
    %p227 = por %p225, %p226
    %p228 = scmp.ne.s32.totalorder %s217, %s218
    %p229 = scmp.eq.s32.totalorder %s19, 0
    %p230 = por %p228, %p229
    %p231 = scmp.ne.s32.totalorder %s217, %s218
    %p232 = scmp.eq.s32.totalorder %s20, 1
    %p233 = por %p231, %p232
    %p235 = scmp.ne.s32.totalorder %s218, %s234
    %p236 = scmp.eq.s32.totalorder %s20, 0
    %p237 = por %p235, %p236
    %p238 = scmp.le.s32.totalorder 1, %s14
    %p239 = scmp.lt.s32.totalorder %s14, 3
    %p240 = pnand %p238, %p239
    %p241 = pneg %p240
    // Predicated region
    $region9: #{basic_block_forward.1} parent=5 // pred_check
      _
    $region10: #{basic_block_forward.1} parent=5 // pred_check_branch
      %243 = sbr.rel (%p240) target = $region12
    $region11: #{basic_block_forward.1} parent=5 // pred_region
      %s244 = ssub.s32 %s14, 1
      // Predicated region
      $region13: #{basic_block_forward.1} parent=11 // pred_check
        %p245 = pneg %p73
      $region14: #{basic_block_forward.1} parent=11 // pred_check_branch
        %247 = sbr.rel (%p245) target = $region16
      $region15: #{basic_block_forward.1} parent=11 // pred_region
        _
      $region16: #{basic_block_forward.1} parent=11 // pred_fallthru
        _
      // Predicated region
      $region17: #{basic_block_forward.1} parent=11 // pred_check
        %p248 = pneg %p94
      $region18: #{basic_block_forward.1} parent=11 // pred_check_branch
        %250 = sbr.rel (%p248) target = $region20
      $region19: #{basic_block_forward.1} parent=11 // pred_region
        _
      $region20: #{basic_block_forward.1} parent=11 // pred_fallthru
        _
      // Predicated region
      $region21: #{basic_block_forward.1} parent=11 // pred_check
        %p251 = pneg %p120
      $region22: #{basic_block_forward.1} parent=11 // pred_check_branch
        %253 = sbr.rel (%p251) target = $region24
      $region23: #{basic_block_forward.1} parent=11 // pred_region
        %p254 = scmp.lt.s32.totalorder %s24, 0
        %s255 = scalar_select %p254, %s24, 0
        %s256 = smul.addr %s255, 4
        %s257 = scalar_lea.vmem %s3, %s256
      $region24: #{basic_block_forward.1} parent=11 // pred_fallthru
        _
      // Predicated region
      $region25: #{basic_block_forward.1} parent=11 // pred_check
        %p258 = pneg %p146
      $region26: #{basic_block_forward.1} parent=11 // pred_check_branch
        %260 = sbr.rel (%p258) target = $region28
      $region27: #{basic_block_forward.1} parent=11 // pred_region
        %p261 = scmp.lt.s32.totalorder %s24, 0
        %s262 = scalar_select %p261, %s24, 0
        %s263 = scalar_lea.vmem %s4, %s262
      $region28: #{basic_block_forward.1} parent=11 // pred_fallthru
        _
    $region12: #{basic_block_forward.1} parent=5 // pred_fallthru
      _
    %p264 = scmp.lt.s32.totalorder %s14, 2
    // Predicated region
    $region29: #{basic_block_forward.1} parent=5 // pred_check
      %p265 = pneg %p264
    $region30: #{basic_block_forward.1} parent=5 // pred_check_branch
      %267 = sbr.rel (%p265) target = $region32
    $region31: #{basic_block_forward.1} parent=5 // pred_region
      // Predicated region
      $region33: #{basic_block_forward.1} parent=31 // pred_check
        %p268 = pneg %p46
      $region34: #{basic_block_forward.1} parent=31 // pred_check_branch
        %270 = sbr.rel (%p268) target = $region36
      $region35: #{basic_block_forward.1} parent=31 // pred_region
        %p271 = scmp.lt.s32.totalorder %s21, 1
        %s272 = scalar_select %p271, %s21, 1
        %s273 = smul.addr %s272, 43
        %s274 = smul.addr %s273, 4
        %s275 = scalar_lea.vmem %s0, %s274
      $region36: #{basic_block_forward.1} parent=31 // pred_fallthru
        _
      // Predicated region
      $region37: #{basic_block_forward.1} parent=31 // pred_check
        %p276 = pneg %p168
      $region38: #{basic_block_forward.1} parent=31 // pred_check_branch
        %278 = sbr.rel (%p276) target = $region40
      $region39: #{basic_block_forward.1} parent=31 // pred_region
        %p279 = scmp.lt.s32.totalorder %s21, 1
        %s280 = scalar_select %p279, %s21, 1
        %p281 = scmp.lt.s32.totalorder %s22, 0
        %s282 = scalar_select %p281, %s22, 0
        %s283 = smul.addr %s280, 36
        %s284 = sadd.s32 %s282, %s283
        %s285 = smul.addr %s284, 4
        %s286 = scalar_lea.vmem %s5, %s285
      $region40: #{basic_block_forward.1} parent=31 // pred_fallthru
        _
    $region32: #{basic_block_forward.1} parent=5 // pred_fallthru
      _
    %p287 = scmp.le.s32.totalorder 1, %s14
    %p288 = scmp.lt.s32.totalorder %s14, 3
    %p289 = pnand %p287, %p288
    %p290 = pneg %p289
    // Predicated region
    $region41: #{basic_block_forward.1} parent=5 // pred_check
      _
    $region42: #{basic_block_forward.1} parent=5 // pred_check_branch
      %292 = sbr.rel (%p289) target = $region44
    $region43: #{basic_block_forward.1} parent=5 // pred_region
      %s293 = ssub.s32 %s14, 1
      %p294 = scmp.lt.s32.totalorder %s23, 1
      %s295 = scalar_select %p294, %s23, 1
      %s296 = smul.addr %s295, 43
      %s297 = smul.addr %s296, 4
      %s298 = scalar_lea.vmem %s0, %s297
      %p299 = pneg %p52
      %p300 = pneg %p49
      %p301 = pneg %p73
      %p302 = pneg %p70
      %p303 = pneg %p94
      %p304 = pneg %p91
      %p305 = scmp.lt.s32.totalorder %s24, 0
      %s306 = scalar_select %p305, %s24, 0
      %s307 = smul.addr %s306, 4
      %s308 = scalar_lea.vmem %s3, %s307
      %p309 = pneg %p120
      %p310 = pneg %p117
      %p311 = scmp.lt.s32.totalorder %s24, 0
      %s312 = scalar_select %p311, %s24, 0
      %s313 = scalar_lea.vmem %s4, %s312
      %p314 = pneg %p146
      %p315 = pneg %p143
      %p316 = scmp.lt.s32.totalorder %s23, 1
      %s317 = scalar_select %p316, %s23, 1
      %p318 = scmp.lt.s32.totalorder %s24, 0
      %s319 = scalar_select %p318, %s24, 0
      %s320 = smul.addr %s317, 36
      %s321 = sadd.s32 %s319, %s320
      %s322 = smul.addr %s321, 4
      %s323 = scalar_lea.vmem %s5, %s322
      %p324 = pneg %p174
      %p325 = pneg %p171
      %p326 = pneg %p202
      %p327 = pneg %p199
      %p328 = scmp.lt.s32.totalorder %s23, 1
      %s329 = scalar_select %p328, %s23, 1
      %p330 = scmp.lt.s32.totalorder %s24, 0
      %s331 = scalar_select %p330, %s24, 0
      %s332 = smul.addr %s329, 36
      %s333 = sadd.s32 %s331, %s332
      %s334 = smul.addr %s333, 4
      %s335 = scalar_lea.vmem %s6, %s334
      %p336 = pneg %p230
      %p337 = pneg %p227
      %p338 = scmp.lt.s32.totalorder %s23, 1
      %s339 = scalar_select %p338, %s23, 1
      %p340 = scmp.lt.s32.totalorder %s24, 0
      %s341 = scalar_select %p340, %s24, 0
      %s342 = smul.addr %s339, 36
      %s343 = sadd.s32 %s341, %s342
      %s344 = smul.addr %s343, 8
      %s345 = scalar_lea.vmem %s7, %s344
      %p346 = scmp.lt.s32.totalorder %s23, 1
      %s347 = scalar_select %p346, %s23, 1
      %s348 = smul.addr %s347, 43
      %s349 = smul.addr %s348, 4
      %s350 = scalar_lea.vmem %s0, %s349
      %p351 = scmp.lt.s32.totalorder %s24, 0
      %s352 = scalar_select %p351, %s24, 0
      %s353 = smul.addr %s352, 4
      %s354 = scalar_lea.vmem %s3, %s353
      %p355 = scmp.lt.s32.totalorder %s24, 0
      %s356 = scalar_select %p355, %s24, 0
      %s357 = scalar_lea.vmem %s4, %s356
      %p358 = scmp.lt.s32.totalorder %s23, 1
      %s359 = scalar_select %p358, %s23, 1
      %p360 = scmp.lt.s32.totalorder %s24, 0
      %s361 = scalar_select %p360, %s24, 0
      %s362 = smul.addr %s359, 36
      %s363 = sadd.s32 %s361, %s362
      %s364 = smul.addr %s363, 4
      %s365 = scalar_lea.vmem %s5, %s364
      %p366 = scmp.lt.s32.totalorder %s23, 1
      %s367 = scalar_select %p366, %s23, 1
      %p368 = scmp.lt.s32.totalorder %s24, 0
      %s369 = scalar_select %p368, %s24, 0
      %s370 = smul.addr %s367, 36
      %s371 = sadd.s32 %s369, %s370
      %s372 = smul.addr %s371, 4
      %s373 = scalar_lea.vmem %s6, %s372
      %p374 = scmp.lt.s32.totalorder %s23, 1
      %s375 = scalar_select %p374, %s23, 1
      %p376 = scmp.lt.s32.totalorder %s24, 0
      %s377 = scalar_select %p376, %s24, 0
      %s378 = smul.addr %s375, 36
      %s379 = sadd.s32 %s377, %s378
      %s380 = smul.addr %s379, 8
      %s381 = scalar_lea.vmem %s7, %s380
      %p383 = scmp.eq.s32.totalorder %s24, 0
      // Predicated region
      $region45: #{basic_block_forward.1} parent=43 // pred_check
        %p384 = pneg %p383
      $region46: #{basic_block_forward.1} parent=43 // pred_check_branch
        %386 = sbr.rel (%p384) target = $region48
      $region47: #{basic_block_forward.1} parent=43 // pred_region
        %vm387 = vcmask 27648
        %388 = vst.msk [vmem:[#allocation2] sm:$0xf] %vm387, 0
        %389 = vst.msk [vmem:[#allocation2 + $0x4] sm:$0xf] %vm387, 0
        %390 = vst.msk [vmem:[#allocation2 + $0x8] sm:$0xf] %vm387, 0
        %391 = vst.msk [vmem:[#allocation2 + $0xc] sm:$0xf] %vm387, 0
        %392 = vst.msk [vmem:[#allocation2 + $0x10] sm:$0xf] %vm387, 0
        %393 = vst.msk [vmem:[#allocation2 + $0x14] sm:$0xf] %vm387, 0
        %394 = vst.msk [vmem:[#allocation2 + $0x18] sm:$0xf] %vm387, 0
        %395 = vst.msk [vmem:[#allocation2 + $0x1c] sm:$0xf] %vm387, 0
        %396 = vst.msk [vmem:[#allocation2 + $0x20] sm:$0xf] %vm387, 0
        %397 = vst.msk [vmem:[#allocation2 + $0x24] sm:$0xf] %vm387, 0
        %398 = vst.msk [vmem:[#allocation2 + $0x28] sm:$0xf] %vm387, 0
        %399 = vst.msk [vmem:[#allocation2 + $0x2c] sm:$0xf] %vm387, 0
        %400 = vst.msk [vmem:[#allocation2 + $0x30] sm:$0xf] %vm387, 0
        %401 = vst.msk [vmem:[#allocation2 + $0x34] sm:$0xf] %vm387, 0
        %402 = vst.msk [vmem:[#allocation2 + $0x38] sm:$0xf] %vm387, 0
        %403 = vst.msk [vmem:[#allocation2 + $0x3c] sm:$0xf] %vm387, 0
        %404 = vst.msk [vmem:[#allocation2 + $0x40] sm:$0xf] %vm387, 0
        %405 = vst.msk [vmem:[#allocation2 + $0x44] sm:$0xf] %vm387, 0
        %406 = vst.msk [vmem:[#allocation2 + $0x48] sm:$0xf] %vm387, 0
        %407 = vst.msk [vmem:[#allocation2 + $0x4c] sm:$0xf] %vm387, 0
        %408 = vst.msk [vmem:[#allocation2 + $0x50] sm:$0xf] %vm387, 0
        %409 = vst.msk [vmem:[#allocation2 + $0x54] sm:$0xf] %vm387, 0
        %410 = vst.msk [vmem:[#allocation2 + $0x58] sm:$0xf] %vm387, 0
        %411 = vst.msk [vmem:[#allocation2 + $0x5c] sm:$0xf] %vm387, 0
        %412 = vst.msk [vmem:[#allocation2 + $0x60] sm:$0xf] %vm387, 0
        %413 = vst.msk [vmem:[#allocation2 + $0x64] sm:$0xf] %vm387, 0
        %414 = vst.msk [vmem:[#allocation2 + $0x68] sm:$0xf] %vm387, 0
        %415 = vst.msk [vmem:[#allocation2 + $0x6c] sm:$0xf] %vm387, 0
        %416 = vst.msk [vmem:[#allocation2 + $0x70] sm:$0xf] %vm387, 0
        %417 = vst.msk [vmem:[#allocation2 + $0x74] sm:$0xf] %vm387, 0
        %418 = vst.msk [vmem:[#allocation2 + $0x78] sm:$0xf] %vm387, 0
        %419 = vst.msk [vmem:[#allocation2 + $0x7c] sm:$0xf] %vm387, 0
        %420 = vst.msk [vmem:[#allocation2 + $0x80] sm:$0xf] %vm387, 0
        %421 = vst.msk [vmem:[#allocation2 + $0x84] sm:$0xf] %vm387, 0
        %422 = vst.msk [vmem:[#allocation2 + $0x88] sm:$0xf] %vm387, 0
        %423 = vst.msk [vmem:[#allocation2 + $0x8c] sm:$0xf] %vm387, 0
        %424 = vst.msk [vmem:[#allocation2 + $0x90] sm:$0xf] %vm387, 0
        %425 = vst.msk [vmem:[#allocation2 + $0x94] sm:$0xf] %vm387, 0
        %426 = vst.msk [vmem:[#allocation2 + $0x98] sm:$0xf] %vm387, 0
        %427 = vst.msk [vmem:[#allocation2 + $0x9c] sm:$0xf] %vm387, 0
        %428 = vst.msk [vmem:[#allocation2 + $0xa0] sm:$0xf] %vm387, 0
        %429 = vst.msk [vmem:[#allocation2 + $0xa4] sm:$0xf] %vm387, 0
        %vm430 = vcmask 26624
        %431 = vst.msk [vmem:[#allocation2 + $0xa8] sm:$0x7] %vm430, 0
        %v432 = vld [vmem:[%s350] sm:$0xf]
        %v433 = vld [vmem:[%s350 + $0x4] sm:$0xf]
        %v434 = vld [vmem:[%s350 + $0x8] sm:$0xf]
        %v435 = vld [vmem:[%s350 + $0xc] sm:$0xf]
        %v436 = vld [vmem:[%s350 + $0x10] sm:$0xf]
        %v437 = vld [vmem:[%s350 + $0x14] sm:$0xf]
        %v438 = vld [vmem:[%s350 + $0x18] sm:$0xf]
        %v439 = vld [vmem:[%s350 + $0x1c] sm:$0xf]
        %v440 = vld [vmem:[%s350 + $0x20] sm:$0xf]
        %v441 = vld [vmem:[%s350 + $0x24] sm:$0xf]
        %v442 = vld [vmem:[%s350 + $0x28] sm:$0xf]
        %v443 = vld [vmem:[%s350 + $0x2c] sm:$0xf]
        %v444 = vld [vmem:[%s350 + $0x30] sm:$0xf]
        %v445 = vld [vmem:[%s350 + $0x34] sm:$0xf]
        %v446 = vld [vmem:[%s350 + $0x38] sm:$0xf]
        %v447 = vld [vmem:[%s350 + $0x3c] sm:$0xf]
        %v448 = vld [vmem:[%s350 + $0x40] sm:$0xf]
        %v449 = vld [vmem:[%s350 + $0x44] sm:$0xf]
        %v450 = vld [vmem:[%s350 + $0x48] sm:$0xf]
        %v451 = vld [vmem:[%s350 + $0x4c] sm:$0xf]
        %v452 = vld [vmem:[%s350 + $0x50] sm:$0xf]
        %v453 = vld [vmem:[%s350 + $0x54] sm:$0xf]
        %v454 = vld [vmem:[%s350 + $0x58] sm:$0xf]
        %v455 = vld [vmem:[%s350 + $0x5c] sm:$0xf]
        %v456 = vld [vmem:[%s350 + $0x60] sm:$0xf]
        %v457 = vld [vmem:[%s350 + $0x64] sm:$0xf]
        %v458 = vld [vmem:[%s350 + $0x68] sm:$0xf]
        %v459 = vld [vmem:[%s350 + $0x6c] sm:$0xf]
        %v460 = vld [vmem:[%s350 + $0x70] sm:$0xf]
        %v461 = vld [vmem:[%s350 + $0x74] sm:$0xf]
        %v462 = vld [vmem:[%s350 + $0x78] sm:$0xf]
        %v463 = vld [vmem:[%s350 + $0x7c] sm:$0xf]
        %v464 = vld [vmem:[%s350 + $0x80] sm:$0xf]
        %v465 = vld [vmem:[%s350 + $0x84] sm:$0xf]
        %v466 = vld [vmem:[%s350 + $0x88] sm:$0xf]
        %v467 = vld [vmem:[%s350 + $0x8c] sm:$0xf]
        %v468 = vld [vmem:[%s350 + $0x90] sm:$0x1]
        %v469 = vld [vmem:[%s350] sm:$0xe]
        %v506 = vunpack.c.l.b16 %v432
        %v507 = vunpack.c.l.b16 %v433
        %v508 = vunpack.c.l.b16 %v434
        %v509 = vunpack.c.l.b16 %v435
        %v510 = vunpack.c.l.b16 %v436
        %v511 = vunpack.c.l.b16 %v437
        %v512 = vunpack.c.l.b16 %v438
        %v513 = vunpack.c.l.b16 %v439
        %v514 = vunpack.c.l.b16 %v440
        %v515 = vunpack.c.l.b16 %v441
        %v516 = vunpack.c.l.b16 %v442
        %v517 = vunpack.c.l.b16 %v443
        %v518 = vunpack.c.l.b16 %v444
        %v519 = vunpack.c.l.b16 %v445
        %v520 = vunpack.c.l.b16 %v446
        %v521 = vunpack.c.l.b16 %v447
        %v522 = vunpack.c.l.b16 %v448
        %v523 = vunpack.c.l.b16 %v449
        %v524 = vunpack.c.l.b16 %v450
        %v525 = vunpack.c.l.b16 %v451
        %v526 = vunpack.c.l.b16 %v452
        %v527 = vunpack.c.l.b16 %v453
        %v528 = vunpack.c.l.b16 %v454
        %v529 = vunpack.c.l.b16 %v455
        %v530 = vunpack.c.l.b16 %v456
        %v531 = vunpack.c.l.b16 %v457
        %v532 = vunpack.c.l.b16 %v458
        %v533 = vunpack.c.l.b16 %v459
        %v534 = vunpack.c.l.b16 %v460
        %v535 = vunpack.c.l.b16 %v461
        %v536 = vunpack.c.l.b16 %v462
        %v537 = vunpack.c.l.b16 %v463
        %v538 = vunpack.c.l.b16 %v464
        %v539 = vunpack.c.l.b16 %v465
        %v540 = vunpack.c.l.b16 %v466
        %v541 = vunpack.c.l.b16 %v467
        %v542 = vpack.c.b16 %v507, %v506
        %v543 = vpack.c.b16 %v509, %v508
        %v544 = vpack.c.b16 %v511, %v510
        %v545 = vpack.c.b16 %v513, %v512
        %v546 = vpack.c.b16 %v515, %v514
        %v547 = vpack.c.b16 %v517, %v516
        %v548 = vpack.c.b16 %v519, %v518
        %v549 = vpack.c.b16 %v521, %v520
        %v550 = vpack.c.b16 %v523, %v522
        %v551 = vpack.c.b16 %v525, %v524
        %v552 = vpack.c.b16 %v527, %v526
        %v553 = vpack.c.b16 %v529, %v528
        %v554 = vpack.c.b16 %v531, %v530
        %v555 = vpack.c.b16 %v533, %v532
        %v556 = vpack.c.b16 %v535, %v534
        %v557 = vpack.c.b16 %v537, %v536
        %v558 = vpack.c.b16 %v539, %v538
        %v559 = vpack.c.b16 %v541, %v540
        %v561 = vunpack.c.l.b16 %v468
        %v562 = vpack.c.b16 %v561, %v561
        %vm563 = vsmask.f32 7424
        %v565 = vshrl.u32 %v542, 16
        %v567 = vshll.u32 %v542, 16
        %v569 = vrot.slane %v567, 1
        %v570 = vor.u32 %v565, %v569
        %v572 = vshll.u32 %v543, 16
        %v574 = vrot.slane %v572, 1
        %v575 = vsel %vm563, %v570, %v574
        %v576 = vshrl.u32 %v543, 16
        %v578 = vor.u32 %v576, %v574
        %v580 = vshll.u32 %v544, 16
        %v582 = vrot.slane %v580, 1
        %v583 = vsel %vm563, %v578, %v582
        %v584 = vshrl.u32 %v544, 16
        %v586 = vor.u32 %v584, %v582
        %v588 = vshll.u32 %v545, 16
        %v590 = vrot.slane %v588, 1
        %v591 = vsel %vm563, %v586, %v590
        %v592 = vshrl.u32 %v545, 16
        %v594 = vor.u32 %v592, %v590
        %v596 = vshll.u32 %v546, 16
        %v598 = vrot.slane %v596, 1
        %v599 = vsel %vm563, %v594, %v598
        %v600 = vshrl.u32 %v546, 16
        %v602 = vor.u32 %v600, %v598
        %v604 = vshll.u32 %v547, 16
        %v606 = vrot.slane %v604, 1
        %v607 = vsel %vm563, %v602, %v606
        %v608 = vshrl.u32 %v547, 16
        %v610 = vor.u32 %v608, %v606
        %v612 = vshll.u32 %v548, 16
        %v614 = vrot.slane %v612, 1
        %v615 = vsel %vm563, %v610, %v614
        %v616 = vshrl.u32 %v548, 16
        %v618 = vor.u32 %v616, %v614
        %v620 = vshll.u32 %v549, 16
        %v622 = vrot.slane %v620, 1
        %v623 = vsel %vm563, %v618, %v622
        %v624 = vshrl.u32 %v549, 16
        %v626 = vor.u32 %v624, %v622
        %v628 = vshll.u32 %v550, 16
        %v630 = vrot.slane %v628, 1
        %v631 = vsel %vm563, %v626, %v630
        %v632 = vshrl.u32 %v550, 16
        %v634 = vor.u32 %v632, %v630
        %v636 = vshll.u32 %v551, 16
        %v638 = vrot.slane %v636, 1
        %v639 = vsel %vm563, %v634, %v638
        %v640 = vshrl.u32 %v551, 16
        %v642 = vor.u32 %v640, %v638
        %v644 = vshll.u32 %v552, 16
        %v646 = vrot.slane %v644, 1
        %v647 = vsel %vm563, %v642, %v646
        %v648 = vshrl.u32 %v552, 16
        %v650 = vor.u32 %v648, %v646
        %v652 = vshll.u32 %v553, 16
        %v654 = vrot.slane %v652, 1
        %v655 = vsel %vm563, %v650, %v654
        %v656 = vshrl.u32 %v553, 16
        %v658 = vor.u32 %v656, %v654
        %v660 = vshll.u32 %v554, 16
        %v662 = vrot.slane %v660, 1
        %v663 = vsel %vm563, %v658, %v662
        %v664 = vshrl.u32 %v554, 16
        %v666 = vor.u32 %v664, %v662
        %v668 = vshll.u32 %v555, 16
        %v670 = vrot.slane %v668, 1
        %v671 = vsel %vm563, %v666, %v670
        %v672 = vshrl.u32 %v555, 16
        %v674 = vor.u32 %v672, %v670
        %v676 = vshll.u32 %v556, 16
        %v678 = vrot.slane %v676, 1
        %v679 = vsel %vm563, %v674, %v678
        %v680 = vshrl.u32 %v556, 16
        %v682 = vor.u32 %v680, %v678
        %v684 = vshll.u32 %v557, 16
        %v686 = vrot.slane %v684, 1
        %v687 = vsel %vm563, %v682, %v686
        %v688 = vshrl.u32 %v557, 16
        %v690 = vor.u32 %v688, %v686
        %v692 = vshll.u32 %v558, 16
        %v694 = vrot.slane %v692, 1
        %v695 = vsel %vm563, %v690, %v694
        %v696 = vshrl.u32 %v558, 16
        %v698 = vor.u32 %v696, %v694
        %v700 = vshll.u32 %v559, 16
        %v702 = vrot.slane %v700, 1
        %v703 = vsel %vm563, %v698, %v702
        %v704 = vshrl.u32 %v559, 16
        %v706 = vor.u32 %v704, %v702
        %v708 = vshll.u32 %v562, 16
        %v710 = vrot.slane %v708, 1
        %v711 = vsel %vm563, %v706, %v710
        %712 = vrot.lane.b32.xlu0 %v575, 4
        %v713 = vpop.permute.xlu0 %712
        %714 = vrot.lane.b32.xlu0 %v583, 4
        %v715 = vpop.permute.xlu0 %714
        %716 = vrot.lane.b32.xlu0 %v591, 4
        %v717 = vpop.permute.xlu0 %716
        %718 = vrot.lane.b32.xlu0 %v599, 4
        %v719 = vpop.permute.xlu0 %718
        %720 = vrot.lane.b32.xlu0 %v607, 4
        %v721 = vpop.permute.xlu0 %720
        %722 = vrot.lane.b32.xlu0 %v615, 4
        %v723 = vpop.permute.xlu0 %722
        %724 = vrot.lane.b32.xlu0 %v623, 4
        %v725 = vpop.permute.xlu0 %724
        %726 = vrot.lane.b32.xlu0 %v631, 4
        %v727 = vpop.permute.xlu0 %726
        %728 = vrot.lane.b32.xlu0 %v639, 4
        %v729 = vpop.permute.xlu0 %728
        %730 = vrot.lane.b32.xlu0 %v647, 4
        %v731 = vpop.permute.xlu0 %730
        %732 = vrot.lane.b32.xlu0 %v655, 4
        %v733 = vpop.permute.xlu0 %732
        %734 = vrot.lane.b32.xlu0 %v663, 4
        %v735 = vpop.permute.xlu0 %734
        %736 = vrot.lane.b32.xlu0 %v671, 4
        %v737 = vpop.permute.xlu0 %736
        %738 = vrot.lane.b32.xlu0 %v679, 4
        %v739 = vpop.permute.xlu0 %738
        %740 = vrot.lane.b32.xlu0 %v687, 4
        %v741 = vpop.permute.xlu0 %740
        %742 = vrot.lane.b32.xlu0 %v695, 4
        %v743 = vpop.permute.xlu0 %742
        %744 = vrot.lane.b32.xlu0 %v703, 4
        %v745 = vpop.permute.xlu0 %744
        %746 = vrot.lane.b32.xlu0 %v711, 4
        %v747 = vpop.permute.xlu0 %746
        %v749 = vunpack.c.l.b16 %v469
        %v750 = vpack.c.b16 %v507, %v749
        %vm751 = vcmask 1046528
        %v752 = vrot.slane %v750, 1
        %v753 = vrot.slane %v543, 1
        %v754 = vsel %vm751, %v752, %v753
        %v755 = vrot.slane %v544, 1
        %v756 = vsel %vm751, %v753, %v755
        %v757 = vrot.slane %v545, 1
        %v758 = vsel %vm751, %v755, %v757
        %v759 = vrot.slane %v546, 1
        %v760 = vsel %vm751, %v757, %v759
        %v761 = vrot.slane %v547, 1
        %v762 = vsel %vm751, %v759, %v761
        %v763 = vrot.slane %v548, 1
        %v764 = vsel %vm751, %v761, %v763
        %v765 = vrot.slane %v549, 1
        %v766 = vsel %vm751, %v763, %v765
        %v767 = vrot.slane %v550, 1
        %v768 = vsel %vm751, %v765, %v767
        %v769 = vrot.slane %v551, 1
        %v770 = vsel %vm751, %v767, %v769
        %v771 = vrot.slane %v552, 1
        %v772 = vsel %vm751, %v769, %v771
        %v773 = vrot.slane %v553, 1
        %v774 = vsel %vm751, %v771, %v773
        %v775 = vrot.slane %v554, 1
        %v776 = vsel %vm751, %v773, %v775
        %v777 = vrot.slane %v555, 1
        %v778 = vsel %vm751, %v775, %v777
        %v779 = vrot.slane %v556, 1
        %v780 = vsel %vm751, %v777, %v779
        %v781 = vrot.slane %v557, 1
        %v782 = vsel %vm751, %v779, %v781
        %v783 = vrot.slane %v558, 1
        %v784 = vsel %vm751, %v781, %v783
        %v785 = vrot.slane %v559, 1
        %v786 = vsel %vm751, %v783, %v785
        %v787 = vrot.slane %v562, 1
        %v788 = vsel %vm751, %v785, %v787
        %789 = vrot.lane.b32.xlu0 %v754, 8
        %v790 = vpop.permute.xlu0 %789
        %791 = vrot.lane.b32.xlu0 %v756, 8
        %v792 = vpop.permute.xlu0 %791
        %793 = vrot.lane.b32.xlu0 %v758, 8
        %v794 = vpop.permute.xlu0 %793
        %795 = vrot.lane.b32.xlu0 %v760, 8
        %v796 = vpop.permute.xlu0 %795
        %797 = vrot.lane.b32.xlu0 %v762, 8
        %v798 = vpop.permute.xlu0 %797
        %799 = vrot.lane.b32.xlu0 %v764, 8
        %v800 = vpop.permute.xlu0 %799
        %801 = vrot.lane.b32.xlu0 %v766, 8
        %v802 = vpop.permute.xlu0 %801
        %803 = vrot.lane.b32.xlu0 %v768, 8
        %v804 = vpop.permute.xlu0 %803
        %805 = vrot.lane.b32.xlu0 %v770, 8
        %v806 = vpop.permute.xlu0 %805
        %807 = vrot.lane.b32.xlu0 %v772, 8
        %v808 = vpop.permute.xlu0 %807
        %809 = vrot.lane.b32.xlu0 %v774, 8
        %v810 = vpop.permute.xlu0 %809
        %811 = vrot.lane.b32.xlu0 %v776, 8
        %v812 = vpop.permute.xlu0 %811
        %813 = vrot.lane.b32.xlu0 %v778, 8
        %v814 = vpop.permute.xlu0 %813
        %815 = vrot.lane.b32.xlu0 %v780, 8
        %v816 = vpop.permute.xlu0 %815
        %817 = vrot.lane.b32.xlu0 %v782, 8
        %v818 = vpop.permute.xlu0 %817
        %819 = vrot.lane.b32.xlu0 %v784, 8
        %v820 = vpop.permute.xlu0 %819
        %821 = vrot.lane.b32.xlu0 %v786, 8
        %v822 = vpop.permute.xlu0 %821
        %823 = vrot.lane.b32.xlu0 %v788, 8
        %v824 = vpop.permute.xlu0 %823
        %vm825 = vcmask 31744
        %v827 = vsel %vm825, %v542, %v713
        %v829 = vsel %vm825, %v543, %v715
        %v831 = vsel %vm825, %v544, %v717
        %v833 = vsel %vm825, %v545, %v719
        %v835 = vsel %vm825, %v546, %v721
        %v837 = vsel %vm825, %v547, %v723
        %v839 = vsel %vm825, %v548, %v725
        %v841 = vsel %vm825, %v549, %v727
        %v843 = vsel %vm825, %v550, %v729
        %v845 = vsel %vm825, %v551, %v731
        %v847 = vsel %vm825, %v552, %v733
        %v849 = vsel %vm825, %v553, %v735
        %v851 = vsel %vm825, %v554, %v737
        %v853 = vsel %vm825, %v555, %v739
        %v855 = vsel %vm825, %v556, %v741
        %v857 = vsel %vm825, %v557, %v743
        %v859 = vsel %vm825, %v558, %v745
        %v861 = vsel %vm825, %v559, %v747
        %vm862 = vcmask 64512
        %v864 = vsel %vm862, %v827, %v790
        %v866 = vsel %vm862, %v829, %v792
        %v868 = vsel %vm862, %v831, %v794
        %v870 = vsel %vm862, %v833, %v796
        %v872 = vsel %vm862, %v835, %v798
        %v874 = vsel %vm862, %v837, %v800
        %v876 = vsel %vm862, %v839, %v802
        %v878 = vsel %vm862, %v841, %v804
        %v880 = vsel %vm862, %v843, %v806
        %v882 = vsel %vm862, %v845, %v808
        %v884 = vsel %vm862, %v847, %v810
        %v886 = vsel %vm862, %v849, %v812
        %v888 = vsel %vm862, %v851, %v814
        %v890 = vsel %vm862, %v853, %v816
        %v892 = vsel %vm862, %v855, %v818
        %v894 = vsel %vm862, %v857, %v820
        %v896 = vsel %vm862, %v859, %v822
        %v898 = vsel %vm862, %v861, %v824
        %v899 = vld [vmem:[%s1] sm:$0xf]
        %v900 = vld [vmem:[%s1 + $0x4] sm:$0x3]
        %v901 = vld [vmem:[%s350 + $0x8] sm:$0xe]
        %v902 = vld [vmem:[%s350 + $0x90] sm:$0xf]
        %v903 = vld [vmem:[%s350 + $0x94] sm:$0xf]
        %v904 = vld [vmem:[%s350 + $0x98] sm:$0x1]
        %v905 = vld [vmem:[%s350 + $0x98] sm:$0x3]
        %v906 = vld [vmem:[%s350 + $0x8] sm:$0xc]
        %v911 = vunpack.c.l.b16 %v901
        %v912 = vunpack.c.l.b16 %v902
        %v913 = vunpack.c.l.b16 %v903
        %v914 = vunpack.c.l.b16 %v904
        %v915 = vpack.c.b16 %v509, %v911
        %v916 = vpack.c.b16 %v913, %v912
        %v917 = vpack.c.b16 %v914, %v914
        %v919 = vunpack.c.l.b16 %v905
        %v920 = vpack.c.b16 %v919, %v919
        %v922 = vshrl.u32 %v915, 16
        %v924 = vshll.u32 %v915, 16
        %v926 = vrot.slane %v924, 1
        %v927 = vor.u32 %v922, %v926
        %v928 = vsel %vm563, %v927, %v582
        %v930 = vshll.u32 %v916, 16
        %v932 = vrot.slane %v930, 1
        %v933 = vsel %vm563, %v706, %v932
        %v934 = vshrl.u32 %v916, 16
        %v936 = vor.u32 %v934, %v932
        %v938 = vshll.u32 %v920, 16
        %v940 = vrot.slane %v938, 1
        %v941 = vsel %vm563, %v936, %v940
        %v942 = vshrl.u32 %v920, 16
        %v944 = vor.u32 %v942, %v940
        %945 = vrot.lane.b32.xlu0 %v928, 4
        %v946 = vpop.permute.xlu0 %945
        %947 = vrot.lane.b32.xlu0 %v933, 4
        %v948 = vpop.permute.xlu0 %947
        %949 = vrot.lane.b32.xlu0 %v941, 4
        %v950 = vpop.permute.xlu0 %949
        %951 = vrot.lane.b32.xlu0 %v944, 4
        %v952 = vpop.permute.xlu0 %951
        %v954 = vunpack.c.l.b16 %v906
        %v955 = vpack.c.b16 %v509, %v954
        %v956 = vrot.slane %v955, 1
        %v957 = vsel %vm751, %v956, %v755
        %v958 = vrot.slane %v916, 1
        %v959 = vsel %vm751, %v785, %v958
        %v960 = vrot.slane %v920, 1
        %v961 = vsel %vm751, %v958, %v960
        %962 = vrot.lane.b32.xlu0 %v957, 8
        %v963 = vpop.permute.xlu0 %962
        %964 = vrot.lane.b32.xlu0 %v959, 8
        %v965 = vpop.permute.xlu0 %964
        %966 = vrot.lane.b32.xlu0 %v961, 8
        %v967 = vpop.permute.xlu0 %966
        %968 = vrot.lane.b32.xlu0 %v960, 8
        %v969 = vpop.permute.xlu0 %968
        %v971 = vsel %vm825, %v915, %v946
        %v973 = vsel %vm825, %v559, %v948
        %v975 = vsel %vm825, %v916, %v950
        %v978 = vsel %vm825, %v917, %v952
        %v980 = vsel %vm862, %v971, %v963
        %v982 = vsel %vm862, %v973, %v965
        %v984 = vsel %vm862, %v975, %v967
        %v986 = vsel %vm862, %v978, %v969
        %s987 = scalar_lea.vmem %s1, 8
        %v988 = vld [vmem:[%s987] sm:$0xf]
        %v989 = vld [vmem:[%s987 + $0x4] sm:$0x3]
        %v1009 = vrot.slane %v980, 1
        %v1010 = vrot.slane %v868, 1
        %v1011 = vsel %vm751, %v1009, %v1010
        %v1012 = vrot.slane %v870, 1
        %v1013 = vsel %vm751, %v1010, %v1012
        %v1014 = vrot.slane %v872, 1
        %v1015 = vsel %vm751, %v1012, %v1014
        %v1016 = vrot.slane %v874, 1
        %v1017 = vsel %vm751, %v1014, %v1016
        %v1018 = vrot.slane %v876, 1
        %v1019 = vsel %vm751, %v1016, %v1018
        %v1020 = vrot.slane %v878, 1
        %v1021 = vsel %vm751, %v1018, %v1020
        %v1022 = vrot.slane %v880, 1
        %v1023 = vsel %vm751, %v1020, %v1022
        %v1024 = vrot.slane %v882, 1
        %v1025 = vsel %vm751, %v1022, %v1024
        %v1026 = vrot.slane %v884, 1
        %v1027 = vsel %vm751, %v1024, %v1026
        %v1028 = vrot.slane %v886, 1
        %v1029 = vsel %vm751, %v1026, %v1028
        %v1030 = vrot.slane %v888, 1
        %v1031 = vsel %vm751, %v1028, %v1030
        %v1032 = vrot.slane %v890, 1
        %v1033 = vsel %vm751, %v1030, %v1032
        %v1034 = vrot.slane %v892, 1
        %v1035 = vsel %vm751, %v1032, %v1034
        %v1036 = vrot.slane %v894, 1
        %v1037 = vsel %vm751, %v1034, %v1036
        %v1038 = vrot.slane %v896, 1
        %v1039 = vsel %vm751, %v1036, %v1038
        %v1040 = vrot.slane %v982, 1
        %v1041 = vsel %vm751, %v1038, %v1040
        %v1042 = vrot.slane %v984, 1
        %v1043 = vsel %vm751, %v1040, %v1042
        %v1044 = vrot.slane %v986, 1
        %v1045 = vsel %vm751, %v1042, %v1044
        %v1048 = vunpack.c.l.b16 %v988
        %v1049 = vunpack.c.l.b16 %v989
        %v1050 = vpack.c.b16 %v1049, %v1048
        %vm1051 = vcmask 97280
        %v1053 = vsel %vm1051, %v1011, 0
        %v1056 = vsel %vm1051, %v1013, 0
        %v1059 = vsel %vm1051, %v1015, 0
        %v1062 = vsel %vm1051, %v1017, 0
        %v1065 = vsel %vm1051, %v1019, 0
        %v1068 = vsel %vm1051, %v1021, 0
        %v1071 = vsel %vm1051, %v1023, 0
        %v1074 = vsel %vm1051, %v1025, 0
        %v1077 = vsel %vm1051, %v1027, 0
        %v1080 = vsel %vm1051, %v1029, 0
        %v1083 = vsel %vm1051, %v1031, 0
        %v1086 = vsel %vm1051, %v1033, 0
        %v1089 = vsel %vm1051, %v1035, 0
        %v1092 = vsel %vm1051, %v1037, 0
        %v1095 = vsel %vm1051, %v1039, 0
        %v1098 = vsel %vm1051, %v1041, 0
        %v1101 = vsel %vm1051, %v1043, 0
        %v1104 = vsel %vm1051, %v1045, 0
        %vm1106 = vcmask 1045504
        %v1108 = vsel %vm1106, %v1050, 0
        %1110 = vmatprep.subr.bf16.mxu0 0
        %1111 = vmatpush1.bf16.msra.mxu0 0
        %1112 = vmatprep.subr.bf16.mxu0 0
        %1113 = vmatpush1.bf16.msra.mxu0 0
        %1114 = vmatprep.subr.bf16.mxu0 0
        %1115 = vmatpush1.bf16.msra.mxu0 0
        %1116 = vmatprep.subr.bf16.mxu0 0
        %1117 = vmatpush1.bf16.msra.mxu0 0
        %1118 = vmatprep.subr.bf16.mxu0 0
        %1119 = vmatpush1.bf16.msra.mxu0 0
        %1120 = vmatprep.subr.bf16.mxu0 0
        %1121 = vmatpush1.bf16.msra.mxu0 0
        %1122 = vmatprep.subr.bf16.mxu0 0
        %1123 = vmatpush1.bf16.msra.mxu0 0
        %1124 = vmatprep.subr.bf16.mxu0 0
        %1125 = vmatpush1.bf16.msra.mxu0 %v1108
        %1126 = vmatprep.subr.bf16.mxu0 0
        %1127 = vmatpush2.bf16.msra.mxu0 0
        %1128 = vmatprep.subr.bf16.mxu0 0
        %1129 = vmatpush2.bf16.msra.mxu0 0
        %1130 = vmatprep.subr.bf16.mxu0 0
        %1131 = vmatpush2.bf16.msra.mxu0 0
        %1132 = vmatprep.subr.bf16.mxu0 0
        %1133 = vmatpush2.bf16.msra.mxu0 0
        %1134 = vmatprep.subr.bf16.mxu0 0
        %1135 = vmatpush2.bf16.msra.mxu0 0
        %1136 = vmatprep.subr.bf16.mxu0 0
        %1137 = vmatpush2.bf16.msra.mxu0 0
        %1138 = vmatprep.subr.bf16.mxu0 0
        %1139 = vmatpush2.bf16.msra.mxu0 0
        %1140 = vmatprep.subr.bf16.mxu0 0
        %1141 = vmatpush2.bf16.msra.mxu0 0
        %1142 = vmatprep.mubr.bf16.mxu0 0
        %1143 = vmatmul.mubr.bf16.gmra.mxu0 %v1053
        %v1144 = vpop.f32.mrf.mxu0
        %v1145 = vadd.f32 0.0, %v1144
        %v1146 = vpop.f32.mrf.mxu0
        %v1147 = vpop.f32.mrf.mxu0
        %v1148 = vadd.f32 0.0, %v1147
        %v1149 = vpop.f32.mrf.mxu0
        %1150 = vmatprep.mubr.bf16.mxu0 0
        %1151 = vmatmul.mubr.bf16.gmra.mxu0 %v1056
        %v1152 = vpop.f32.mrf.mxu0
        %v1153 = vadd.f32 0.0, %v1152
        %v1154 = vpop.f32.mrf.mxu0
        %v1155 = vpop.f32.mrf.mxu0
        %v1156 = vadd.f32 0.0, %v1155
        %v1157 = vpop.f32.mrf.mxu0
        %1158 = vmatprep.mubr.bf16.mxu0 0
        %1159 = vmatmul.mubr.bf16.gmra.mxu0 %v1059
        %v1160 = vpop.f32.mrf.mxu0
        %v1161 = vadd.f32 0.0, %v1160
        %v1162 = vpop.f32.mrf.mxu0
        %v1163 = vpop.f32.mrf.mxu0
        %v1164 = vadd.f32 0.0, %v1163
        %v1165 = vpop.f32.mrf.mxu0
        %1166 = vmatprep.mubr.bf16.mxu0 0
        %1167 = vmatmul.mubr.bf16.gmra.mxu0 %v1062
        %v1168 = vpop.f32.mrf.mxu0
        %v1169 = vadd.f32 0.0, %v1168
        %v1170 = vpop.f32.mrf.mxu0
        %v1171 = vpop.f32.mrf.mxu0
        %v1172 = vadd.f32 0.0, %v1171
        %v1173 = vpop.f32.mrf.mxu0
        %1174 = vmatprep.mubr.bf16.mxu0 0
        %1175 = vmatmul.mubr.bf16.gmra.mxu0 %v1065
        %v1176 = vpop.f32.mrf.mxu0
        %v1177 = vadd.f32 0.0, %v1176
        %v1178 = vpop.f32.mrf.mxu0
        %v1179 = vpop.f32.mrf.mxu0
        %v1180 = vadd.f32 0.0, %v1179
        %v1181 = vpop.f32.mrf.mxu0
        %1182 = vmatprep.mubr.bf16.mxu0 0
        %1183 = vmatmul.mubr.bf16.gmra.mxu0 %v1068
        %v1184 = vpop.f32.mrf.mxu0
        %v1185 = vadd.f32 0.0, %v1184
        %v1186 = vpop.f32.mrf.mxu0
        %v1187 = vpop.f32.mrf.mxu0
        %v1188 = vadd.f32 0.0, %v1187
        %v1189 = vpop.f32.mrf.mxu0
        %1190 = vmatprep.mubr.bf16.mxu0 0
        %1191 = vmatmul.mubr.bf16.gmra.mxu0 %v1071
        %v1192 = vpop.f32.mrf.mxu0
        %v1193 = vadd.f32 0.0, %v1192
        %v1194 = vpop.f32.mrf.mxu0
        %v1195 = vpop.f32.mrf.mxu0
        %v1196 = vadd.f32 0.0, %v1195
        %v1197 = vpop.f32.mrf.mxu0
        %1198 = vmatprep.mubr.bf16.mxu0 0
        %1199 = vmatmul.mubr.bf16.gmra.mxu0 %v1074
        %v1200 = vpop.f32.mrf.mxu0
        %v1201 = vadd.f32 0.0, %v1200
        %v1202 = vpop.f32.mrf.mxu0
        %v1203 = vpop.f32.mrf.mxu0
        %v1204 = vadd.f32 0.0, %v1203
        %v1205 = vpop.f32.mrf.mxu0
        %1206 = vmatprep.mubr.bf16.mxu0 0
        %1207 = vmatmul.mubr.bf16.gmra.mxu0 %v1077
        %v1208 = vpop.f32.mrf.mxu0
        %v1209 = vadd.f32 0.0, %v1208
        %v1210 = vpop.f32.mrf.mxu0
        %v1211 = vpop.f32.mrf.mxu0
        %v1212 = vadd.f32 0.0, %v1211
        %v1213 = vpop.f32.mrf.mxu0
        %1214 = vmatprep.mubr.bf16.mxu0 0
        %1215 = vmatmul.mubr.bf16.gmra.mxu0 %v1080
        %v1216 = vpop.f32.mrf.mxu0
        %v1217 = vadd.f32 0.0, %v1216
        %v1218 = vpop.f32.mrf.mxu0
        %v1219 = vpop.f32.mrf.mxu0
        %v1220 = vadd.f32 0.0, %v1219
        %v1221 = vpop.f32.mrf.mxu0
        %1222 = vmatprep.mubr.bf16.mxu0 0
        %1223 = vmatmul.mubr.bf16.gmra.mxu0 %v1083
        %v1224 = vpop.f32.mrf.mxu0
        %v1225 = vadd.f32 0.0, %v1224
        %v1226 = vpop.f32.mrf.mxu0
        %v1227 = vpop.f32.mrf.mxu0
        %v1228 = vadd.f32 0.0, %v1227
        %v1229 = vpop.f32.mrf.mxu0
        %1230 = vmatprep.mubr.bf16.mxu0 0
        %1231 = vmatmul.mubr.bf16.gmra.mxu0 %v1086
        %v1232 = vpop.f32.mrf.mxu0
        %v1233 = vadd.f32 0.0, %v1232
        %v1234 = vpop.f32.mrf.mxu0
        %v1235 = vpop.f32.mrf.mxu0
        %v1236 = vadd.f32 0.0, %v1235
        %v1237 = vpop.f32.mrf.mxu0
        %1238 = vmatprep.mubr.bf16.mxu0 0
        %1239 = vmatmul.mubr.bf16.gmra.mxu0 %v1089
        %v1240 = vpop.f32.mrf.mxu0
        %v1241 = vadd.f32 0.0, %v1240
        %v1242 = vpop.f32.mrf.mxu0
        %v1243 = vpop.f32.mrf.mxu0
        %v1244 = vadd.f32 0.0, %v1243
        %v1245 = vpop.f32.mrf.mxu0
        %1246 = vmatprep.mubr.bf16.mxu0 0
        %1247 = vmatmul.mubr.bf16.gmra.mxu0 %v1092
        %v1248 = vpop.f32.mrf.mxu0
        %v1249 = vadd.f32 0.0, %v1248
        %v1250 = vpop.f32.mrf.mxu0
        %v1251 = vpop.f32.mrf.mxu0
        %v1252 = vadd.f32 0.0, %v1251
        %v1253 = vpop.f32.mrf.mxu0
        %1254 = vmatprep.mubr.bf16.mxu0 0
        %1255 = vmatmul.mubr.bf16.gmra.mxu0 %v1095
        %v1256 = vpop.f32.mrf.mxu0
        %v1257 = vadd.f32 0.0, %v1256
        %v1258 = vpop.f32.mrf.mxu0
        %v1259 = vpop.f32.mrf.mxu0
        %v1260 = vadd.f32 0.0, %v1259
        %v1261 = vpop.f32.mrf.mxu0
        %1262 = vmatprep.mubr.bf16.mxu0 0
        %1263 = vmatmul.mubr.bf16.gmra.mxu0 %v1098
        %v1264 = vpop.f32.mrf.mxu0
        %v1265 = vadd.f32 0.0, %v1264
        %v1266 = vpop.f32.mrf.mxu0
        %v1267 = vpop.f32.mrf.mxu0
        %v1268 = vadd.f32 0.0, %v1267
        %v1269 = vpop.f32.mrf.mxu0
        %1270 = vmatprep.mubr.bf16.mxu0 0
        %1271 = vmatmul.mubr.bf16.gmra.mxu0 %v1101
        %v1272 = vpop.f32.mrf.mxu0
        %v1273 = vadd.f32 0.0, %v1272
        %v1274 = vpop.f32.mrf.mxu0
        %v1275 = vpop.f32.mrf.mxu0
        %v1276 = vadd.f32 0.0, %v1275
        %v1277 = vpop.f32.mrf.mxu0
        %1278 = vmatprep.mubr.bf16.mxu0 0
        %1279 = vmatmul.mubr.bf16.gmra.mxu0 %v1104
        %v1280 = vpop.f32.mrf.mxu0
        %v1281 = vadd.f32 0.0, %v1280
        %v1282 = vpop.f32.mrf.mxu0
        %v1283 = vpop.f32.mrf.mxu0
        %v1284 = vadd.f32 0.0, %v1283
        %v1285 = vpop.f32.mrf.mxu0
        %1286 = vdwg.mxu0
        %v1289 = vunpack.c.l.b16 %v899
        %v1290 = vunpack.c.l.b16 %v900
        %v1291 = vpack.c.b16 %v1290, %v1289
        %v1292 = vsel %vm1051, %v864, 0
        %v1294 = vsel %vm1051, %v866, 0
        %v1296 = vsel %vm1051, %v868, 0
        %v1298 = vsel %vm1051, %v870, 0
        %v1300 = vsel %vm1051, %v872, 0
        %v1302 = vsel %vm1051, %v874, 0
        %v1304 = vsel %vm1051, %v876, 0
        %v1306 = vsel %vm1051, %v878, 0
        %v1308 = vsel %vm1051, %v880, 0
        %v1310 = vsel %vm1051, %v882, 0
        %v1312 = vsel %vm1051, %v884, 0
        %v1314 = vsel %vm1051, %v886, 0
        %v1316 = vsel %vm1051, %v888, 0
        %v1318 = vsel %vm1051, %v890, 0
        %v1320 = vsel %vm1051, %v892, 0
        %v1322 = vsel %vm1051, %v894, 0
        %v1324 = vsel %vm1051, %v896, 0
        %v1326 = vsel %vm1051, %v898, 0
        %v1329 = vsel %vm1106, %v1291, 0
        %1331 = vmatprep.subr.bf16.mxu0 0
        %1332 = vmatpush1.bf16.msra.mxu0 0
        %1333 = vmatprep.subr.bf16.mxu0 0
        %1334 = vmatpush1.bf16.msra.mxu0 0
        %1335 = vmatprep.subr.bf16.mxu0 0
        %1336 = vmatpush1.bf16.msra.mxu0 0
        %1337 = vmatprep.subr.bf16.mxu0 0
        %1338 = vmatpush1.bf16.msra.mxu0 0
        %1339 = vmatprep.subr.bf16.mxu0 0
        %1340 = vmatpush1.bf16.msra.mxu0 0
        %1341 = vmatprep.subr.bf16.mxu0 0
        %1342 = vmatpush1.bf16.msra.mxu0 0
        %1343 = vmatprep.subr.bf16.mxu0 0
        %1344 = vmatpush1.bf16.msra.mxu0 0
        %1345 = vmatprep.subr.bf16.mxu0 0
        %1346 = vmatpush1.bf16.msra.mxu0 %v1329
        %1347 = vmatprep.subr.bf16.mxu0 0
        %1348 = vmatpush2.bf16.msra.mxu0 0
        %1349 = vmatprep.subr.bf16.mxu0 0
        %1350 = vmatpush2.bf16.msra.mxu0 0
        %1351 = vmatprep.subr.bf16.mxu0 0
        %1352 = vmatpush2.bf16.msra.mxu0 0
        %1353 = vmatprep.subr.bf16.mxu0 0
        %1354 = vmatpush2.bf16.msra.mxu0 0
        %1355 = vmatprep.subr.bf16.mxu0 0
        %1356 = vmatpush2.bf16.msra.mxu0 0
        %1357 = vmatprep.subr.bf16.mxu0 0
        %1358 = vmatpush2.bf16.msra.mxu0 0
        %1359 = vmatprep.subr.bf16.mxu0 0
        %1360 = vmatpush2.bf16.msra.mxu0 0
        %1361 = vmatprep.subr.bf16.mxu0 0
        %1362 = vmatpush2.bf16.msra.mxu0 0
        %1363 = vmatprep.mubr.bf16.mxu0 0
        %1364 = vmatmul.mubr.bf16.gmra.mxu0 %v1292
        %v1365 = vpop.f32.mrf.mxu0
        %v1366 = vadd.f32 %v1145, %v1365
        %v1367 = vpop.f32.mrf.mxu0
        %v1368 = vpop.f32.mrf.mxu0
        %v1369 = vadd.f32 %v1148, %v1368
        %v1370 = vpop.f32.mrf.mxu0
        %1371 = vmatprep.mubr.bf16.mxu0 0
        %1372 = vmatmul.mubr.bf16.gmra.mxu0 %v1294
        %v1373 = vpop.f32.mrf.mxu0
        %v1374 = vadd.f32 %v1153, %v1373
        %v1375 = vpop.f32.mrf.mxu0
        %v1376 = vpop.f32.mrf.mxu0
        %v1377 = vadd.f32 %v1156, %v1376
        %v1378 = vpop.f32.mrf.mxu0
        %1379 = vmatprep.mubr.bf16.mxu0 0
        %1380 = vmatmul.mubr.bf16.gmra.mxu0 %v1296
        %v1381 = vpop.f32.mrf.mxu0
        %v1382 = vadd.f32 %v1161, %v1381
        %v1383 = vpop.f32.mrf.mxu0
        %v1384 = vpop.f32.mrf.mxu0
        %v1385 = vadd.f32 %v1164, %v1384
        %v1386 = vpop.f32.mrf.mxu0
        %1387 = vmatprep.mubr.bf16.mxu0 0
        %1388 = vmatmul.mubr.bf16.gmra.mxu0 %v1298
        %v1389 = vpop.f32.mrf.mxu0
        %v1390 = vadd.f32 %v1169, %v1389
        %v1391 = vpop.f32.mrf.mxu0
        %v1392 = vpop.f32.mrf.mxu0
        %v1393 = vadd.f32 %v1172, %v1392
        %v1394 = vpop.f32.mrf.mxu0
        %1395 = vmatprep.mubr.bf16.mxu0 0
        %1396 = vmatmul.mubr.bf16.gmra.mxu0 %v1300
        %v1397 = vpop.f32.mrf.mxu0
        %v1398 = vadd.f32 %v1177, %v1397
        %v1399 = vpop.f32.mrf.mxu0
        %v1400 = vpop.f32.mrf.mxu0
        %v1401 = vadd.f32 %v1180, %v1400
        %v1402 = vpop.f32.mrf.mxu0
        %1403 = vmatprep.mubr.bf16.mxu0 0
        %1404 = vmatmul.mubr.bf16.gmra.mxu0 %v1302
        %v1405 = vpop.f32.mrf.mxu0
        %v1406 = vadd.f32 %v1185, %v1405
        %v1407 = vpop.f32.mrf.mxu0
        %v1408 = vpop.f32.mrf.mxu0
        %v1409 = vadd.f32 %v1188, %v1408
        %v1410 = vpop.f32.mrf.mxu0
        %1411 = vmatprep.mubr.bf16.mxu0 0
        %1412 = vmatmul.mubr.bf16.gmra.mxu0 %v1304
        %v1413 = vpop.f32.mrf.mxu0
        %v1414 = vadd.f32 %v1193, %v1413
        %v1415 = vpop.f32.mrf.mxu0
        %v1416 = vpop.f32.mrf.mxu0
        %v1417 = vadd.f32 %v1196, %v1416
        %v1418 = vpop.f32.mrf.mxu0
        %1419 = vmatprep.mubr.bf16.mxu0 0
        %1420 = vmatmul.mubr.bf16.gmra.mxu0 %v1306
        %v1421 = vpop.f32.mrf.mxu0
        %v1422 = vadd.f32 %v1201, %v1421
        %v1423 = vpop.f32.mrf.mxu0
        %v1424 = vpop.f32.mrf.mxu0
        %v1425 = vadd.f32 %v1204, %v1424
        %v1426 = vpop.f32.mrf.mxu0
        %1427 = vmatprep.mubr.bf16.mxu0 0
        %1428 = vmatmul.mubr.bf16.gmra.mxu0 %v1308
        %v1429 = vpop.f32.mrf.mxu0
        %v1430 = vadd.f32 %v1209, %v1429
        %v1431 = vpop.f32.mrf.mxu0
        %v1432 = vpop.f32.mrf.mxu0
        %v1433 = vadd.f32 %v1212, %v1432
        %v1434 = vpop.f32.mrf.mxu0
        %1435 = vmatprep.mubr.bf16.mxu0 0
        %1436 = vmatmul.mubr.bf16.gmra.mxu0 %v1310
        %v1437 = vpop.f32.mrf.mxu0
        %v1438 = vadd.f32 %v1217, %v1437
        %v1439 = vpop.f32.mrf.mxu0
        %v1440 = vpop.f32.mrf.mxu0
        %v1441 = vadd.f32 %v1220, %v1440
        %v1442 = vpop.f32.mrf.mxu0
        %1443 = vmatprep.mubr.bf16.mxu0 0
        %1444 = vmatmul.mubr.bf16.gmra.mxu0 %v1312
        %v1445 = vpop.f32.mrf.mxu0
        %v1446 = vadd.f32 %v1225, %v1445
        %v1447 = vpop.f32.mrf.mxu0
        %v1448 = vpop.f32.mrf.mxu0
        %v1449 = vadd.f32 %v1228, %v1448
        %v1450 = vpop.f32.mrf.mxu0
        %1451 = vmatprep.mubr.bf16.mxu0 0
        %1452 = vmatmul.mubr.bf16.gmra.mxu0 %v1314
        %v1453 = vpop.f32.mrf.mxu0
        %v1454 = vadd.f32 %v1233, %v1453
        %v1455 = vpop.f32.mrf.mxu0
        %v1456 = vpop.f32.mrf.mxu0
        %v1457 = vadd.f32 %v1236, %v1456
        %v1458 = vpop.f32.mrf.mxu0
        %1459 = vmatprep.mubr.bf16.mxu0 0
        %1460 = vmatmul.mubr.bf16.gmra.mxu0 %v1316
        %v1461 = vpop.f32.mrf.mxu0
        %v1462 = vadd.f32 %v1241, %v1461
        %v1463 = vpop.f32.mrf.mxu0
        %v1464 = vpop.f32.mrf.mxu0
        %v1465 = vadd.f32 %v1244, %v1464
        %v1466 = vpop.f32.mrf.mxu0
        %1467 = vmatprep.mubr.bf16.mxu0 0
        %1468 = vmatmul.mubr.bf16.gmra.mxu0 %v1318
        %v1469 = vpop.f32.mrf.mxu0
        %v1470 = vadd.f32 %v1249, %v1469
        %v1471 = vpop.f32.mrf.mxu0
        %v1472 = vpop.f32.mrf.mxu0
        %v1473 = vadd.f32 %v1252, %v1472
        %v1474 = vpop.f32.mrf.mxu0
        %1475 = vmatprep.mubr.bf16.mxu0 0
        %1476 = vmatmul.mubr.bf16.gmra.mxu0 %v1320
        %v1477 = vpop.f32.mrf.mxu0
        %v1478 = vadd.f32 %v1257, %v1477
        %v1479 = vpop.f32.mrf.mxu0
        %v1480 = vpop.f32.mrf.mxu0
        %v1481 = vadd.f32 %v1260, %v1480
        %v1482 = vpop.f32.mrf.mxu0
        %1483 = vmatprep.mubr.bf16.mxu0 0
        %1484 = vmatmul.mubr.bf16.gmra.mxu0 %v1322
        %v1485 = vpop.f32.mrf.mxu0
        %v1486 = vadd.f32 %v1265, %v1485
        %v1487 = vpop.f32.mrf.mxu0
        %v1488 = vpop.f32.mrf.mxu0
        %v1489 = vadd.f32 %v1268, %v1488
        %v1490 = vpop.f32.mrf.mxu0
        %1491 = vmatprep.mubr.bf16.mxu0 0
        %1492 = vmatmul.mubr.bf16.gmra.mxu0 %v1324
        %v1493 = vpop.f32.mrf.mxu0
        %v1494 = vadd.f32 %v1273, %v1493
        %v1495 = vpop.f32.mrf.mxu0
        %v1496 = vpop.f32.mrf.mxu0
        %v1497 = vadd.f32 %v1276, %v1496
        %v1498 = vpop.f32.mrf.mxu0
        %1499 = vmatprep.mubr.bf16.mxu0 0
        %1500 = vmatmul.mubr.bf16.gmra.mxu0 %v1326
        %v1501 = vpop.f32.mrf.mxu0
        %v1502 = vadd.f32 %v1281, %v1501
        %v1503 = vpop.f32.mrf.mxu0
        %v1504 = vpop.f32.mrf.mxu0
        %v1505 = vadd.f32 %v1284, %v1504
        %v1506 = vpop.f32.mrf.mxu0
        %1507 = vdwg.mxu0
        %v1508 = vld [vmem:[%s350 + $0x10] sm:$0xc]
        %v1509 = vld [vmem:[%s350 + $0x14] sm:$0xf]
        %v1510 = vld [vmem:[%s350 + $0x18] sm:$0xf]
        %v1511 = vld [vmem:[%s350 + $0x1c] sm:$0xf]
        %v1512 = vld [vmem:[%s350 + $0x20] sm:$0xf]
        %v1513 = vld [vmem:[%s350 + $0x24] sm:$0xf]
        %v1514 = vld [vmem:[%s350 + $0x28] sm:$0xf]
        %v1515 = vld [vmem:[%s350 + $0x2c] sm:$0xf]
        %v1516 = vld [vmem:[%s350 + $0x30] sm:$0xf]
        %v1517 = vld [vmem:[%s350 + $0x34] sm:$0xf]
        %v1518 = vld [vmem:[%s350 + $0x38] sm:$0xf]
        %v1519 = vld [vmem:[%s350 + $0x3c] sm:$0xf]
        %v1520 = vld [vmem:[%s350 + $0x40] sm:$0xf]
        %v1521 = vld [vmem:[%s350 + $0x44] sm:$0xf]
        %v1522 = vld [vmem:[%s350 + $0x48] sm:$0xf]
        %v1523 = vld [vmem:[%s350 + $0x4c] sm:$0xf]
        %v1524 = vld [vmem:[%s350 + $0x50] sm:$0xf]
        %v1525 = vld [vmem:[%s350 + $0x54] sm:$0xf]
        %v1526 = vld [vmem:[%s350 + $0x58] sm:$0xf]
        %v1527 = vld [vmem:[%s350 + $0x5c] sm:$0xf]
        %v1528 = vld [vmem:[%s350 + $0x60] sm:$0xf]
        %v1529 = vld [vmem:[%s350 + $0x64] sm:$0xf]
        %v1530 = vld [vmem:[%s350 + $0x68] sm:$0xf]
        %v1531 = vld [vmem:[%s350 + $0x6c] sm:$0xf]
        %v1532 = vld [vmem:[%s350 + $0x70] sm:$0xf]
        %v1533 = vld [vmem:[%s350 + $0x74] sm:$0xf]
        %v1534 = vld [vmem:[%s350 + $0x78] sm:$0xf]
        %v1535 = vld [vmem:[%s350 + $0x7c] sm:$0xf]
        %v1536 = vld [vmem:[%s350 + $0x80] sm:$0xf]
        %v1537 = vld [vmem:[%s350 + $0x84] sm:$0xf]
        %v1538 = vld [vmem:[%s350 + $0x88] sm:$0xf]
        %v1539 = vld [vmem:[%s350 + $0x8c] sm:$0xf]
        %v1540 = vld [vmem:[%s350 + $0x90] sm:$0xf]
        %v1541 = vld [vmem:[%s350 + $0x94] sm:$0xf]
        %v1542 = vld [vmem:[%s350 + $0x98] sm:$0xf]
        %v1543 = vld [vmem:[%s350 + $0x9c] sm:$0xf]
        %v1544 = vld [vmem:[%s350 + $0xa0] sm:$0x3]
        %v1545 = vld [vmem:[%s350 + $0xa0] sm:$0x7]
        %v1546 = vld [vmem:[%s350 + $0x10] sm:$0x8]
        %v1584 = vunpack.c.l.b16 %v1508
        %v1585 = vunpack.c.l.b16 %v1509
        %v1586 = vunpack.c.l.b16 %v1510
        %v1587 = vunpack.c.l.b16 %v1511
        %v1588 = vunpack.c.l.b16 %v1512
        %v1589 = vunpack.c.l.b16 %v1513
        %v1590 = vunpack.c.l.b16 %v1514
        %v1591 = vunpack.c.l.b16 %v1515
        %v1592 = vunpack.c.l.b16 %v1516
        %v1593 = vunpack.c.l.b16 %v1517
        %v1594 = vunpack.c.l.b16 %v1518
        %v1595 = vunpack.c.l.b16 %v1519
        %v1596 = vunpack.c.l.b16 %v1520
        %v1597 = vunpack.c.l.b16 %v1521
        %v1598 = vunpack.c.l.b16 %v1522
        %v1599 = vunpack.c.l.b16 %v1523
        %v1600 = vunpack.c.l.b16 %v1524
        %v1601 = vunpack.c.l.b16 %v1525
        %v1602 = vunpack.c.l.b16 %v1526
        %v1603 = vunpack.c.l.b16 %v1527
        %v1604 = vunpack.c.l.b16 %v1528
        %v1605 = vunpack.c.l.b16 %v1529
        %v1606 = vunpack.c.l.b16 %v1530
        %v1607 = vunpack.c.l.b16 %v1531
        %v1608 = vunpack.c.l.b16 %v1532
        %v1609 = vunpack.c.l.b16 %v1533
        %v1610 = vunpack.c.l.b16 %v1534
        %v1611 = vunpack.c.l.b16 %v1535
        %v1612 = vunpack.c.l.b16 %v1536
        %v1613 = vunpack.c.l.b16 %v1537
        %v1614 = vunpack.c.l.b16 %v1538
        %v1615 = vunpack.c.l.b16 %v1539
        %v1616 = vunpack.c.l.b16 %v1540
        %v1617 = vunpack.c.l.b16 %v1541
        %v1618 = vunpack.c.l.b16 %v1542
        %v1619 = vunpack.c.l.b16 %v1543
        %v1620 = vunpack.c.l.b16 %v1544
        %v1621 = vpack.c.b16 %v1585, %v1584
        %v1622 = vpack.c.b16 %v1587, %v1586
        %v1623 = vpack.c.b16 %v1589, %v1588
        %v1624 = vpack.c.b16 %v1591, %v1590
        %v1625 = vpack.c.b16 %v1593, %v1592
        %v1626 = vpack.c.b16 %v1595, %v1594
        %v1627 = vpack.c.b16 %v1597, %v1596
        %v1628 = vpack.c.b16 %v1599, %v1598
        %v1629 = vpack.c.b16 %v1601, %v1600
        %v1630 = vpack.c.b16 %v1603, %v1602
        %v1631 = vpack.c.b16 %v1605, %v1604
        %v1632 = vpack.c.b16 %v1607, %v1606
        %v1633 = vpack.c.b16 %v1609, %v1608
        %v1634 = vpack.c.b16 %v1611, %v1610
        %v1635 = vpack.c.b16 %v1613, %v1612
        %v1636 = vpack.c.b16 %v1615, %v1614
        %v1637 = vpack.c.b16 %v1617, %v1616
        %v1638 = vpack.c.b16 %v1619, %v1618
        %v1639 = vpack.c.b16 %v1620, %v1620
        %v1641 = vunpack.c.l.b16 %v1545
        %v1642 = vpack.c.b16 %v1641, %v1641
        %v1644 = vshrl.u32 %v1621, 16
        %v1646 = vshll.u32 %v1621, 16
        %v1648 = vrot.slane %v1646, 1
        %v1649 = vor.u32 %v1644, %v1648
        %v1651 = vshll.u32 %v1622, 16
        %v1653 = vrot.slane %v1651, 1
        %v1654 = vsel %vm563, %v1649, %v1653
        %v1655 = vshrl.u32 %v1622, 16
        %v1657 = vor.u32 %v1655, %v1653
        %v1659 = vshll.u32 %v1623, 16
        %v1661 = vrot.slane %v1659, 1
        %v1662 = vsel %vm563, %v1657, %v1661
        %v1663 = vshrl.u32 %v1623, 16
        %v1665 = vor.u32 %v1663, %v1661
        %v1667 = vshll.u32 %v1624, 16
        %v1669 = vrot.slane %v1667, 1
        %v1670 = vsel %vm563, %v1665, %v1669
        %v1671 = vshrl.u32 %v1624, 16
        %v1673 = vor.u32 %v1671, %v1669
        %v1675 = vshll.u32 %v1625, 16
        %v1677 = vrot.slane %v1675, 1
        %v1678 = vsel %vm563, %v1673, %v1677
        %v1679 = vshrl.u32 %v1625, 16
        %v1681 = vor.u32 %v1679, %v1677
        %v1683 = vshll.u32 %v1626, 16
        %v1685 = vrot.slane %v1683, 1
        %v1686 = vsel %vm563, %v1681, %v1685
        %v1687 = vshrl.u32 %v1626, 16
        %v1689 = vor.u32 %v1687, %v1685
        %v1691 = vshll.u32 %v1627, 16
        %v1693 = vrot.slane %v1691, 1
        %v1694 = vsel %vm563, %v1689, %v1693
        %v1695 = vshrl.u32 %v1627, 16
        %v1697 = vor.u32 %v1695, %v1693
        %v1699 = vshll.u32 %v1628, 16
        %v1701 = vrot.slane %v1699, 1
        %v1702 = vsel %vm563, %v1697, %v1701
        %v1703 = vshrl.u32 %v1628, 16
        %v1705 = vor.u32 %v1703, %v1701
        %v1707 = vshll.u32 %v1629, 16
        %v1709 = vrot.slane %v1707, 1
        %v1710 = vsel %vm563, %v1705, %v1709
        %v1711 = vshrl.u32 %v1629, 16
        %v1713 = vor.u32 %v1711, %v1709
        %v1715 = vshll.u32 %v1630, 16
        %v1717 = vrot.slane %v1715, 1
        %v1718 = vsel %vm563, %v1713, %v1717
        %v1719 = vshrl.u32 %v1630, 16
        %v1721 = vor.u32 %v1719, %v1717
        %v1723 = vshll.u32 %v1631, 16
        %v1725 = vrot.slane %v1723, 1
        %v1726 = vsel %vm563, %v1721, %v1725
        %v1727 = vshrl.u32 %v1631, 16
        %v1729 = vor.u32 %v1727, %v1725
        %v1731 = vshll.u32 %v1632, 16
        %v1733 = vrot.slane %v1731, 1
        %v1734 = vsel %vm563, %v1729, %v1733
        %v1735 = vshrl.u32 %v1632, 16
        %v1737 = vor.u32 %v1735, %v1733
        %v1739 = vshll.u32 %v1633, 16
        %v1741 = vrot.slane %v1739, 1
        %v1742 = vsel %vm563, %v1737, %v1741
        %v1743 = vshrl.u32 %v1633, 16
        %v1745 = vor.u32 %v1743, %v1741
        %v1747 = vshll.u32 %v1634, 16
        %v1749 = vrot.slane %v1747, 1
        %v1750 = vsel %vm563, %v1745, %v1749
        %v1751 = vshrl.u32 %v1634, 16
        %v1753 = vor.u32 %v1751, %v1749
        %v1755 = vshll.u32 %v1635, 16
        %v1757 = vrot.slane %v1755, 1
        %v1758 = vsel %vm563, %v1753, %v1757
        %v1759 = vshrl.u32 %v1635, 16
        %v1761 = vor.u32 %v1759, %v1757
        %v1763 = vshll.u32 %v1636, 16
        %v1765 = vrot.slane %v1763, 1
        %v1766 = vsel %vm563, %v1761, %v1765
        %v1767 = vshrl.u32 %v1636, 16
        %v1769 = vor.u32 %v1767, %v1765
        %v1771 = vshll.u32 %v1637, 16
        %v1773 = vrot.slane %v1771, 1
        %v1774 = vsel %vm563, %v1769, %v1773
        %v1775 = vshrl.u32 %v1637, 16
        %v1777 = vor.u32 %v1775, %v1773
        %v1779 = vshll.u32 %v1638, 16
        %v1781 = vrot.slane %v1779, 1
        %v1782 = vsel %vm563, %v1777, %v1781
        %v1783 = vshrl.u32 %v1638, 16
        %v1785 = vor.u32 %v1783, %v1781
        %v1787 = vshll.u32 %v1642, 16
        %v1789 = vrot.slane %v1787, 1
        %v1790 = vsel %vm563, %v1785, %v1789
        %v1791 = vshrl.u32 %v1642, 16
        %v1793 = vor.u32 %v1791, %v1789
        %1794 = vrot.lane.b32.xlu0 %v1654, 4
        %v1795 = vpop.permute.xlu0 %1794
        %1796 = vrot.lane.b32.xlu0 %v1662, 4
        %v1797 = vpop.permute.xlu0 %1796
        %1798 = vrot.lane.b32.xlu0 %v1670, 4
        %v1799 = vpop.permute.xlu0 %1798
        %1800 = vrot.lane.b32.xlu0 %v1678, 4
        %v1801 = vpop.permute.xlu0 %1800
        %1802 = vrot.lane.b32.xlu0 %v1686, 4
        %v1803 = vpop.permute.xlu0 %1802
        %1804 = vrot.lane.b32.xlu0 %v1694, 4
        %v1805 = vpop.permute.xlu0 %1804
        %1806 = vrot.lane.b32.xlu0 %v1702, 4
        %v1807 = vpop.permute.xlu0 %1806
        %1808 = vrot.lane.b32.xlu0 %v1710, 4
        %v1809 = vpop.permute.xlu0 %1808
        %1810 = vrot.lane.b32.xlu0 %v1718, 4
        %v1811 = vpop.permute.xlu0 %1810
        %1812 = vrot.lane.b32.xlu0 %v1726, 4
        %v1813 = vpop.permute.xlu0 %1812
        %1814 = vrot.lane.b32.xlu0 %v1734, 4
        %v1815 = vpop.permute.xlu0 %1814
        %1816 = vrot.lane.b32.xlu0 %v1742, 4
        %v1817 = vpop.permute.xlu0 %1816
        %1818 = vrot.lane.b32.xlu0 %v1750, 4
        %v1819 = vpop.permute.xlu0 %1818
        %1820 = vrot.lane.b32.xlu0 %v1758, 4
        %v1821 = vpop.permute.xlu0 %1820
        %1822 = vrot.lane.b32.xlu0 %v1766, 4
        %v1823 = vpop.permute.xlu0 %1822
        %1824 = vrot.lane.b32.xlu0 %v1774, 4
        %v1825 = vpop.permute.xlu0 %1824
        %1826 = vrot.lane.b32.xlu0 %v1782, 4
        %v1827 = vpop.permute.xlu0 %1826
        %1828 = vrot.lane.b32.xlu0 %v1790, 4
        %v1829 = vpop.permute.xlu0 %1828
        %1830 = vrot.lane.b32.xlu0 %v1793, 4
        %v1831 = vpop.permute.xlu0 %1830
        %v1833 = vunpack.c.l.b16 %v1546
        %v1834 = vpack.c.b16 %v1585, %v1833
        %v1835 = vrot.slane %v1834, 1
        %v1836 = vrot.slane %v1622, 1
        %v1837 = vsel %vm751, %v1835, %v1836
        %v1838 = vrot.slane %v1623, 1
        %v1839 = vsel %vm751, %v1836, %v1838
        %v1840 = vrot.slane %v1624, 1
        %v1841 = vsel %vm751, %v1838, %v1840
        %v1842 = vrot.slane %v1625, 1
        %v1843 = vsel %vm751, %v1840, %v1842
        %v1844 = vrot.slane %v1626, 1
        %v1845 = vsel %vm751, %v1842, %v1844
        %v1846 = vrot.slane %v1627, 1
        %v1847 = vsel %vm751, %v1844, %v1846
        %v1848 = vrot.slane %v1628, 1
        %v1849 = vsel %vm751, %v1846, %v1848
        %v1850 = vrot.slane %v1629, 1
        %v1851 = vsel %vm751, %v1848, %v1850
        %v1852 = vrot.slane %v1630, 1
        %v1853 = vsel %vm751, %v1850, %v1852
        %v1854 = vrot.slane %v1631, 1
        %v1855 = vsel %vm751, %v1852, %v1854
        %v1856 = vrot.slane %v1632, 1
        %v1857 = vsel %vm751, %v1854, %v1856
        %v1858 = vrot.slane %v1633, 1
        %v1859 = vsel %vm751, %v1856, %v1858
        %v1860 = vrot.slane %v1634, 1
        %v1861 = vsel %vm751, %v1858, %v1860
        %v1862 = vrot.slane %v1635, 1
        %v1863 = vsel %vm751, %v1860, %v1862
        %v1864 = vrot.slane %v1636, 1
        %v1865 = vsel %vm751, %v1862, %v1864
        %v1866 = vrot.slane %v1637, 1
        %v1867 = vsel %vm751, %v1864, %v1866
        %v1868 = vrot.slane %v1638, 1
        %v1869 = vsel %vm751, %v1866, %v1868
        %v1870 = vrot.slane %v1642, 1
        %v1871 = vsel %vm751, %v1868, %v1870
        %1872 = vrot.lane.b32.xlu0 %v1837, 8
        %v1873 = vpop.permute.xlu0 %1872
        %1874 = vrot.lane.b32.xlu0 %v1839, 8
        %v1875 = vpop.permute.xlu0 %1874
        %1876 = vrot.lane.b32.xlu0 %v1841, 8
        %v1877 = vpop.permute.xlu0 %1876
        %1878 = vrot.lane.b32.xlu0 %v1843, 8
        %v1879 = vpop.permute.xlu0 %1878
        %1880 = vrot.lane.b32.xlu0 %v1845, 8
        %v1881 = vpop.permute.xlu0 %1880
        %1882 = vrot.lane.b32.xlu0 %v1847, 8
        %v1883 = vpop.permute.xlu0 %1882
        %1884 = vrot.lane.b32.xlu0 %v1849, 8
        %v1885 = vpop.permute.xlu0 %1884
        %1886 = vrot.lane.b32.xlu0 %v1851, 8
        %v1887 = vpop.permute.xlu0 %1886
        %1888 = vrot.lane.b32.xlu0 %v1853, 8
        %v1889 = vpop.permute.xlu0 %1888
        %1890 = vrot.lane.b32.xlu0 %v1855, 8
        %v1891 = vpop.permute.xlu0 %1890
        %1892 = vrot.lane.b32.xlu0 %v1857, 8
        %v1893 = vpop.permute.xlu0 %1892
        %1894 = vrot.lane.b32.xlu0 %v1859, 8
        %v1895 = vpop.permute.xlu0 %1894
        %1896 = vrot.lane.b32.xlu0 %v1861, 8
        %v1897 = vpop.permute.xlu0 %1896
        %1898 = vrot.lane.b32.xlu0 %v1863, 8
        %v1899 = vpop.permute.xlu0 %1898
        %1900 = vrot.lane.b32.xlu0 %v1865, 8
        %v1901 = vpop.permute.xlu0 %1900
        %1902 = vrot.lane.b32.xlu0 %v1867, 8
        %v1903 = vpop.permute.xlu0 %1902
        %1904 = vrot.lane.b32.xlu0 %v1869, 8
        %v1905 = vpop.permute.xlu0 %1904
        %1906 = vrot.lane.b32.xlu0 %v1871, 8
        %v1907 = vpop.permute.xlu0 %1906
        %1908 = vrot.lane.b32.xlu0 %v1870, 8
        %v1909 = vpop.permute.xlu0 %1908
        %v1911 = vsel %vm825, %v1621, %v1795
        %v1913 = vsel %vm825, %v1622, %v1797
        %v1915 = vsel %vm825, %v1623, %v1799
        %v1917 = vsel %vm825, %v1624, %v1801
        %v1919 = vsel %vm825, %v1625, %v1803
        %v1921 = vsel %vm825, %v1626, %v1805
        %v1923 = vsel %vm825, %v1627, %v1807
        %v1925 = vsel %vm825, %v1628, %v1809
        %v1927 = vsel %vm825, %v1629, %v1811
        %v1929 = vsel %vm825, %v1630, %v1813
        %v1931 = vsel %vm825, %v1631, %v1815
        %v1933 = vsel %vm825, %v1632, %v1817
        %v1935 = vsel %vm825, %v1633, %v1819
        %v1937 = vsel %vm825, %v1634, %v1821
        %v1939 = vsel %vm825, %v1635, %v1823
        %v1941 = vsel %vm825, %v1636, %v1825
        %v1943 = vsel %vm825, %v1637, %v1827
        %v1945 = vsel %vm825, %v1638, %v1829
        %v1948 = vsel %vm825, %v1639, %v1831
        %v1950 = vsel %vm862, %v1911, %v1873
        %v1952 = vsel %vm862, %v1913, %v1875
        %v1954 = vsel %vm862, %v1915, %v1877
        %v1956 = vsel %vm862, %v1917, %v1879
        %v1958 = vsel %vm862, %v1919, %v1881
        %v1960 = vsel %vm862, %v1921, %v1883
        %v1962 = vsel %vm862, %v1923, %v1885
        %v1964 = vsel %vm862, %v1925, %v1887
        %v1966 = vsel %vm862, %v1927, %v1889
        %v1968 = vsel %vm862, %v1929, %v1891
        %v1970 = vsel %vm862, %v1931, %v1893
        %v1972 = vsel %vm862, %v1933, %v1895
        %v1974 = vsel %vm862, %v1935, %v1897
        %v1976 = vsel %vm862, %v1937, %v1899
        %v1978 = vsel %vm862, %v1939, %v1901
        %v1980 = vsel %vm862, %v1941, %v1903
        %v1982 = vsel %vm862, %v1943, %v1905
        %v1984 = vsel %vm862, %v1945, %v1907
        %v1986 = vsel %vm862, %v1948, %v1909
        %s1987 = scalar_lea.vmem %s1, 16
        %v1988 = vld [vmem:[%s1987] sm:$0xf]
        %v1989 = vld [vmem:[%s1987 + $0x4] sm:$0x3]
        %vm2009 = vcmask 1045504
        %v2010 = vrot.slane %v1950, 2
        %v2011 = vrot.slane %v1952, 2
        %v2012 = vsel %vm2009, %v2010, %v2011
        %v2013 = vrot.slane %v1954, 2
        %v2014 = vsel %vm2009, %v2011, %v2013
        %v2015 = vrot.slane %v1956, 2
        %v2016 = vsel %vm2009, %v2013, %v2015
        %v2017 = vrot.slane %v1958, 2
        %v2018 = vsel %vm2009, %v2015, %v2017
        %v2019 = vrot.slane %v1960, 2
        %v2020 = vsel %vm2009, %v2017, %v2019
        %v2021 = vrot.slane %v1962, 2
        %v2022 = vsel %vm2009, %v2019, %v2021
        %v2023 = vrot.slane %v1964, 2
        %v2024 = vsel %vm2009, %v2021, %v2023
        %v2025 = vrot.slane %v1966, 2
        %v2026 = vsel %vm2009, %v2023, %v2025
        %v2027 = vrot.slane %v1968, 2
        %v2028 = vsel %vm2009, %v2025, %v2027
        %v2029 = vrot.slane %v1970, 2
        %v2030 = vsel %vm2009, %v2027, %v2029
        %v2031 = vrot.slane %v1972, 2
        %v2032 = vsel %vm2009, %v2029, %v2031
        %v2033 = vrot.slane %v1974, 2
        %v2034 = vsel %vm2009, %v2031, %v2033
        %v2035 = vrot.slane %v1976, 2
        %v2036 = vsel %vm2009, %v2033, %v2035
        %v2037 = vrot.slane %v1978, 2
        %v2038 = vsel %vm2009, %v2035, %v2037
        %v2039 = vrot.slane %v1980, 2
        %v2040 = vsel %vm2009, %v2037, %v2039
        %v2041 = vrot.slane %v1982, 2
        %v2042 = vsel %vm2009, %v2039, %v2041
        %v2043 = vrot.slane %v1984, 2
        %v2044 = vsel %vm2009, %v2041, %v2043
        %v2045 = vrot.slane %v1986, 2
        %v2046 = vsel %vm2009, %v2043, %v2045
        %v2049 = vunpack.c.l.b16 %v1988
        %v2050 = vunpack.c.l.b16 %v1989
        %v2051 = vpack.c.b16 %v2050, %v2049
        %v2053 = vsel %vm1051, %v2012, 0
        %v2056 = vsel %vm1051, %v2014, 0
        %v2059 = vsel %vm1051, %v2016, 0
        %v2062 = vsel %vm1051, %v2018, 0
        %v2065 = vsel %vm1051, %v2020, 0
        %v2068 = vsel %vm1051, %v2022, 0
        %v2071 = vsel %vm1051, %v2024, 0
        %v2074 = vsel %vm1051, %v2026, 0
        %v2077 = vsel %vm1051, %v2028, 0
        %v2080 = vsel %vm1051, %v2030, 0
        %v2083 = vsel %vm1051, %v2032, 0
        %v2086 = vsel %vm1051, %v2034, 0
        %v2089 = vsel %vm1051, %v2036, 0
        %v2092 = vsel %vm1051, %v2038, 0
        %v2095 = vsel %vm1051, %v2040, 0
        %v2098 = vsel %vm1051, %v2042, 0
        %v2101 = vsel %vm1051, %v2044, 0
        %v2104 = vsel %vm1051, %v2046, 0
        %v2107 = vsel %vm1106, %v2051, 0
        %2109 = vmatprep.subr.bf16.mxu0 0
        %2110 = vmatpush1.bf16.msra.mxu0 0
        %2111 = vmatprep.subr.bf16.mxu0 0
        %2112 = vmatpush1.bf16.msra.mxu0 0
        %2113 = vmatprep.subr.bf16.mxu0 0
        %2114 = vmatpush1.bf16.msra.mxu0 0
        %2115 = vmatprep.subr.bf16.mxu0 0
        %2116 = vmatpush1.bf16.msra.mxu0 0
        %2117 = vmatprep.subr.bf16.mxu0 0
        %2118 = vmatpush1.bf16.msra.mxu0 0
        %2119 = vmatprep.subr.bf16.mxu0 0
        %2120 = vmatpush1.bf16.msra.mxu0 0
        %2121 = vmatprep.subr.bf16.mxu0 0
        %2122 = vmatpush1.bf16.msra.mxu0 0
        %2123 = vmatprep.subr.bf16.mxu0 0
        %2124 = vmatpush1.bf16.msra.mxu0 %v2107
        %2125 = vmatprep.subr.bf16.mxu0 0
        %2126 = vmatpush2.bf16.msra.mxu0 0
        %2127 = vmatprep.subr.bf16.mxu0 0
        %2128 = vmatpush2.bf16.msra.mxu0 0
        %2129 = vmatprep.subr.bf16.mxu0 0
        %2130 = vmatpush2.bf16.msra.mxu0 0
        %2131 = vmatprep.subr.bf16.mxu0 0
        %2132 = vmatpush2.bf16.msra.mxu0 0
        %2133 = vmatprep.subr.bf16.mxu0 0
        %2134 = vmatpush2.bf16.msra.mxu0 0
        %2135 = vmatprep.subr.bf16.mxu0 0
        %2136 = vmatpush2.bf16.msra.mxu0 0
        %2137 = vmatprep.subr.bf16.mxu0 0
        %2138 = vmatpush2.bf16.msra.mxu0 0
        %2139 = vmatprep.subr.bf16.mxu0 0
        %2140 = vmatpush2.bf16.msra.mxu0 0
        %2141 = vmatprep.mubr.bf16.mxu0 0
        %2142 = vmatmul.mubr.bf16.gmra.mxu0 %v2053
        %v2143 = vpop.f32.mrf.mxu0
        %v2144 = vadd.f32 0.0, %v2143
        %v2145 = vpop.f32.mrf.mxu0
        %v2146 = vpop.f32.mrf.mxu0
        %v2147 = vadd.f32 0.0, %v2146
        %v2148 = vpop.f32.mrf.mxu0
        %2149 = vmatprep.mubr.bf16.mxu0 0
        %2150 = vmatmul.mubr.bf16.gmra.mxu0 %v2056
        %v2151 = vpop.f32.mrf.mxu0
        %v2152 = vadd.f32 0.0, %v2151
        %v2153 = vpop.f32.mrf.mxu0
        %v2154 = vpop.f32.mrf.mxu0
        %v2155 = vadd.f32 0.0, %v2154
        %v2156 = vpop.f32.mrf.mxu0
        %2157 = vmatprep.mubr.bf16.mxu0 0
        %2158 = vmatmul.mubr.bf16.gmra.mxu0 %v2059
        %v2159 = vpop.f32.mrf.mxu0
        %v2160 = vadd.f32 0.0, %v2159
        %v2161 = vpop.f32.mrf.mxu0
        %v2162 = vpop.f32.mrf.mxu0
        %v2163 = vadd.f32 0.0, %v2162
        %v2164 = vpop.f32.mrf.mxu0
        %2165 = vmatprep.mubr.bf16.mxu0 0
        %2166 = vmatmul.mubr.bf16.gmra.mxu0 %v2062
        %v2167 = vpop.f32.mrf.mxu0
        %v2168 = vadd.f32 0.0, %v2167
        %v2169 = vpop.f32.mrf.mxu0
        %v2170 = vpop.f32.mrf.mxu0
        %v2171 = vadd.f32 0.0, %v2170
        %v2172 = vpop.f32.mrf.mxu0
        %2173 = vmatprep.mubr.bf16.mxu0 0
        %2174 = vmatmul.mubr.bf16.gmra.mxu0 %v2065
        %v2175 = vpop.f32.mrf.mxu0
        %v2176 = vadd.f32 0.0, %v2175
        %v2177 = vpop.f32.mrf.mxu0
        %v2178 = vpop.f32.mrf.mxu0
        %v2179 = vadd.f32 0.0, %v2178
        %v2180 = vpop.f32.mrf.mxu0
        %2181 = vmatprep.mubr.bf16.mxu0 0
        %2182 = vmatmul.mubr.bf16.gmra.mxu0 %v2068
        %v2183 = vpop.f32.mrf.mxu0
        %v2184 = vadd.f32 0.0, %v2183
        %v2185 = vpop.f32.mrf.mxu0
        %v2186 = vpop.f32.mrf.mxu0
        %v2187 = vadd.f32 0.0, %v2186
        %v2188 = vpop.f32.mrf.mxu0
        %2189 = vmatprep.mubr.bf16.mxu0 0
        %2190 = vmatmul.mubr.bf16.gmra.mxu0 %v2071
        %v2191 = vpop.f32.mrf.mxu0
        %v2192 = vadd.f32 0.0, %v2191
        %v2193 = vpop.f32.mrf.mxu0
        %v2194 = vpop.f32.mrf.mxu0
        %v2195 = vadd.f32 0.0, %v2194
        %v2196 = vpop.f32.mrf.mxu0
        %2197 = vmatprep.mubr.bf16.mxu0 0
        %2198 = vmatmul.mubr.bf16.gmra.mxu0 %v2074
        %v2199 = vpop.f32.mrf.mxu0
        %v2200 = vadd.f32 0.0, %v2199
        %v2201 = vpop.f32.mrf.mxu0
        %v2202 = vpop.f32.mrf.mxu0
        %v2203 = vadd.f32 0.0, %v2202
        %v2204 = vpop.f32.mrf.mxu0
        %2205 = vmatprep.mubr.bf16.mxu0 0
        %2206 = vmatmul.mubr.bf16.gmra.mxu0 %v2077
        %v2207 = vpop.f32.mrf.mxu0
        %v2208 = vadd.f32 0.0, %v2207
        %v2209 = vpop.f32.mrf.mxu0
        %v2210 = vpop.f32.mrf.mxu0
        %v2211 = vadd.f32 0.0, %v2210
        %v2212 = vpop.f32.mrf.mxu0
        %2213 = vmatprep.mubr.bf16.mxu0 0
        %2214 = vmatmul.mubr.bf16.gmra.mxu0 %v2080
        %v2215 = vpop.f32.mrf.mxu0
        %v2216 = vadd.f32 0.0, %v2215
        %v2217 = vpop.f32.mrf.mxu0
        %v2218 = vpop.f32.mrf.mxu0
        %v2219 = vadd.f32 0.0, %v2218
        %v2220 = vpop.f32.mrf.mxu0
        %2221 = vmatprep.mubr.bf16.mxu0 0
        %2222 = vmatmul.mubr.bf16.gmra.mxu0 %v2083
        %v2223 = vpop.f32.mrf.mxu0
        %v2224 = vadd.f32 0.0, %v2223
        %v2225 = vpop.f32.mrf.mxu0
        %v2226 = vpop.f32.mrf.mxu0
        %v2227 = vadd.f32 0.0, %v2226
        %v2228 = vpop.f32.mrf.mxu0
        %2229 = vmatprep.mubr.bf16.mxu0 0
        %2230 = vmatmul.mubr.bf16.gmra.mxu0 %v2086
        %v2231 = vpop.f32.mrf.mxu0
        %v2232 = vadd.f32 0.0, %v2231
        %v2233 = vpop.f32.mrf.mxu0
        %v2234 = vpop.f32.mrf.mxu0
        %v2235 = vadd.f32 0.0, %v2234
        %v2236 = vpop.f32.mrf.mxu0
        %2237 = vmatprep.mubr.bf16.mxu0 0
        %2238 = vmatmul.mubr.bf16.gmra.mxu0 %v2089
        %v2239 = vpop.f32.mrf.mxu0
        %v2240 = vadd.f32 0.0, %v2239
        %v2241 = vpop.f32.mrf.mxu0
        %v2242 = vpop.f32.mrf.mxu0
        %v2243 = vadd.f32 0.0, %v2242
        %v2244 = vpop.f32.mrf.mxu0
        %2245 = vmatprep.mubr.bf16.mxu0 0
        %2246 = vmatmul.mubr.bf16.gmra.mxu0 %v2092
        %v2247 = vpop.f32.mrf.mxu0
        %v2248 = vadd.f32 0.0, %v2247
        %v2249 = vpop.f32.mrf.mxu0
        %v2250 = vpop.f32.mrf.mxu0
        %v2251 = vadd.f32 0.0, %v2250
        %v2252 = vpop.f32.mrf.mxu0
        %2253 = vmatprep.mubr.bf16.mxu0 0
        %2254 = vmatmul.mubr.bf16.gmra.mxu0 %v2095
        %v2255 = vpop.f32.mrf.mxu0
        %v2256 = vadd.f32 0.0, %v2255
        %v2257 = vpop.f32.mrf.mxu0
        %v2258 = vpop.f32.mrf.mxu0
        %v2259 = vadd.f32 0.0, %v2258
        %v2260 = vpop.f32.mrf.mxu0
        %2261 = vmatprep.mubr.bf16.mxu0 0
        %2262 = vmatmul.mubr.bf16.gmra.mxu0 %v2098
        %v2263 = vpop.f32.mrf.mxu0
        %v2264 = vadd.f32 0.0, %v2263
        %v2265 = vpop.f32.mrf.mxu0
        %v2266 = vpop.f32.mrf.mxu0
        %v2267 = vadd.f32 0.0, %v2266
        %v2268 = vpop.f32.mrf.mxu0
        %2269 = vmatprep.mubr.bf16.mxu0 0
        %2270 = vmatmul.mubr.bf16.gmra.mxu0 %v2101
        %v2271 = vpop.f32.mrf.mxu0
        %v2272 = vadd.f32 0.0, %v2271
        %v2273 = vpop.f32.mrf.mxu0
        %v2274 = vpop.f32.mrf.mxu0
        %v2275 = vadd.f32 0.0, %v2274
        %v2276 = vpop.f32.mrf.mxu0
        %2277 = vmatprep.mubr.bf16.mxu0 0
        %2278 = vmatmul.mubr.bf16.gmra.mxu0 %v2104
        %v2279 = vpop.f32.mrf.mxu0
        %v2280 = vadd.f32 0.0, %v2279
        %v2281 = vpop.f32.mrf.mxu0
        %v2282 = vpop.f32.mrf.mxu0
        %v2283 = vadd.f32 0.0, %v2282
        %v2284 = vpop.f32.mrf.mxu0
        %2285 = vdwg.mxu0
        %v2286 = vadd.f32 %v1366, %v2144
        %v2287 = vadd.f32 %v1369, %v2147
        %v2288 = vadd.f32 %v1374, %v2152
        %v2289 = vadd.f32 %v1377, %v2155
        %v2290 = vadd.f32 %v1382, %v2160
        %v2291 = vadd.f32 %v1385, %v2163
        %v2292 = vadd.f32 %v1390, %v2168
        %v2293 = vadd.f32 %v1393, %v2171
        %v2294 = vadd.f32 %v1398, %v2176
        %v2295 = vadd.f32 %v1401, %v2179
        %v2296 = vadd.f32 %v1406, %v2184
        %v2297 = vadd.f32 %v1409, %v2187
        %v2298 = vadd.f32 %v1414, %v2192
        %v2299 = vadd.f32 %v1417, %v2195
        %v2300 = vadd.f32 %v1422, %v2200
        %v2301 = vadd.f32 %v1425, %v2203
        %v2302 = vadd.f32 %v1430, %v2208
        %v2303 = vadd.f32 %v1433, %v2211
        %v2304 = vadd.f32 %v1438, %v2216
        %v2305 = vadd.f32 %v1441, %v2219
        %v2306 = vadd.f32 %v1446, %v2224
        %v2307 = vadd.f32 %v1449, %v2227
        %v2308 = vadd.f32 %v1454, %v2232
        %v2309 = vadd.f32 %v1457, %v2235
        %v2310 = vadd.f32 %v1462, %v2240
        %v2311 = vadd.f32 %v1465, %v2243
        %v2312 = vadd.f32 %v1470, %v2248
        %v2313 = vadd.f32 %v1473, %v2251
        %v2314 = vadd.f32 %v1478, %v2256
        %v2315 = vadd.f32 %v1481, %v2259
        %v2316 = vadd.f32 %v1486, %v2264
        %v2317 = vadd.f32 %v1489, %v2267
        %v2318 = vadd.f32 %v1494, %v2272
        %v2319 = vadd.f32 %v1497, %v2275
        %v2320 = vadd.f32 %v1502, %v2280
        %v2321 = vadd.f32 %v1505, %v2283
        %v2322 = vld [vmem:[%s2] sm:$0x1]
        %v2324 = vlaneseq
        %v2325 = vshrl.u32 %v2324, 7
        %v2326 = vsub.s32 0, %v2325
        %v2327 = vrot.slane %v2322, %v2326
        %v2329 = vadd.f32 %v2286, %v2327
        %v2330 = vadd.f32 %v2287, %v2327
        %v2331 = vadd.f32 %v2288, %v2327
        %v2332 = vadd.f32 %v2289, %v2327
        %v2333 = vadd.f32 %v2290, %v2327
        %v2334 = vadd.f32 %v2291, %v2327
        %v2335 = vadd.f32 %v2292, %v2327
        %v2336 = vadd.f32 %v2293, %v2327
        %v2337 = vadd.f32 %v2294, %v2327
        %v2338 = vadd.f32 %v2295, %v2327
        %v2339 = vadd.f32 %v2296, %v2327
        %v2340 = vadd.f32 %v2297, %v2327
        %v2341 = vadd.f32 %v2298, %v2327
        %v2342 = vadd.f32 %v2299, %v2327
        %v2343 = vadd.f32 %v2300, %v2327
        %v2344 = vadd.f32 %v2301, %v2327
        %v2345 = vadd.f32 %v2302, %v2327
        %v2346 = vadd.f32 %v2303, %v2327
        %v2347 = vadd.f32 %v2304, %v2327
        %v2348 = vadd.f32 %v2305, %v2327
        %v2349 = vadd.f32 %v2306, %v2327
        %v2350 = vadd.f32 %v2307, %v2327
        %v2351 = vadd.f32 %v2308, %v2327
        %v2352 = vadd.f32 %v2309, %v2327
        %v2353 = vadd.f32 %v2310, %v2327
        %v2354 = vadd.f32 %v2311, %v2327
        %v2355 = vadd.f32 %v2312, %v2327
        %v2356 = vadd.f32 %v2313, %v2327
        %v2357 = vadd.f32 %v2314, %v2327
        %v2358 = vadd.f32 %v2315, %v2327
        %v2359 = vadd.f32 %v2316, %v2327
        %v2360 = vadd.f32 %v2317, %v2327
        %v2361 = vadd.f32 %v2318, %v2327
        %v2362 = vadd.f32 %v2319, %v2327
        %v2363 = vadd.f32 %v2320, %v2327
        %v2364 = vadd.f32 %v2321, %v2327
        %v2365 = vmax.f32 %v2329, 0.0
        %v2366 = vmax.f32 %v2330, 0.0
        %v2367 = vmax.f32 %v2331, 0.0
        %v2368 = vmax.f32 %v2332, 0.0
        %v2369 = vmax.f32 %v2333, 0.0
        %v2370 = vmax.f32 %v2334, 0.0
        %v2371 = vmax.f32 %v2335, 0.0
        %v2372 = vmax.f32 %v2336, 0.0
        %v2373 = vmax.f32 %v2337, 0.0
        %v2374 = vmax.f32 %v2338, 0.0
        %v2375 = vmax.f32 %v2339, 0.0
        %v2376 = vmax.f32 %v2340, 0.0
        %v2377 = vmax.f32 %v2341, 0.0
        %v2378 = vmax.f32 %v2342, 0.0
        %v2379 = vmax.f32 %v2343, 0.0
        %v2380 = vmax.f32 %v2344, 0.0
        %v2381 = vmax.f32 %v2345, 0.0
        %v2382 = vmax.f32 %v2346, 0.0
        %v2383 = vmax.f32 %v2347, 0.0
        %v2384 = vmax.f32 %v2348, 0.0
        %v2385 = vmax.f32 %v2349, 0.0
        %v2386 = vmax.f32 %v2350, 0.0
        %v2387 = vmax.f32 %v2351, 0.0
        %v2388 = vmax.f32 %v2352, 0.0
        %v2389 = vmax.f32 %v2353, 0.0
        %v2390 = vmax.f32 %v2354, 0.0
        %v2391 = vmax.f32 %v2355, 0.0
        %v2392 = vmax.f32 %v2356, 0.0
        %v2393 = vmax.f32 %v2357, 0.0
        %v2394 = vmax.f32 %v2358, 0.0
        %v2395 = vmax.f32 %v2359, 0.0
        %v2396 = vmax.f32 %v2360, 0.0
        %v2397 = vmax.f32 %v2361, 0.0
        %v2398 = vmax.f32 %v2362, 0.0
        %v2399 = vmax.f32 %v2363, 0.0
        %v2400 = vmax.f32 %v2364, 0.0
        %v2401 = vlaneseq
        %v2402 = vshrl.u32 %v2401, 7
        %v2403 = vadd.s32 %v2402, 8
        %v2404 = vadd.s32 %v2402, 16
        %v2405 = vadd.s32 %v2402, 24
        %v2406 = vadd.s32 %v2402, 32
        %v2407 = vadd.s32 %v2402, 40
        %v2408 = vadd.s32 %v2402, 48
        %v2409 = vadd.s32 %v2402, 56
        %v2410 = vadd.s32 %v2402, 64
        %v2411 = vadd.s32 %v2402, 72
        %v2412 = vadd.s32 %v2402, 80
        %v2413 = vadd.s32 %v2402, 88
        %v2414 = vadd.s32 %v2402, 96
        %v2415 = vadd.s32 %v2402, 104
        %v2416 = vadd.s32 %v2402, 112
        %v2417 = vadd.s32 %v2402, 120
        %v2418 = vadd.s32 %v2402, 128
        %v2419 = vadd.s32 %v2402, 136
        %v2420 = vadd.s32 %v2402, 144
        %v2421 = vadd.s32 %v2402, 152
        %v2422 = vadd.s32 %v2402, 160
        %v2423 = vadd.s32 %v2402, 168
        %v2424 = vadd.s32 %v2402, 176
        %v2425 = vadd.s32 %v2402, 184
        %v2426 = vadd.s32 %v2402, 192
        %v2427 = vadd.s32 %v2402, 200
        %v2428 = vadd.s32 %v2402, 208
        %v2429 = vadd.s32 %v2402, 216
        %v2430 = vadd.s32 %v2402, 224
        %v2431 = vadd.s32 %v2402, 232
        %v2432 = vadd.s32 %v2402, 240
        %v2433 = vadd.s32 %v2402, 248
        %v2434 = vadd.s32 %v2402, 256
        %v2435 = vadd.s32 %v2402, 264
        %v2436 = vadd.s32 %v2402, 272
        %v2437 = vadd.s32 %v2402, 280
        %vm2438 = vcmp.lt.s32.totalorder %v2402, 0
        %v2439 = vsub.s32 0, %v2402
        %v2440 = vsel %vm2438, %v2439, %v2402
        %v2441 = vmul.u32.u64.compose %v2440, 3817748708
        %v2442 = vextract.low.u32 %v2441
        %v2443 = vextract.high.u32 %v2441
        %v2444 = vshrl.u32 %v2443, 4
        %v2445 = vmul.u32 %v2444, 18
        %v2446 = vsub.s32 %v2440, %v2445
        %v2447 = vsub.s32 0, %v2446
        %v2448 = vsel %vm2438, %v2447, %v2446
        %vm2449 = vcmp.lt.s32.totalorder %v2403, 0
        %v2450 = vsub.s32 0, %v2403
        %v2451 = vsel %vm2449, %v2450, %v2403
        %v2452 = vmul.u32.u64.compose %v2451, 3817748708
        %v2453 = vextract.low.u32 %v2452
        %v2454 = vextract.high.u32 %v2452
        %v2455 = vshrl.u32 %v2454, 4
        %v2456 = vmul.u32 %v2455, 18
        %v2457 = vsub.s32 %v2451, %v2456
        %v2458 = vsub.s32 0, %v2457
        %v2459 = vsel %vm2449, %v2458, %v2457
        %vm2460 = vcmp.lt.s32.totalorder %v2404, 0
        %v2461 = vsub.s32 0, %v2404
        %v2462 = vsel %vm2460, %v2461, %v2404
        %v2463 = vmul.u32.u64.compose %v2462, 3817748708
        %v2464 = vextract.low.u32 %v2463
        %v2465 = vextract.high.u32 %v2463
        %v2466 = vshrl.u32 %v2465, 4
        %v2467 = vmul.u32 %v2466, 18
        %v2468 = vsub.s32 %v2462, %v2467
        %v2469 = vsub.s32 0, %v2468
        %v2470 = vsel %vm2460, %v2469, %v2468
        %vm2471 = vcmp.lt.s32.totalorder %v2405, 0
        %v2472 = vsub.s32 0, %v2405
        %v2473 = vsel %vm2471, %v2472, %v2405
        %v2474 = vmul.u32.u64.compose %v2473, 3817748708
        %v2475 = vextract.low.u32 %v2474
        %v2476 = vextract.high.u32 %v2474
        %v2477 = vshrl.u32 %v2476, 4
        %v2478 = vmul.u32 %v2477, 18
        %v2479 = vsub.s32 %v2473, %v2478
        %v2480 = vsub.s32 0, %v2479
        %v2481 = vsel %vm2471, %v2480, %v2479
        %vm2482 = vcmp.lt.s32.totalorder %v2406, 0
        %v2483 = vsub.s32 0, %v2406
        %v2484 = vsel %vm2482, %v2483, %v2406
        %v2485 = vmul.u32.u64.compose %v2484, 3817748708
        %v2486 = vextract.low.u32 %v2485
        %v2487 = vextract.high.u32 %v2485
        %v2488 = vshrl.u32 %v2487, 4
        %v2489 = vmul.u32 %v2488, 18
        %v2490 = vsub.s32 %v2484, %v2489
        %v2491 = vsub.s32 0, %v2490
        %v2492 = vsel %vm2482, %v2491, %v2490
        %vm2493 = vcmp.lt.s32.totalorder %v2407, 0
        %v2494 = vsub.s32 0, %v2407
        %v2495 = vsel %vm2493, %v2494, %v2407
        %v2496 = vmul.u32.u64.compose %v2495, 3817748708
        %v2497 = vextract.low.u32 %v2496
        %v2498 = vextract.high.u32 %v2496
        %v2499 = vshrl.u32 %v2498, 4
        %v2500 = vmul.u32 %v2499, 18
        %v2501 = vsub.s32 %v2495, %v2500
        %v2502 = vsub.s32 0, %v2501
        %v2503 = vsel %vm2493, %v2502, %v2501
        %vm2504 = vcmp.lt.s32.totalorder %v2408, 0
        %v2505 = vsub.s32 0, %v2408
        %v2506 = vsel %vm2504, %v2505, %v2408
        %v2507 = vmul.u32.u64.compose %v2506, 3817748708
        %v2508 = vextract.low.u32 %v2507
        %v2509 = vextract.high.u32 %v2507
        %v2510 = vshrl.u32 %v2509, 4
        %v2511 = vmul.u32 %v2510, 18
        %v2512 = vsub.s32 %v2506, %v2511
        %v2513 = vsub.s32 0, %v2512
        %v2514 = vsel %vm2504, %v2513, %v2512
        %vm2515 = vcmp.lt.s32.totalorder %v2409, 0
        %v2516 = vsub.s32 0, %v2409
        %v2517 = vsel %vm2515, %v2516, %v2409
        %v2518 = vmul.u32.u64.compose %v2517, 3817748708
        %v2519 = vextract.low.u32 %v2518
        %v2520 = vextract.high.u32 %v2518
        %v2521 = vshrl.u32 %v2520, 4
        %v2522 = vmul.u32 %v2521, 18
        %v2523 = vsub.s32 %v2517, %v2522
        %v2524 = vsub.s32 0, %v2523
        %v2525 = vsel %vm2515, %v2524, %v2523
        %vm2526 = vcmp.lt.s32.totalorder %v2410, 0
        %v2527 = vsub.s32 0, %v2410
        %v2528 = vsel %vm2526, %v2527, %v2410
        %v2529 = vmul.u32.u64.compose %v2528, 3817748708
        %v2530 = vextract.low.u32 %v2529
        %v2531 = vextract.high.u32 %v2529
        %v2532 = vshrl.u32 %v2531, 4
        %v2533 = vmul.u32 %v2532, 18
        %v2534 = vsub.s32 %v2528, %v2533
        %v2535 = vsub.s32 0, %v2534
        %v2536 = vsel %vm2526, %v2535, %v2534
        %vm2537 = vcmp.lt.s32.totalorder %v2411, 0
        %v2538 = vsub.s32 0, %v2411
        %v2539 = vsel %vm2537, %v2538, %v2411
        %v2540 = vmul.u32.u64.compose %v2539, 3817748708
        %v2541 = vextract.low.u32 %v2540
        %v2542 = vextract.high.u32 %v2540
        %v2543 = vshrl.u32 %v2542, 4
        %v2544 = vmul.u32 %v2543, 18
        %v2545 = vsub.s32 %v2539, %v2544
        %v2546 = vsub.s32 0, %v2545
        %v2547 = vsel %vm2537, %v2546, %v2545
        %vm2548 = vcmp.lt.s32.totalorder %v2412, 0
        %v2549 = vsub.s32 0, %v2412
        %v2550 = vsel %vm2548, %v2549, %v2412
        %v2551 = vmul.u32.u64.compose %v2550, 3817748708
        %v2552 = vextract.low.u32 %v2551
        %v2553 = vextract.high.u32 %v2551
        %v2554 = vshrl.u32 %v2553, 4
        %v2555 = vmul.u32 %v2554, 18
        %v2556 = vsub.s32 %v2550, %v2555
        %v2557 = vsub.s32 0, %v2556
        %v2558 = vsel %vm2548, %v2557, %v2556
        %vm2559 = vcmp.lt.s32.totalorder %v2413, 0
        %v2560 = vsub.s32 0, %v2413
        %v2561 = vsel %vm2559, %v2560, %v2413
        %v2562 = vmul.u32.u64.compose %v2561, 3817748708
        %v2563 = vextract.low.u32 %v2562
        %v2564 = vextract.high.u32 %v2562
        %v2565 = vshrl.u32 %v2564, 4
        %v2566 = vmul.u32 %v2565, 18
        %v2567 = vsub.s32 %v2561, %v2566
        %v2568 = vsub.s32 0, %v2567
        %v2569 = vsel %vm2559, %v2568, %v2567
        %vm2570 = vcmp.lt.s32.totalorder %v2414, 0
        %v2571 = vsub.s32 0, %v2414
        %v2572 = vsel %vm2570, %v2571, %v2414
        %v2573 = vmul.u32.u64.compose %v2572, 3817748708
        %v2574 = vextract.low.u32 %v2573
        %v2575 = vextract.high.u32 %v2573
        %v2576 = vshrl.u32 %v2575, 4
        %v2577 = vmul.u32 %v2576, 18
        %v2578 = vsub.s32 %v2572, %v2577
        %v2579 = vsub.s32 0, %v2578
        %v2580 = vsel %vm2570, %v2579, %v2578
        %vm2581 = vcmp.lt.s32.totalorder %v2415, 0
        %v2582 = vsub.s32 0, %v2415
        %v2583 = vsel %vm2581, %v2582, %v2415
        %v2584 = vmul.u32.u64.compose %v2583, 3817748708
        %v2585 = vextract.low.u32 %v2584
        %v2586 = vextract.high.u32 %v2584
        %v2587 = vshrl.u32 %v2586, 4
        %v2588 = vmul.u32 %v2587, 18
        %v2589 = vsub.s32 %v2583, %v2588
        %v2590 = vsub.s32 0, %v2589
        %v2591 = vsel %vm2581, %v2590, %v2589
        %vm2592 = vcmp.lt.s32.totalorder %v2416, 0
        %v2593 = vsub.s32 0, %v2416
        %v2594 = vsel %vm2592, %v2593, %v2416
        %v2595 = vmul.u32.u64.compose %v2594, 3817748708
        %v2596 = vextract.low.u32 %v2595
        %v2597 = vextract.high.u32 %v2595
        %v2598 = vshrl.u32 %v2597, 4
        %v2599 = vmul.u32 %v2598, 18
        %v2600 = vsub.s32 %v2594, %v2599
        %v2601 = vsub.s32 0, %v2600
        %v2602 = vsel %vm2592, %v2601, %v2600
        %vm2603 = vcmp.lt.s32.totalorder %v2417, 0
        %v2604 = vsub.s32 0, %v2417
        %v2605 = vsel %vm2603, %v2604, %v2417
        %v2606 = vmul.u32.u64.compose %v2605, 3817748708
        %v2607 = vextract.low.u32 %v2606
        %v2608 = vextract.high.u32 %v2606
        %v2609 = vshrl.u32 %v2608, 4
        %v2610 = vmul.u32 %v2609, 18
        %v2611 = vsub.s32 %v2605, %v2610
        %v2612 = vsub.s32 0, %v2611
        %v2613 = vsel %vm2603, %v2612, %v2611
        %vm2614 = vcmp.lt.s32.totalorder %v2418, 0
        %v2615 = vsub.s32 0, %v2418
        %v2616 = vsel %vm2614, %v2615, %v2418
        %v2617 = vmul.u32.u64.compose %v2616, 3817748708
        %v2618 = vextract.low.u32 %v2617
        %v2619 = vextract.high.u32 %v2617
        %v2620 = vshrl.u32 %v2619, 4
        %v2621 = vmul.u32 %v2620, 18
        %v2622 = vsub.s32 %v2616, %v2621
        %v2623 = vsub.s32 0, %v2622
        %v2624 = vsel %vm2614, %v2623, %v2622
        %vm2625 = vcmp.lt.s32.totalorder %v2419, 0
        %v2626 = vsub.s32 0, %v2419
        %v2627 = vsel %vm2625, %v2626, %v2419
        %v2628 = vmul.u32.u64.compose %v2627, 3817748708
        %v2629 = vextract.low.u32 %v2628
        %v2630 = vextract.high.u32 %v2628
        %v2631 = vshrl.u32 %v2630, 4
        %v2632 = vmul.u32 %v2631, 18
        %v2633 = vsub.s32 %v2627, %v2632
        %v2634 = vsub.s32 0, %v2633
        %v2635 = vsel %vm2625, %v2634, %v2633
        %vm2636 = vcmp.lt.s32.totalorder %v2420, 0
        %v2637 = vsub.s32 0, %v2420
        %v2638 = vsel %vm2636, %v2637, %v2420
        %v2639 = vmul.u32.u64.compose %v2638, 3817748708
        %v2640 = vextract.low.u32 %v2639
        %v2641 = vextract.high.u32 %v2639
        %v2642 = vshrl.u32 %v2641, 4
        %v2643 = vmul.u32 %v2642, 18
        %v2644 = vsub.s32 %v2638, %v2643
        %v2645 = vsub.s32 0, %v2644
        %v2646 = vsel %vm2636, %v2645, %v2644
        %vm2647 = vcmp.lt.s32.totalorder %v2421, 0
        %v2648 = vsub.s32 0, %v2421
        %v2649 = vsel %vm2647, %v2648, %v2421
        %v2650 = vmul.u32.u64.compose %v2649, 3817748708
        %v2651 = vextract.low.u32 %v2650
        %v2652 = vextract.high.u32 %v2650
        %v2653 = vshrl.u32 %v2652, 4
        %v2654 = vmul.u32 %v2653, 18
        %v2655 = vsub.s32 %v2649, %v2654
        %v2656 = vsub.s32 0, %v2655
        %v2657 = vsel %vm2647, %v2656, %v2655
        %vm2658 = vcmp.lt.s32.totalorder %v2422, 0
        %v2659 = vsub.s32 0, %v2422
        %v2660 = vsel %vm2658, %v2659, %v2422
        %v2661 = vmul.u32.u64.compose %v2660, 3817748708
        %v2662 = vextract.low.u32 %v2661
        %v2663 = vextract.high.u32 %v2661
        %v2664 = vshrl.u32 %v2663, 4
        %v2665 = vmul.u32 %v2664, 18
        %v2666 = vsub.s32 %v2660, %v2665
        %v2667 = vsub.s32 0, %v2666
        %v2668 = vsel %vm2658, %v2667, %v2666
        %vm2669 = vcmp.lt.s32.totalorder %v2423, 0
        %v2670 = vsub.s32 0, %v2423
        %v2671 = vsel %vm2669, %v2670, %v2423
        %v2672 = vmul.u32.u64.compose %v2671, 3817748708
        %v2673 = vextract.low.u32 %v2672
        %v2674 = vextract.high.u32 %v2672
        %v2675 = vshrl.u32 %v2674, 4
        %v2676 = vmul.u32 %v2675, 18
        %v2677 = vsub.s32 %v2671, %v2676
        %v2678 = vsub.s32 0, %v2677
        %v2679 = vsel %vm2669, %v2678, %v2677
        %vm2680 = vcmp.lt.s32.totalorder %v2424, 0
        %v2681 = vsub.s32 0, %v2424
        %v2682 = vsel %vm2680, %v2681, %v2424
        %v2683 = vmul.u32.u64.compose %v2682, 3817748708
        %v2684 = vextract.low.u32 %v2683
        %v2685 = vextract.high.u32 %v2683
        %v2686 = vshrl.u32 %v2685, 4
        %v2687 = vmul.u32 %v2686, 18
        %v2688 = vsub.s32 %v2682, %v2687
        %v2689 = vsub.s32 0, %v2688
        %v2690 = vsel %vm2680, %v2689, %v2688
        %vm2691 = vcmp.lt.s32.totalorder %v2425, 0
        %v2692 = vsub.s32 0, %v2425
        %v2693 = vsel %vm2691, %v2692, %v2425
        %v2694 = vmul.u32.u64.compose %v2693, 3817748708
        %v2695 = vextract.low.u32 %v2694
        %v2696 = vextract.high.u32 %v2694
        %v2697 = vshrl.u32 %v2696, 4
        %v2698 = vmul.u32 %v2697, 18
        %v2699 = vsub.s32 %v2693, %v2698
        %v2700 = vsub.s32 0, %v2699
        %v2701 = vsel %vm2691, %v2700, %v2699
        %vm2702 = vcmp.lt.s32.totalorder %v2426, 0
        %v2703 = vsub.s32 0, %v2426
        %v2704 = vsel %vm2702, %v2703, %v2426
        %v2705 = vmul.u32.u64.compose %v2704, 3817748708
        %v2706 = vextract.low.u32 %v2705
        %v2707 = vextract.high.u32 %v2705
        %v2708 = vshrl.u32 %v2707, 4
        %v2709 = vmul.u32 %v2708, 18
        %v2710 = vsub.s32 %v2704, %v2709
        %v2711 = vsub.s32 0, %v2710
        %v2712 = vsel %vm2702, %v2711, %v2710
        %vm2713 = vcmp.lt.s32.totalorder %v2427, 0
        %v2714 = vsub.s32 0, %v2427
        %v2715 = vsel %vm2713, %v2714, %v2427
        %v2716 = vmul.u32.u64.compose %v2715, 3817748708
        %v2717 = vextract.low.u32 %v2716
        %v2718 = vextract.high.u32 %v2716
        %v2719 = vshrl.u32 %v2718, 4
        %v2720 = vmul.u32 %v2719, 18
        %v2721 = vsub.s32 %v2715, %v2720
        %v2722 = vsub.s32 0, %v2721
        %v2723 = vsel %vm2713, %v2722, %v2721
        %vm2724 = vcmp.lt.s32.totalorder %v2428, 0
        %v2725 = vsub.s32 0, %v2428
        %v2726 = vsel %vm2724, %v2725, %v2428
        %v2727 = vmul.u32.u64.compose %v2726, 3817748708
        %v2728 = vextract.low.u32 %v2727
        %v2729 = vextract.high.u32 %v2727
        %v2730 = vshrl.u32 %v2729, 4
        %v2731 = vmul.u32 %v2730, 18
        %v2732 = vsub.s32 %v2726, %v2731
        %v2733 = vsub.s32 0, %v2732
        %v2734 = vsel %vm2724, %v2733, %v2732
        %vm2735 = vcmp.lt.s32.totalorder %v2429, 0
        %v2736 = vsub.s32 0, %v2429
        %v2737 = vsel %vm2735, %v2736, %v2429
        %v2738 = vmul.u32.u64.compose %v2737, 3817748708
        %v2739 = vextract.low.u32 %v2738
        %v2740 = vextract.high.u32 %v2738
        %v2741 = vshrl.u32 %v2740, 4
        %v2742 = vmul.u32 %v2741, 18
        %v2743 = vsub.s32 %v2737, %v2742
        %v2744 = vsub.s32 0, %v2743
        %v2745 = vsel %vm2735, %v2744, %v2743
        %vm2746 = vcmp.lt.s32.totalorder %v2430, 0
        %v2747 = vsub.s32 0, %v2430
        %v2748 = vsel %vm2746, %v2747, %v2430
        %v2749 = vmul.u32.u64.compose %v2748, 3817748708
        %v2750 = vextract.low.u32 %v2749
        %v2751 = vextract.high.u32 %v2749
        %v2752 = vshrl.u32 %v2751, 4
        %v2753 = vmul.u32 %v2752, 18
        %v2754 = vsub.s32 %v2748, %v2753
        %v2755 = vsub.s32 0, %v2754
        %v2756 = vsel %vm2746, %v2755, %v2754
        %vm2757 = vcmp.lt.s32.totalorder %v2431, 0
        %v2758 = vsub.s32 0, %v2431
        %v2759 = vsel %vm2757, %v2758, %v2431
        %v2760 = vmul.u32.u64.compose %v2759, 3817748708
        %v2761 = vextract.low.u32 %v2760
        %v2762 = vextract.high.u32 %v2760
        %v2763 = vshrl.u32 %v2762, 4
        %v2764 = vmul.u32 %v2763, 18
        %v2765 = vsub.s32 %v2759, %v2764
        %v2766 = vsub.s32 0, %v2765
        %v2767 = vsel %vm2757, %v2766, %v2765
        %vm2768 = vcmp.lt.s32.totalorder %v2432, 0
        %v2769 = vsub.s32 0, %v2432
        %v2770 = vsel %vm2768, %v2769, %v2432
        %v2771 = vmul.u32.u64.compose %v2770, 3817748708
        %v2772 = vextract.low.u32 %v2771
        %v2773 = vextract.high.u32 %v2771
        %v2774 = vshrl.u32 %v2773, 4
        %v2775 = vmul.u32 %v2774, 18
        %v2776 = vsub.s32 %v2770, %v2775
        %v2777 = vsub.s32 0, %v2776
        %v2778 = vsel %vm2768, %v2777, %v2776
        %vm2779 = vcmp.lt.s32.totalorder %v2433, 0
        %v2780 = vsub.s32 0, %v2433
        %v2781 = vsel %vm2779, %v2780, %v2433
        %v2782 = vmul.u32.u64.compose %v2781, 3817748708
        %v2783 = vextract.low.u32 %v2782
        %v2784 = vextract.high.u32 %v2782
        %v2785 = vshrl.u32 %v2784, 4
        %v2786 = vmul.u32 %v2785, 18
        %v2787 = vsub.s32 %v2781, %v2786
        %v2788 = vsub.s32 0, %v2787
        %v2789 = vsel %vm2779, %v2788, %v2787
        %vm2790 = vcmp.lt.s32.totalorder %v2434, 0
        %v2791 = vsub.s32 0, %v2434
        %v2792 = vsel %vm2790, %v2791, %v2434
        %v2793 = vmul.u32.u64.compose %v2792, 3817748708
        %v2794 = vextract.low.u32 %v2793
        %v2795 = vextract.high.u32 %v2793
        %v2796 = vshrl.u32 %v2795, 4
        %v2797 = vmul.u32 %v2796, 18
        %v2798 = vsub.s32 %v2792, %v2797
        %v2799 = vsub.s32 0, %v2798
        %v2800 = vsel %vm2790, %v2799, %v2798
        %vm2801 = vcmp.lt.s32.totalorder %v2435, 0
        %v2802 = vsub.s32 0, %v2435
        %v2803 = vsel %vm2801, %v2802, %v2435
        %v2804 = vmul.u32.u64.compose %v2803, 3817748708
        %v2805 = vextract.low.u32 %v2804
        %v2806 = vextract.high.u32 %v2804
        %v2807 = vshrl.u32 %v2806, 4
        %v2808 = vmul.u32 %v2807, 18
        %v2809 = vsub.s32 %v2803, %v2808
        %v2810 = vsub.s32 0, %v2809
        %v2811 = vsel %vm2801, %v2810, %v2809
        %vm2812 = vcmp.lt.s32.totalorder %v2436, 0
        %v2813 = vsub.s32 0, %v2436
        %v2814 = vsel %vm2812, %v2813, %v2436
        %v2815 = vmul.u32.u64.compose %v2814, 3817748708
        %v2816 = vextract.low.u32 %v2815
        %v2817 = vextract.high.u32 %v2815
        %v2818 = vshrl.u32 %v2817, 4
        %v2819 = vmul.u32 %v2818, 18
        %v2820 = vsub.s32 %v2814, %v2819
        %v2821 = vsub.s32 0, %v2820
        %v2822 = vsel %vm2812, %v2821, %v2820
        %vm2823 = vcmp.lt.s32.totalorder %v2437, 0
        %v2824 = vsub.s32 0, %v2437
        %v2825 = vsel %vm2823, %v2824, %v2437
        %v2826 = vmul.u32.u64.compose %v2825, 3817748708
        %v2827 = vextract.low.u32 %v2826
        %v2828 = vextract.high.u32 %v2826
        %v2829 = vshrl.u32 %v2828, 4
        %v2830 = vmul.u32 %v2829, 18
        %v2831 = vsub.s32 %v2825, %v2830
        %v2832 = vsub.s32 0, %v2831
        %v2833 = vsel %vm2823, %v2832, %v2831
        %vm2834 = vcmp.ne.s32.totalorder %v2448, 0
        %vm2835 = vcmp.ne.s32.totalorder %v2459, 0
        %vm2836 = vcmp.ne.s32.totalorder %v2470, 0
        %vm2837 = vcmp.ne.s32.totalorder %v2481, 0
        %vm2838 = vcmp.ne.s32.totalorder %v2492, 0
        %vm2839 = vcmp.ne.s32.totalorder %v2503, 0
        %vm2840 = vcmp.ne.s32.totalorder %v2514, 0
        %vm2841 = vcmp.ne.s32.totalorder %v2525, 0
        %vm2842 = vcmp.ne.s32.totalorder %v2536, 0
        %vm2843 = vcmp.ne.s32.totalorder %v2547, 0
        %vm2844 = vcmp.ne.s32.totalorder %v2558, 0
        %vm2845 = vcmp.ne.s32.totalorder %v2569, 0
        %vm2846 = vcmp.ne.s32.totalorder %v2580, 0
        %vm2847 = vcmp.ne.s32.totalorder %v2591, 0
        %vm2848 = vcmp.ne.s32.totalorder %v2602, 0
        %vm2849 = vcmp.ne.s32.totalorder %v2613, 0
        %vm2850 = vcmp.ne.s32.totalorder %v2624, 0
        %vm2851 = vcmp.ne.s32.totalorder %v2635, 0
        %vm2852 = vcmp.ne.s32.totalorder %v2646, 0
        %vm2853 = vcmp.ne.s32.totalorder %v2657, 0
        %vm2854 = vcmp.ne.s32.totalorder %v2668, 0
        %vm2855 = vcmp.ne.s32.totalorder %v2679, 0
        %vm2856 = vcmp.ne.s32.totalorder %v2690, 0
        %vm2857 = vcmp.ne.s32.totalorder %v2701, 0
        %vm2858 = vcmp.ne.s32.totalorder %v2712, 0
        %vm2859 = vcmp.ne.s32.totalorder %v2723, 0
        %vm2860 = vcmp.ne.s32.totalorder %v2734, 0
        %vm2861 = vcmp.ne.s32.totalorder %v2745, 0
        %vm2862 = vcmp.ne.s32.totalorder %v2756, 0
        %vm2863 = vcmp.ne.s32.totalorder %v2767, 0
        %vm2864 = vcmp.ne.s32.totalorder %v2778, 0
        %vm2865 = vcmp.ne.s32.totalorder %v2789, 0
        %vm2866 = vcmp.ne.s32.totalorder %v2800, 0
        %vm2867 = vcmp.ne.s32.totalorder %v2811, 0
        %vm2868 = vcmp.ne.s32.totalorder %v2822, 0
        %vm2869 = vcmp.ne.s32.totalorder %v2833, 0
        %vm2870 = vcmp.lt.s32.totalorder %v2448, 0
        %vm2871 = vcmp.lt.s32.totalorder %v2459, 0
        %vm2872 = vcmp.lt.s32.totalorder %v2470, 0
        %vm2873 = vcmp.lt.s32.totalorder %v2481, 0
        %vm2874 = vcmp.lt.s32.totalorder %v2492, 0
        %vm2875 = vcmp.lt.s32.totalorder %v2503, 0
        %vm2876 = vcmp.lt.s32.totalorder %v2514, 0
        %vm2877 = vcmp.lt.s32.totalorder %v2525, 0
        %vm2878 = vcmp.lt.s32.totalorder %v2536, 0
        %vm2879 = vcmp.lt.s32.totalorder %v2547, 0
        %vm2880 = vcmp.lt.s32.totalorder %v2558, 0
        %vm2881 = vcmp.lt.s32.totalorder %v2569, 0
        %vm2882 = vcmp.lt.s32.totalorder %v2580, 0
        %vm2883 = vcmp.lt.s32.totalorder %v2591, 0
        %vm2884 = vcmp.lt.s32.totalorder %v2602, 0
        %vm2885 = vcmp.lt.s32.totalorder %v2613, 0
        %vm2886 = vcmp.lt.s32.totalorder %v2624, 0
        %vm2887 = vcmp.lt.s32.totalorder %v2635, 0
        %vm2888 = vcmp.lt.s32.totalorder %v2646, 0
        %vm2889 = vcmp.lt.s32.totalorder %v2657, 0
        %vm2890 = vcmp.lt.s32.totalorder %v2668, 0
        %vm2891 = vcmp.lt.s32.totalorder %v2679, 0
        %vm2892 = vcmp.lt.s32.totalorder %v2690, 0
        %vm2893 = vcmp.lt.s32.totalorder %v2701, 0
        %vm2894 = vcmp.lt.s32.totalorder %v2712, 0
        %vm2895 = vcmp.lt.s32.totalorder %v2723, 0
        %vm2896 = vcmp.lt.s32.totalorder %v2734, 0
        %vm2897 = vcmp.lt.s32.totalorder %v2745, 0
        %vm2898 = vcmp.lt.s32.totalorder %v2756, 0
        %vm2899 = vcmp.lt.s32.totalorder %v2767, 0
        %vm2900 = vcmp.lt.s32.totalorder %v2778, 0
        %vm2901 = vcmp.lt.s32.totalorder %v2789, 0
        %vm2902 = vcmp.lt.s32.totalorder %v2800, 0
        %vm2903 = vcmp.lt.s32.totalorder %v2811, 0
        %vm2904 = vcmp.lt.s32.totalorder %v2822, 0
        %vm2905 = vcmp.lt.s32.totalorder %v2833, 0
        %vm2906 = vmand %vm2870, %vm2834
        %vm2907 = vmand %vm2871, %vm2835
        %vm2908 = vmand %vm2872, %vm2836
        %vm2909 = vmand %vm2873, %vm2837
        %vm2910 = vmand %vm2874, %vm2838
        %vm2911 = vmand %vm2875, %vm2839
        %vm2912 = vmand %vm2876, %vm2840
        %vm2913 = vmand %vm2877, %vm2841
        %vm2914 = vmand %vm2878, %vm2842
        %vm2915 = vmand %vm2879, %vm2843
        %vm2916 = vmand %vm2880, %vm2844
        %vm2917 = vmand %vm2881, %vm2845
        %vm2918 = vmand %vm2882, %vm2846
        %vm2919 = vmand %vm2883, %vm2847
        %vm2920 = vmand %vm2884, %vm2848
        %vm2921 = vmand %vm2885, %vm2849
        %vm2922 = vmand %vm2886, %vm2850
        %vm2923 = vmand %vm2887, %vm2851
        %vm2924 = vmand %vm2888, %vm2852
        %vm2925 = vmand %vm2889, %vm2853
        %vm2926 = vmand %vm2890, %vm2854
        %vm2927 = vmand %vm2891, %vm2855
        %vm2928 = vmand %vm2892, %vm2856
        %vm2929 = vmand %vm2893, %vm2857
        %vm2930 = vmand %vm2894, %vm2858
        %vm2931 = vmand %vm2895, %vm2859
        %vm2932 = vmand %vm2896, %vm2860
        %vm2933 = vmand %vm2897, %vm2861
        %vm2934 = vmand %vm2898, %vm2862
        %vm2935 = vmand %vm2899, %vm2863
        %vm2936 = vmand %vm2900, %vm2864
        %vm2937 = vmand %vm2901, %vm2865
        %vm2938 = vmand %vm2902, %vm2866
        %vm2939 = vmand %vm2903, %vm2867
        %vm2940 = vmand %vm2904, %vm2868
        %vm2941 = vmand %vm2905, %vm2869
        %v2942 = vadd.s32 %v2448, 18
        %v2943 = vadd.s32 %v2459, 18
        %v2944 = vadd.s32 %v2470, 18
        %v2945 = vadd.s32 %v2481, 18
        %v2946 = vadd.s32 %v2492, 18
        %v2947 = vadd.s32 %v2503, 18
        %v2948 = vadd.s32 %v2514, 18
        %v2949 = vadd.s32 %v2525, 18
        %v2950 = vadd.s32 %v2536, 18
        %v2951 = vadd.s32 %v2547, 18
        %v2952 = vadd.s32 %v2558, 18
        %v2953 = vadd.s32 %v2569, 18
        %v2954 = vadd.s32 %v2580, 18
        %v2955 = vadd.s32 %v2591, 18
        %v2956 = vadd.s32 %v2602, 18
        %v2957 = vadd.s32 %v2613, 18
        %v2958 = vadd.s32 %v2624, 18
        %v2959 = vadd.s32 %v2635, 18
        %v2960 = vadd.s32 %v2646, 18
        %v2961 = vadd.s32 %v2657, 18
        %v2962 = vadd.s32 %v2668, 18
        %v2963 = vadd.s32 %v2679, 18
        %v2964 = vadd.s32 %v2690, 18
        %v2965 = vadd.s32 %v2701, 18
        %v2966 = vadd.s32 %v2712, 18
        %v2967 = vadd.s32 %v2723, 18
        %v2968 = vadd.s32 %v2734, 18
        %v2969 = vadd.s32 %v2745, 18
        %v2970 = vadd.s32 %v2756, 18
        %v2971 = vadd.s32 %v2767, 18
        %v2972 = vadd.s32 %v2778, 18
        %v2973 = vadd.s32 %v2789, 18
        %v2974 = vadd.s32 %v2800, 18
        %v2975 = vadd.s32 %v2811, 18
        %v2976 = vadd.s32 %v2822, 18
        %v2977 = vadd.s32 %v2833, 18
        %v2978 = vsel %vm2906, %v2942, %v2448
        %v2979 = vsel %vm2907, %v2943, %v2459
        %v2980 = vsel %vm2908, %v2944, %v2470
        %v2981 = vsel %vm2909, %v2945, %v2481
        %v2982 = vsel %vm2910, %v2946, %v2492
        %v2983 = vsel %vm2911, %v2947, %v2503
        %v2984 = vsel %vm2912, %v2948, %v2514
        %v2985 = vsel %vm2913, %v2949, %v2525
        %v2986 = vsel %vm2914, %v2950, %v2536
        %v2987 = vsel %vm2915, %v2951, %v2547
        %v2988 = vsel %vm2916, %v2952, %v2558
        %v2989 = vsel %vm2917, %v2953, %v2569
        %v2990 = vsel %vm2918, %v2954, %v2580
        %v2991 = vsel %vm2919, %v2955, %v2591
        %v2992 = vsel %vm2920, %v2956, %v2602
        %v2993 = vsel %vm2921, %v2957, %v2613
        %v2994 = vsel %vm2922, %v2958, %v2624
        %v2995 = vsel %vm2923, %v2959, %v2635
        %v2996 = vsel %vm2924, %v2960, %v2646
        %v2997 = vsel %vm2925, %v2961, %v2657
        %v2998 = vsel %vm2926, %v2962, %v2668
        %v2999 = vsel %vm2927, %v2963, %v2679
        %v3000 = vsel %vm2928, %v2964, %v2690
        %v3001 = vsel %vm2929, %v2965, %v2701
        %v3002 = vsel %vm2930, %v2966, %v2712
        %v3003 = vsel %vm2931, %v2967, %v2723
        %v3004 = vsel %vm2932, %v2968, %v2734
        %v3005 = vsel %vm2933, %v2969, %v2745
        %v3006 = vsel %vm2934, %v2970, %v2756
        %v3007 = vsel %vm2935, %v2971, %v2767
        %v3008 = vsel %vm2936, %v2972, %v2778
        %v3009 = vsel %vm2937, %v2973, %v2789
        %v3010 = vsel %vm2938, %v2974, %v2800
        %v3011 = vsel %vm2939, %v2975, %v2811
        %v3012 = vsel %vm2940, %v2976, %v2822
        %v3013 = vsel %vm2941, %v2977, %v2833
        %vm3014 = vcmp.lt.s32.totalorder %v2978, 16
        %vm3015 = vcmp.lt.s32.totalorder %v2979, 16
        %vm3016 = vcmp.lt.s32.totalorder %v2980, 16
        %vm3017 = vcmp.lt.s32.totalorder %v2981, 16
        %vm3018 = vcmp.lt.s32.totalorder %v2982, 16
        %vm3019 = vcmp.lt.s32.totalorder %v2983, 16
        %vm3020 = vcmp.lt.s32.totalorder %v2984, 16
        %vm3021 = vcmp.lt.s32.totalorder %v2985, 16
        %vm3022 = vcmp.lt.s32.totalorder %v2986, 16
        %vm3023 = vcmp.lt.s32.totalorder %v2987, 16
        %vm3024 = vcmp.lt.s32.totalorder %v2988, 16
        %vm3025 = vcmp.lt.s32.totalorder %v2989, 16
        %vm3026 = vcmp.lt.s32.totalorder %v2990, 16
        %vm3027 = vcmp.lt.s32.totalorder %v2991, 16
        %vm3028 = vcmp.lt.s32.totalorder %v2992, 16
        %vm3029 = vcmp.lt.s32.totalorder %v2993, 16
        %vm3030 = vcmp.lt.s32.totalorder %v2994, 16
        %vm3031 = vcmp.lt.s32.totalorder %v2995, 16
        %vm3032 = vcmp.lt.s32.totalorder %v2996, 16
        %vm3033 = vcmp.lt.s32.totalorder %v2997, 16
        %vm3034 = vcmp.lt.s32.totalorder %v2998, 16
        %vm3035 = vcmp.lt.s32.totalorder %v2999, 16
        %vm3036 = vcmp.lt.s32.totalorder %v3000, 16
        %vm3037 = vcmp.lt.s32.totalorder %v3001, 16
        %vm3038 = vcmp.lt.s32.totalorder %v3002, 16
        %vm3039 = vcmp.lt.s32.totalorder %v3003, 16
        %vm3040 = vcmp.lt.s32.totalorder %v3004, 16
        %vm3041 = vcmp.lt.s32.totalorder %v3005, 16
        %vm3042 = vcmp.lt.s32.totalorder %v3006, 16
        %vm3043 = vcmp.lt.s32.totalorder %v3007, 16
        %vm3044 = vcmp.lt.s32.totalorder %v3008, 16
        %vm3045 = vcmp.lt.s32.totalorder %v3009, 16
        %vm3046 = vcmp.lt.s32.totalorder %v3010, 16
        %vm3047 = vcmp.lt.s32.totalorder %v3011, 16
        %vm3048 = vcmp.lt.s32.totalorder %v3012, 16
        %vm3049 = vcmp.lt.s32.totalorder %v3013, 16
        %v3050 = vsel %vm3014, 1, 0
        %v3051 = vsel %vm3015, 1, 0
        %v3052 = vsel %vm3016, 1, 0
        %v3053 = vsel %vm3017, 1, 0
        %v3054 = vsel %vm3018, 1, 0
        %v3055 = vsel %vm3019, 1, 0
        %v3056 = vsel %vm3020, 1, 0
        %v3057 = vsel %vm3021, 1, 0
        %v3058 = vsel %vm3022, 1, 0
        %v3059 = vsel %vm3023, 1, 0
        %v3060 = vsel %vm3024, 1, 0
        %v3061 = vsel %vm3025, 1, 0
        %v3062 = vsel %vm3026, 1, 0
        %v3063 = vsel %vm3027, 1, 0
        %v3064 = vsel %vm3028, 1, 0
        %v3065 = vsel %vm3029, 1, 0
        %v3066 = vsel %vm3030, 1, 0
        %v3067 = vsel %vm3031, 1, 0
        %v3068 = vsel %vm3032, 1, 0
        %v3069 = vsel %vm3033, 1, 0
        %v3070 = vsel %vm3034, 1, 0
        %v3071 = vsel %vm3035, 1, 0
        %v3072 = vsel %vm3036, 1, 0
        %v3073 = vsel %vm3037, 1, 0
        %v3074 = vsel %vm3038, 1, 0
        %v3075 = vsel %vm3039, 1, 0
        %v3076 = vsel %vm3040, 1, 0
        %v3077 = vsel %vm3041, 1, 0
        %v3078 = vsel %vm3042, 1, 0
        %v3079 = vsel %vm3043, 1, 0
        %v3080 = vsel %vm3044, 1, 0
        %v3081 = vsel %vm3045, 1, 0
        %v3082 = vsel %vm3046, 1, 0
        %v3083 = vsel %vm3047, 1, 0
        %v3084 = vsel %vm3048, 1, 0
        %v3085 = vsel %vm3049, 1, 0
        %vm3086 = vcmp.eq.s32.totalorder %v3050, 1
        %vm3087 = vcmp.eq.s32.totalorder %v3051, 1
        %vm3088 = vcmp.eq.s32.totalorder %v3052, 1
        %vm3089 = vcmp.eq.s32.totalorder %v3053, 1
        %vm3090 = vcmp.eq.s32.totalorder %v3054, 1
        %vm3091 = vcmp.eq.s32.totalorder %v3055, 1
        %vm3092 = vcmp.eq.s32.totalorder %v3056, 1
        %vm3093 = vcmp.eq.s32.totalorder %v3057, 1
        %vm3094 = vcmp.eq.s32.totalorder %v3058, 1
        %vm3095 = vcmp.eq.s32.totalorder %v3059, 1
        %vm3096 = vcmp.eq.s32.totalorder %v3060, 1
        %vm3097 = vcmp.eq.s32.totalorder %v3061, 1
        %vm3098 = vcmp.eq.s32.totalorder %v3062, 1
        %vm3099 = vcmp.eq.s32.totalorder %v3063, 1
        %vm3100 = vcmp.eq.s32.totalorder %v3064, 1
        %vm3101 = vcmp.eq.s32.totalorder %v3065, 1
        %vm3102 = vcmp.eq.s32.totalorder %v3066, 1
        %vm3103 = vcmp.eq.s32.totalorder %v3067, 1
        %vm3104 = vcmp.eq.s32.totalorder %v3068, 1
        %vm3105 = vcmp.eq.s32.totalorder %v3069, 1
        %vm3106 = vcmp.eq.s32.totalorder %v3070, 1
        %vm3107 = vcmp.eq.s32.totalorder %v3071, 1
        %vm3108 = vcmp.eq.s32.totalorder %v3072, 1
        %vm3109 = vcmp.eq.s32.totalorder %v3073, 1
        %vm3110 = vcmp.eq.s32.totalorder %v3074, 1
        %vm3111 = vcmp.eq.s32.totalorder %v3075, 1
        %vm3112 = vcmp.eq.s32.totalorder %v3076, 1
        %vm3113 = vcmp.eq.s32.totalorder %v3077, 1
        %vm3114 = vcmp.eq.s32.totalorder %v3078, 1
        %vm3115 = vcmp.eq.s32.totalorder %v3079, 1
        %vm3116 = vcmp.eq.s32.totalorder %v3080, 1
        %vm3117 = vcmp.eq.s32.totalorder %v3081, 1
        %vm3118 = vcmp.eq.s32.totalorder %v3082, 1
        %vm3119 = vcmp.eq.s32.totalorder %v3083, 1
        %vm3120 = vcmp.eq.s32.totalorder %v3084, 1
        %vm3121 = vcmp.eq.s32.totalorder %v3085, 1
        %v3122 = vsel %vm3086, %v2365, 0.0
        %v3123 = vsel %vm3087, %v2366, 0.0
        %v3124 = vsel %vm3088, %v2367, 0.0
        %v3125 = vsel %vm3089, %v2368, 0.0
        %v3126 = vsel %vm3090, %v2369, 0.0
        %v3127 = vsel %vm3091, %v2370, 0.0
        %v3128 = vsel %vm3092, %v2371, 0.0
        %v3129 = vsel %vm3093, %v2372, 0.0
        %v3130 = vsel %vm3094, %v2373, 0.0
        %v3131 = vsel %vm3095, %v2374, 0.0
        %v3132 = vsel %vm3096, %v2375, 0.0
        %v3133 = vsel %vm3097, %v2376, 0.0
        %v3134 = vsel %vm3098, %v2377, 0.0
        %v3135 = vsel %vm3099, %v2378, 0.0
        %v3136 = vsel %vm3100, %v2379, 0.0
        %v3137 = vsel %vm3101, %v2380, 0.0
        %v3138 = vsel %vm3102, %v2381, 0.0
        %v3139 = vsel %vm3103, %v2382, 0.0
        %v3140 = vsel %vm3104, %v2383, 0.0
        %v3141 = vsel %vm3105, %v2384, 0.0
        %v3142 = vsel %vm3106, %v2385, 0.0
        %v3143 = vsel %vm3107, %v2386, 0.0
        %v3144 = vsel %vm3108, %v2387, 0.0
        %v3145 = vsel %vm3109, %v2388, 0.0
        %v3146 = vsel %vm3110, %v2389, 0.0
        %v3147 = vsel %vm3111, %v2390, 0.0
        %v3148 = vsel %vm3112, %v2391, 0.0
        %v3149 = vsel %vm3113, %v2392, 0.0
        %v3150 = vsel %vm3114, %v2393, 0.0
        %v3151 = vsel %vm3115, %v2394, 0.0
        %v3152 = vsel %vm3116, %v2395, 0.0
        %v3153 = vsel %vm3117, %v2396, 0.0
        %v3154 = vsel %vm3118, %v2397, 0.0
        %v3155 = vsel %vm3119, %v2398, 0.0
        %v3156 = vsel %vm3120, %v2399, 0.0
        %v3157 = vsel %vm3121, %v2400, 0.0
        %v3158 = vpack.c.bf16 %v3123, %v3122
        %v3159 = vpack.c.bf16 %v3125, %v3124
        %v3160 = vpack.c.bf16 %v3127, %v3126
        %v3161 = vpack.c.bf16 %v3129, %v3128
        %v3162 = vpack.c.bf16 %v3131, %v3130
        %v3163 = vpack.c.bf16 %v3133, %v3132
        %v3164 = vpack.c.bf16 %v3135, %v3134
        %v3165 = vpack.c.bf16 %v3137, %v3136
        %v3166 = vpack.c.bf16 %v3139, %v3138
        %v3167 = vpack.c.bf16 %v3141, %v3140
        %v3168 = vpack.c.bf16 %v3143, %v3142
        %v3169 = vpack.c.bf16 %v3145, %v3144
        %v3170 = vpack.c.bf16 %v3147, %v3146
        %v3171 = vpack.c.bf16 %v3149, %v3148
        %v3172 = vpack.c.bf16 %v3151, %v3150
        %v3173 = vpack.c.bf16 %v3153, %v3152
        %v3174 = vpack.c.bf16 %v3155, %v3154
        %v3175 = vpack.c.bf16 %v3157, %v3156
        %v3194 = vunpack.c.l.b16 %v3158
        %v3195 = vunpack.c.h.b16 %v3158
        %v3196 = vunpack.c.l.b16 %v3159
        %v3197 = vunpack.c.h.b16 %v3159
        %v3198 = vunpack.c.l.b16 %v3160
        %v3199 = vunpack.c.h.b16 %v3160
        %v3200 = vunpack.c.l.b16 %v3161
        %v3201 = vunpack.c.h.b16 %v3161
        %v3202 = vunpack.c.l.b16 %v3162
        %v3203 = vunpack.c.h.b16 %v3162
        %v3204 = vunpack.c.l.b16 %v3163
        %v3205 = vunpack.c.h.b16 %v3163
        %v3206 = vunpack.c.l.b16 %v3164
        %v3207 = vunpack.c.h.b16 %v3164
        %v3208 = vunpack.c.l.b16 %v3165
        %v3209 = vunpack.c.h.b16 %v3165
        %v3210 = vunpack.c.l.b16 %v3166
        %v3211 = vunpack.c.h.b16 %v3166
        %v3212 = vunpack.c.l.b16 %v3167
        %v3213 = vunpack.c.h.b16 %v3167
        %v3214 = vunpack.c.l.b16 %v3168
        %v3215 = vunpack.c.h.b16 %v3168
        %v3216 = vunpack.c.l.b16 %v3169
        %v3217 = vunpack.c.h.b16 %v3169
        %v3218 = vunpack.c.l.b16 %v3170
        %v3219 = vunpack.c.h.b16 %v3170
        %v3220 = vunpack.c.l.b16 %v3171
        %v3221 = vunpack.c.h.b16 %v3171
        %v3222 = vunpack.c.l.b16 %v3172
        %v3223 = vunpack.c.h.b16 %v3172
        %v3224 = vunpack.c.l.b16 %v3173
        %v3225 = vunpack.c.h.b16 %v3173
        %v3226 = vunpack.c.l.b16 %v3174
        %v3227 = vunpack.c.h.b16 %v3174
        %v3228 = vunpack.c.l.b16 %v3175
        %v3229 = vunpack.c.h.b16 %v3175
        %v3230 = vpack.c.b16 %v3194, %v3194
        %v3231 = vpack.c.b16 %v3195, %v3195
        %v3232 = vpack.c.b16 %v3196, %v3196
        %v3233 = vpack.c.b16 %v3197, %v3197
        %v3234 = vpack.c.b16 %v3198, %v3198
        %v3235 = vpack.c.b16 %v3199, %v3199
        %v3236 = vpack.c.b16 %v3200, %v3200
        %v3237 = vpack.c.b16 %v3201, %v3201
        %v3238 = vpack.c.b16 %v3202, %v3202
        %v3239 = vpack.c.b16 %v3203, %v3203
        %v3240 = vpack.c.b16 %v3204, %v3204
        %v3241 = vpack.c.b16 %v3205, %v3205
        %v3242 = vpack.c.b16 %v3206, %v3206
        %v3243 = vpack.c.b16 %v3207, %v3207
        %v3244 = vpack.c.b16 %v3208, %v3208
        %v3245 = vpack.c.b16 %v3209, %v3209
        %v3246 = vpack.c.b16 %v3210, %v3210
        %v3247 = vpack.c.b16 %v3211, %v3211
        %v3248 = vpack.c.b16 %v3212, %v3212
        %v3249 = vpack.c.b16 %v3213, %v3213
        %v3250 = vpack.c.b16 %v3214, %v3214
        %v3251 = vpack.c.b16 %v3215, %v3215
        %v3252 = vpack.c.b16 %v3216, %v3216
        %v3253 = vpack.c.b16 %v3217, %v3217
        %v3254 = vpack.c.b16 %v3218, %v3218
        %v3255 = vpack.c.b16 %v3219, %v3219
        %v3256 = vpack.c.b16 %v3220, %v3220
        %v3257 = vpack.c.b16 %v3221, %v3221
        %v3258 = vpack.c.b16 %v3222, %v3222
        %v3259 = vpack.c.b16 %v3223, %v3223
        %v3260 = vpack.c.b16 %v3224, %v3224
        %v3261 = vpack.c.b16 %v3225, %v3225
        %v3262 = vpack.c.b16 %v3226, %v3226
        %v3263 = vpack.c.b16 %v3227, %v3227
        %v3264 = vpack.c.b16 %v3228, %v3228
        %v3265 = vpack.c.b16 %v3229, %v3229
        %vm3266 = vsmask.f32 1280
        %vm3267 = vsmask.f32 5392
        %vm3268 = vmor %vm3266, %vm3267
        %v3270 = vshrl.u32 %v3230, 16
        %v3272 = vrot.slane %v3270, 6
        %v3273 = vshll.u32 %v3230, 16
        %v3275 = vrot.slane %v3273, 7
        %v3276 = vor.u32 %v3272, %v3275
        %v3277 = vrot.slane %v3276, 4
        %v3279 = vshrl.u32 %v3231, 16
        %v3281 = vrot.slane %v3279, 6
        %v3282 = vshll.u32 %v3231, 16
        %v3284 = vrot.slane %v3282, 7
        %v3285 = vor.u32 %v3281, %v3284
        %v3286 = vsel %vm3268, %v3277, %v3285
        %v3287 = vrot.slane %v3285, 4
        %v3289 = vshrl.u32 %v3232, 16
        %v3291 = vrot.slane %v3289, 6
        %v3292 = vshll.u32 %v3232, 16
        %v3294 = vrot.slane %v3292, 7
        %v3295 = vor.u32 %v3291, %v3294
        %v3296 = vsel %vm3268, %v3287, %v3295
        %v3297 = vrot.slane %v3295, 4
        %v3299 = vshrl.u32 %v3233, 16
        %v3301 = vrot.slane %v3299, 6
        %v3302 = vshll.u32 %v3233, 16
        %v3304 = vrot.slane %v3302, 7
        %v3305 = vor.u32 %v3301, %v3304
        %v3306 = vsel %vm3268, %v3297, %v3305
        %v3307 = vrot.slane %v3305, 4
        %v3309 = vshrl.u32 %v3234, 16
        %v3311 = vrot.slane %v3309, 6
        %v3312 = vshll.u32 %v3234, 16
        %v3314 = vrot.slane %v3312, 7
        %v3315 = vor.u32 %v3311, %v3314
        %v3316 = vsel %vm3268, %v3307, %v3315
        %v3317 = vrot.slane %v3315, 4
        %v3319 = vshrl.u32 %v3235, 16
        %v3321 = vrot.slane %v3319, 6
        %v3322 = vshll.u32 %v3235, 16
        %v3324 = vrot.slane %v3322, 7
        %v3325 = vor.u32 %v3321, %v3324
        %v3326 = vsel %vm3268, %v3317, %v3325
        %v3327 = vrot.slane %v3325, 4
        %v3329 = vshrl.u32 %v3236, 16
        %v3331 = vrot.slane %v3329, 6
        %v3332 = vshll.u32 %v3236, 16
        %v3334 = vrot.slane %v3332, 7
        %v3335 = vor.u32 %v3331, %v3334
        %v3336 = vsel %vm3268, %v3327, %v3335
        %v3337 = vrot.slane %v3335, 4
        %v3339 = vshrl.u32 %v3237, 16
        %v3341 = vrot.slane %v3339, 6
        %v3342 = vshll.u32 %v3237, 16
        %v3344 = vrot.slane %v3342, 7
        %v3345 = vor.u32 %v3341, %v3344
        %v3346 = vsel %vm3268, %v3337, %v3345
        %v3347 = vrot.slane %v3345, 4
        %v3349 = vshrl.u32 %v3238, 16
        %v3351 = vrot.slane %v3349, 6
        %v3352 = vshll.u32 %v3238, 16
        %v3354 = vrot.slane %v3352, 7
        %v3355 = vor.u32 %v3351, %v3354
        %v3356 = vsel %vm3268, %v3347, %v3355
        %v3357 = vrot.slane %v3355, 4
        %v3359 = vshrl.u32 %v3239, 16
        %v3361 = vrot.slane %v3359, 6
        %v3362 = vshll.u32 %v3239, 16
        %v3364 = vrot.slane %v3362, 7
        %v3365 = vor.u32 %v3361, %v3364
        %v3366 = vsel %vm3268, %v3357, %v3365
        %v3367 = vrot.slane %v3365, 4
        %v3369 = vshrl.u32 %v3240, 16
        %v3371 = vrot.slane %v3369, 6
        %v3372 = vshll.u32 %v3240, 16
        %v3374 = vrot.slane %v3372, 7
        %v3375 = vor.u32 %v3371, %v3374
        %v3376 = vsel %vm3268, %v3367, %v3375
        %v3377 = vrot.slane %v3375, 4
        %v3379 = vshrl.u32 %v3241, 16
        %v3381 = vrot.slane %v3379, 6
        %v3382 = vshll.u32 %v3241, 16
        %v3384 = vrot.slane %v3382, 7
        %v3385 = vor.u32 %v3381, %v3384
        %v3386 = vsel %vm3268, %v3377, %v3385
        %v3387 = vrot.slane %v3385, 4
        %v3389 = vshrl.u32 %v3242, 16
        %v3391 = vrot.slane %v3389, 6
        %v3392 = vshll.u32 %v3242, 16
        %v3394 = vrot.slane %v3392, 7
        %v3395 = vor.u32 %v3391, %v3394
        %v3396 = vsel %vm3268, %v3387, %v3395
        %v3397 = vrot.slane %v3395, 4
        %v3399 = vshrl.u32 %v3243, 16
        %v3401 = vrot.slane %v3399, 6
        %v3402 = vshll.u32 %v3243, 16
        %v3404 = vrot.slane %v3402, 7
        %v3405 = vor.u32 %v3401, %v3404
        %v3406 = vsel %vm3268, %v3397, %v3405
        %v3407 = vrot.slane %v3405, 4
        %v3409 = vshrl.u32 %v3244, 16
        %v3411 = vrot.slane %v3409, 6
        %v3412 = vshll.u32 %v3244, 16
        %v3414 = vrot.slane %v3412, 7
        %v3415 = vor.u32 %v3411, %v3414
        %v3416 = vsel %vm3268, %v3407, %v3415
        %v3417 = vrot.slane %v3415, 4
        %v3419 = vshrl.u32 %v3245, 16
        %v3421 = vrot.slane %v3419, 6
        %v3422 = vshll.u32 %v3245, 16
        %v3424 = vrot.slane %v3422, 7
        %v3425 = vor.u32 %v3421, %v3424
        %v3426 = vsel %vm3268, %v3417, %v3425
        %v3427 = vrot.slane %v3425, 4
        %v3429 = vshrl.u32 %v3246, 16
        %v3431 = vrot.slane %v3429, 6
        %v3432 = vshll.u32 %v3246, 16
        %v3434 = vrot.slane %v3432, 7
        %v3435 = vor.u32 %v3431, %v3434
        %v3436 = vsel %vm3268, %v3427, %v3435
        %v3437 = vrot.slane %v3435, 4
        %v3439 = vshrl.u32 %v3247, 16
        %v3441 = vrot.slane %v3439, 6
        %v3442 = vshll.u32 %v3247, 16
        %v3444 = vrot.slane %v3442, 7
        %v3445 = vor.u32 %v3441, %v3444
        %v3446 = vsel %vm3268, %v3437, %v3445
        %v3447 = vrot.slane %v3445, 4
        %v3449 = vshrl.u32 %v3248, 16
        %v3451 = vrot.slane %v3449, 6
        %v3452 = vshll.u32 %v3248, 16
        %v3454 = vrot.slane %v3452, 7
        %v3455 = vor.u32 %v3451, %v3454
        %v3456 = vsel %vm3268, %v3447, %v3455
        %v3457 = vrot.slane %v3455, 4
        %v3459 = vshrl.u32 %v3249, 16
        %v3461 = vrot.slane %v3459, 6
        %v3462 = vshll.u32 %v3249, 16
        %v3464 = vrot.slane %v3462, 7
        %v3465 = vor.u32 %v3461, %v3464
        %v3466 = vsel %vm3268, %v3457, %v3465
        %v3467 = vrot.slane %v3465, 4
        %v3469 = vshrl.u32 %v3250, 16
        %v3471 = vrot.slane %v3469, 6
        %v3472 = vshll.u32 %v3250, 16
        %v3474 = vrot.slane %v3472, 7
        %v3475 = vor.u32 %v3471, %v3474
        %v3476 = vsel %vm3268, %v3467, %v3475
        %v3477 = vrot.slane %v3475, 4
        %v3479 = vshrl.u32 %v3251, 16
        %v3481 = vrot.slane %v3479, 6
        %v3482 = vshll.u32 %v3251, 16
        %v3484 = vrot.slane %v3482, 7
        %v3485 = vor.u32 %v3481, %v3484
        %v3486 = vsel %vm3268, %v3477, %v3485
        %v3487 = vrot.slane %v3485, 4
        %v3489 = vshrl.u32 %v3252, 16
        %v3491 = vrot.slane %v3489, 6
        %v3492 = vshll.u32 %v3252, 16
        %v3494 = vrot.slane %v3492, 7
        %v3495 = vor.u32 %v3491, %v3494
        %v3496 = vsel %vm3268, %v3487, %v3495
        %v3497 = vrot.slane %v3495, 4
        %v3499 = vshrl.u32 %v3253, 16
        %v3501 = vrot.slane %v3499, 6
        %v3502 = vshll.u32 %v3253, 16
        %v3504 = vrot.slane %v3502, 7
        %v3505 = vor.u32 %v3501, %v3504
        %v3506 = vsel %vm3268, %v3497, %v3505
        %v3507 = vrot.slane %v3505, 4
        %v3509 = vshrl.u32 %v3254, 16
        %v3511 = vrot.slane %v3509, 6
        %v3512 = vshll.u32 %v3254, 16
        %v3514 = vrot.slane %v3512, 7
        %v3515 = vor.u32 %v3511, %v3514
        %v3516 = vsel %vm3268, %v3507, %v3515
        %v3517 = vrot.slane %v3515, 4
        %v3519 = vshrl.u32 %v3255, 16
        %v3521 = vrot.slane %v3519, 6
        %v3522 = vshll.u32 %v3255, 16
        %v3524 = vrot.slane %v3522, 7
        %v3525 = vor.u32 %v3521, %v3524
        %v3526 = vsel %vm3268, %v3517, %v3525
        %v3527 = vrot.slane %v3525, 4
        %v3529 = vshrl.u32 %v3256, 16
        %v3531 = vrot.slane %v3529, 6
        %v3532 = vshll.u32 %v3256, 16
        %v3534 = vrot.slane %v3532, 7
        %v3535 = vor.u32 %v3531, %v3534
        %v3536 = vsel %vm3268, %v3527, %v3535
        %v3537 = vrot.slane %v3535, 4
        %v3539 = vshrl.u32 %v3257, 16
        %v3541 = vrot.slane %v3539, 6
        %v3542 = vshll.u32 %v3257, 16
        %v3544 = vrot.slane %v3542, 7
        %v3545 = vor.u32 %v3541, %v3544
        %v3546 = vsel %vm3268, %v3537, %v3545
        %v3547 = vrot.slane %v3545, 4
        %v3549 = vshrl.u32 %v3258, 16
        %v3551 = vrot.slane %v3549, 6
        %v3552 = vshll.u32 %v3258, 16
        %v3554 = vrot.slane %v3552, 7
        %v3555 = vor.u32 %v3551, %v3554
        %v3556 = vsel %vm3268, %v3547, %v3555
        %v3557 = vrot.slane %v3555, 4
        %v3559 = vshrl.u32 %v3259, 16
        %v3561 = vrot.slane %v3559, 6
        %v3562 = vshll.u32 %v3259, 16
        %v3564 = vrot.slane %v3562, 7
        %v3565 = vor.u32 %v3561, %v3564
        %v3566 = vsel %vm3268, %v3557, %v3565
        %v3567 = vrot.slane %v3565, 4
        %v3569 = vshrl.u32 %v3260, 16
        %v3571 = vrot.slane %v3569, 6
        %v3572 = vshll.u32 %v3260, 16
        %v3574 = vrot.slane %v3572, 7
        %v3575 = vor.u32 %v3571, %v3574
        %v3576 = vsel %vm3268, %v3567, %v3575
        %v3577 = vrot.slane %v3575, 4
        %v3579 = vshrl.u32 %v3261, 16
        %v3581 = vrot.slane %v3579, 6
        %v3582 = vshll.u32 %v3261, 16
        %v3584 = vrot.slane %v3582, 7
        %v3585 = vor.u32 %v3581, %v3584
        %v3586 = vsel %vm3268, %v3577, %v3585
        %v3587 = vrot.slane %v3585, 4
        %v3589 = vshrl.u32 %v3262, 16
        %v3591 = vrot.slane %v3589, 6
        %v3592 = vshll.u32 %v3262, 16
        %v3594 = vrot.slane %v3592, 7
        %v3595 = vor.u32 %v3591, %v3594
        %v3596 = vsel %vm3268, %v3587, %v3595
        %v3597 = vrot.slane %v3595, 4
        %v3599 = vshrl.u32 %v3263, 16
        %v3601 = vrot.slane %v3599, 6
        %v3602 = vshll.u32 %v3263, 16
        %v3604 = vrot.slane %v3602, 7
        %v3605 = vor.u32 %v3601, %v3604
        %v3606 = vsel %vm3268, %v3597, %v3605
        %v3607 = vrot.slane %v3605, 4
        %v3609 = vshrl.u32 %v3264, 16
        %v3611 = vrot.slane %v3609, 6
        %v3612 = vshll.u32 %v3264, 16
        %v3614 = vrot.slane %v3612, 7
        %v3615 = vor.u32 %v3611, %v3614
        %v3616 = vsel %vm3268, %v3607, %v3615
        %v3617 = vrot.slane %v3615, 4
        %v3619 = vshrl.u32 %v3265, 16
        %v3621 = vrot.slane %v3619, 6
        %v3622 = vshll.u32 %v3265, 16
        %v3624 = vrot.slane %v3622, 7
        %v3625 = vor.u32 %v3621, %v3624
        %v3626 = vsel %vm3268, %v3617, %v3625
        %v3627 = vrot.slane %v3625, 4
        %vm3665 = vcmask 27649
        %vm3666 = vsmask.f32 7942
        %vm3667 = vmand %vm3665, %vm3666
        %v3668 = vld [vmem:[#allocation2 + $0x8] sm:$0xe]
        %v3669 = vsel %vm3667, %v3276, %v3668
        %3670 = vst [vmem:[#allocation2 + $0x8] sm:$0xe] %v3669
        %3671 = vst.msk [vmem:[#allocation2 + $0xc] sm:$0xf] %vm387, %v3286
        %3672 = vst.msk [vmem:[#allocation2 + $0x10] sm:$0xf] %vm387, %v3296
        %3673 = vst.msk [vmem:[#allocation2 + $0x14] sm:$0xf] %vm387, %v3306
        %3674 = vst.msk [vmem:[#allocation2 + $0x18] sm:$0xf] %vm387, %v3316
        %3675 = vst.msk [vmem:[#allocation2 + $0x1c] sm:$0xf] %vm387, %v3326
        %3676 = vst.msk [vmem:[#allocation2 + $0x20] sm:$0xf] %vm387, %v3336
        %3677 = vst.msk [vmem:[#allocation2 + $0x24] sm:$0xf] %vm387, %v3346
        %3678 = vst.msk [vmem:[#allocation2 + $0x28] sm:$0xf] %vm387, %v3356
        %3679 = vst.msk [vmem:[#allocation2 + $0x2c] sm:$0xf] %vm387, %v3366
        %3680 = vst.msk [vmem:[#allocation2 + $0x30] sm:$0xf] %vm387, %v3376
        %3681 = vst.msk [vmem:[#allocation2 + $0x34] sm:$0xf] %vm387, %v3386
        %3682 = vst.msk [vmem:[#allocation2 + $0x38] sm:$0xf] %vm387, %v3396
        %3683 = vst.msk [vmem:[#allocation2 + $0x3c] sm:$0xf] %vm387, %v3406
        %3684 = vst.msk [vmem:[#allocation2 + $0x40] sm:$0xf] %vm387, %v3416
        %3685 = vst.msk [vmem:[#allocation2 + $0x44] sm:$0xf] %vm387, %v3426
        %3686 = vst.msk [vmem:[#allocation2 + $0x48] sm:$0xf] %vm387, %v3436
        %3687 = vst.msk [vmem:[#allocation2 + $0x4c] sm:$0xf] %vm387, %v3446
        %3688 = vst.msk [vmem:[#allocation2 + $0x50] sm:$0xf] %vm387, %v3456
        %3689 = vst.msk [vmem:[#allocation2 + $0x54] sm:$0xf] %vm387, %v3466
        %3690 = vst.msk [vmem:[#allocation2 + $0x58] sm:$0xf] %vm387, %v3476
        %3691 = vst.msk [vmem:[#allocation2 + $0x5c] sm:$0xf] %vm387, %v3486
        %3692 = vst.msk [vmem:[#allocation2 + $0x60] sm:$0xf] %vm387, %v3496
        %3693 = vst.msk [vmem:[#allocation2 + $0x64] sm:$0xf] %vm387, %v3506
        %3694 = vst.msk [vmem:[#allocation2 + $0x68] sm:$0xf] %vm387, %v3516
        %3695 = vst.msk [vmem:[#allocation2 + $0x6c] sm:$0xf] %vm387, %v3526
        %3696 = vst.msk [vmem:[#allocation2 + $0x70] sm:$0xf] %vm387, %v3536
        %3697 = vst.msk [vmem:[#allocation2 + $0x74] sm:$0xf] %vm387, %v3546
        %3698 = vst.msk [vmem:[#allocation2 + $0x78] sm:$0xf] %vm387, %v3556
        %3699 = vst.msk [vmem:[#allocation2 + $0x7c] sm:$0xf] %vm387, %v3566
        %3700 = vst.msk [vmem:[#allocation2 + $0x80] sm:$0xf] %vm387, %v3576
        %3701 = vst.msk [vmem:[#allocation2 + $0x84] sm:$0xf] %vm387, %v3586
        %3702 = vst.msk [vmem:[#allocation2 + $0x88] sm:$0xf] %vm387, %v3596
        %3703 = vst.msk [vmem:[#allocation2 + $0x8c] sm:$0xf] %vm387, %v3606
        %3704 = vst.msk [vmem:[#allocation2 + $0x90] sm:$0xf] %vm387, %v3616
        %3705 = vst.msk [vmem:[#allocation2 + $0x94] sm:$0xf] %vm387, %v3626
        %vm3706 = vcmask 25600
        %vm3707 = vmand %vm3706, %vm3266
        %v3708 = vld [vmem:[#allocation2 + $0x98] sm:$0x3]
        %v3709 = vsel %vm3707, %v3627, %v3708
        %3710 = vst [vmem:[#allocation2 + $0x98] sm:$0x3] %v3709
      $region48: #{basic_block_forward.1} parent=43 // pred_fallthru
        _
      %v3711 = vld [vmem:[#allocation2] sm:$0xf]
      %v3712 = vld [vmem:[#allocation2 + $0x4] sm:$0xf]
      %v3713 = vld [vmem:[#allocation2 + $0x8] sm:$0xf]
      %v3714 = vld [vmem:[#allocation2 + $0xc] sm:$0xf]
      %v3715 = vld [vmem:[#allocation2 + $0x10] sm:$0xf]
      %v3716 = vld [vmem:[#allocation2 + $0x14] sm:$0xf]
      %v3717 = vld [vmem:[#allocation2 + $0x18] sm:$0xf]
      %v3718 = vld [vmem:[#allocation2 + $0x1c] sm:$0xf]
      %v3719 = vld [vmem:[#allocation2 + $0x20] sm:$0xf]
      %v3720 = vld [vmem:[#allocation2 + $0x24] sm:$0xf]
      %v3721 = vld [vmem:[#allocation2 + $0x28] sm:$0xf]
      %v3722 = vld [vmem:[#allocation2 + $0x2c] sm:$0xf]
      %v3723 = vld [vmem:[#allocation2 + $0x30] sm:$0xf]
      %v3724 = vld [vmem:[#allocation2 + $0x34] sm:$0xf]
      %v3725 = vld [vmem:[#allocation2 + $0x38] sm:$0xf]
      %v3726 = vld [vmem:[#allocation2 + $0x3c] sm:$0xf]
      %v3727 = vld [vmem:[#allocation2 + $0x40] sm:$0xf]
      %v3728 = vld [vmem:[#allocation2 + $0x44] sm:$0xf]
      %v3729 = vld [vmem:[#allocation2 + $0x48] sm:$0xf]
      %v3730 = vld [vmem:[#allocation2 + $0x4c] sm:$0xf]
      %v3731 = vld [vmem:[#allocation2 + $0x50] sm:$0xf]
      %v3732 = vld [vmem:[#allocation2 + $0x54] sm:$0xf]
      %v3733 = vld [vmem:[#allocation2 + $0x58] sm:$0xf]
      %v3734 = vld [vmem:[#allocation2 + $0x5c] sm:$0xf]
      %v3735 = vld [vmem:[#allocation2 + $0x60] sm:$0xf]
      %v3736 = vld [vmem:[#allocation2 + $0x64] sm:$0xf]
      %v3737 = vld [vmem:[#allocation2 + $0x68] sm:$0xf]
      %v3738 = vld [vmem:[#allocation2 + $0x6c] sm:$0xf]
      %v3739 = vld [vmem:[#allocation2 + $0x70] sm:$0xf]
      %v3740 = vld [vmem:[#allocation2 + $0x74] sm:$0xf]
      %v3741 = vld [vmem:[#allocation2 + $0x78] sm:$0xf]
      %v3742 = vld [vmem:[#allocation2 + $0x7c] sm:$0xf]
      %v3743 = vld [vmem:[#allocation2 + $0x80] sm:$0xf]
      %v3744 = vld [vmem:[#allocation2 + $0x84] sm:$0xf]
      %v3745 = vld [vmem:[#allocation2 + $0x88] sm:$0xf]
      %v3746 = vld [vmem:[#allocation2 + $0x8c] sm:$0xf]
      %v3747 = vld [vmem:[#allocation2 + $0x90] sm:$0x1]
      %v3748 = vld [vmem:[#allocation2] sm:$0xe]
      %v3785 = vunpack.c.l.b16 %v3711
      %v3786 = vunpack.c.l.b16 %v3712
      %v3787 = vunpack.c.l.b16 %v3713
      %v3788 = vunpack.c.l.b16 %v3714
      %v3789 = vunpack.c.l.b16 %v3715
      %v3790 = vunpack.c.l.b16 %v3716
      %v3791 = vunpack.c.l.b16 %v3717
      %v3792 = vunpack.c.l.b16 %v3718
      %v3793 = vunpack.c.l.b16 %v3719
      %v3794 = vunpack.c.l.b16 %v3720
      %v3795 = vunpack.c.l.b16 %v3721
      %v3796 = vunpack.c.l.b16 %v3722
      %v3797 = vunpack.c.l.b16 %v3723
      %v3798 = vunpack.c.l.b16 %v3724
      %v3799 = vunpack.c.l.b16 %v3725
      %v3800 = vunpack.c.l.b16 %v3726
      %v3801 = vunpack.c.l.b16 %v3727
      %v3802 = vunpack.c.l.b16 %v3728
      %v3803 = vunpack.c.l.b16 %v3729
      %v3804 = vunpack.c.l.b16 %v3730
      %v3805 = vunpack.c.l.b16 %v3731
      %v3806 = vunpack.c.l.b16 %v3732
      %v3807 = vunpack.c.l.b16 %v3733
      %v3808 = vunpack.c.l.b16 %v3734
      %v3809 = vunpack.c.l.b16 %v3735
      %v3810 = vunpack.c.l.b16 %v3736
      %v3811 = vunpack.c.l.b16 %v3737
      %v3812 = vunpack.c.l.b16 %v3738
      %v3813 = vunpack.c.l.b16 %v3739
      %v3814 = vunpack.c.l.b16 %v3740
      %v3815 = vunpack.c.l.b16 %v3741
      %v3816 = vunpack.c.l.b16 %v3742
      %v3817 = vunpack.c.l.b16 %v3743
      %v3818 = vunpack.c.l.b16 %v3744
      %v3819 = vunpack.c.l.b16 %v3745
      %v3820 = vunpack.c.l.b16 %v3746
      %v3821 = vpack.c.b16 %v3786, %v3785
      %v3822 = vpack.c.b16 %v3788, %v3787
      %v3823 = vpack.c.b16 %v3790, %v3789
      %v3824 = vpack.c.b16 %v3792, %v3791
      %v3825 = vpack.c.b16 %v3794, %v3793
      %v3826 = vpack.c.b16 %v3796, %v3795
      %v3827 = vpack.c.b16 %v3798, %v3797
      %v3828 = vpack.c.b16 %v3800, %v3799
      %v3829 = vpack.c.b16 %v3802, %v3801
      %v3830 = vpack.c.b16 %v3804, %v3803
      %v3831 = vpack.c.b16 %v3806, %v3805
      %v3832 = vpack.c.b16 %v3808, %v3807
      %v3833 = vpack.c.b16 %v3810, %v3809
      %v3834 = vpack.c.b16 %v3812, %v3811
      %v3835 = vpack.c.b16 %v3814, %v3813
      %v3836 = vpack.c.b16 %v3816, %v3815
      %v3837 = vpack.c.b16 %v3818, %v3817
      %v3838 = vpack.c.b16 %v3820, %v3819
      %v3840 = vunpack.c.l.b16 %v3747
      %v3841 = vpack.c.b16 %v3840, %v3840
      %vm3842 = vsmask.f32 7424
      %v3844 = vshrl.u32 %v3821, 16
      %v3846 = vshll.u32 %v3821, 16
      %v3848 = vrot.slane %v3846, 1
      %v3849 = vor.u32 %v3844, %v3848
      %v3851 = vshll.u32 %v3822, 16
      %v3853 = vrot.slane %v3851, 1
      %v3854 = vsel %vm3842, %v3849, %v3853
      %v3855 = vshrl.u32 %v3822, 16
      %v3857 = vor.u32 %v3855, %v3853
      %v3859 = vshll.u32 %v3823, 16
      %v3861 = vrot.slane %v3859, 1
      %v3862 = vsel %vm3842, %v3857, %v3861
      %v3863 = vshrl.u32 %v3823, 16
      %v3865 = vor.u32 %v3863, %v3861
      %v3867 = vshll.u32 %v3824, 16
      %v3869 = vrot.slane %v3867, 1
      %v3870 = vsel %vm3842, %v3865, %v3869
      %v3871 = vshrl.u32 %v3824, 16
      %v3873 = vor.u32 %v3871, %v3869
      %v3875 = vshll.u32 %v3825, 16
      %v3877 = vrot.slane %v3875, 1
      %v3878 = vsel %vm3842, %v3873, %v3877
      %v3879 = vshrl.u32 %v3825, 16
      %v3881 = vor.u32 %v3879, %v3877
      %v3883 = vshll.u32 %v3826, 16
      %v3885 = vrot.slane %v3883, 1
      %v3886 = vsel %vm3842, %v3881, %v3885
      %v3887 = vshrl.u32 %v3826, 16
      %v3889 = vor.u32 %v3887, %v3885
      %v3891 = vshll.u32 %v3827, 16
      %v3893 = vrot.slane %v3891, 1
      %v3894 = vsel %vm3842, %v3889, %v3893
      %v3895 = vshrl.u32 %v3827, 16
      %v3897 = vor.u32 %v3895, %v3893
      %v3899 = vshll.u32 %v3828, 16
      %v3901 = vrot.slane %v3899, 1
      %v3902 = vsel %vm3842, %v3897, %v3901
      %v3903 = vshrl.u32 %v3828, 16
      %v3905 = vor.u32 %v3903, %v3901
      %v3907 = vshll.u32 %v3829, 16
      %v3909 = vrot.slane %v3907, 1
      %v3910 = vsel %vm3842, %v3905, %v3909
      %v3911 = vshrl.u32 %v3829, 16
      %v3913 = vor.u32 %v3911, %v3909
      %v3915 = vshll.u32 %v3830, 16
      %v3917 = vrot.slane %v3915, 1
      %v3918 = vsel %vm3842, %v3913, %v3917
      %v3919 = vshrl.u32 %v3830, 16
      %v3921 = vor.u32 %v3919, %v3917
      %v3923 = vshll.u32 %v3831, 16
      %v3925 = vrot.slane %v3923, 1
      %v3926 = vsel %vm3842, %v3921, %v3925
      %v3927 = vshrl.u32 %v3831, 16
      %v3929 = vor.u32 %v3927, %v3925
      %v3931 = vshll.u32 %v3832, 16
      %v3933 = vrot.slane %v3931, 1
      %v3934 = vsel %vm3842, %v3929, %v3933
      %v3935 = vshrl.u32 %v3832, 16
      %v3937 = vor.u32 %v3935, %v3933
      %v3939 = vshll.u32 %v3833, 16
      %v3941 = vrot.slane %v3939, 1
      %v3942 = vsel %vm3842, %v3937, %v3941
      %v3943 = vshrl.u32 %v3833, 16
      %v3945 = vor.u32 %v3943, %v3941
      %v3947 = vshll.u32 %v3834, 16
      %v3949 = vrot.slane %v3947, 1
      %v3950 = vsel %vm3842, %v3945, %v3949
      %v3951 = vshrl.u32 %v3834, 16
      %v3953 = vor.u32 %v3951, %v3949
      %v3955 = vshll.u32 %v3835, 16
      %v3957 = vrot.slane %v3955, 1
      %v3958 = vsel %vm3842, %v3953, %v3957
      %v3959 = vshrl.u32 %v3835, 16
      %v3961 = vor.u32 %v3959, %v3957
      %v3963 = vshll.u32 %v3836, 16
      %v3965 = vrot.slane %v3963, 1
      %v3966 = vsel %vm3842, %v3961, %v3965
      %v3967 = vshrl.u32 %v3836, 16
      %v3969 = vor.u32 %v3967, %v3965
      %v3971 = vshll.u32 %v3837, 16
      %v3973 = vrot.slane %v3971, 1
      %v3974 = vsel %vm3842, %v3969, %v3973
      %v3975 = vshrl.u32 %v3837, 16
      %v3977 = vor.u32 %v3975, %v3973
      %v3979 = vshll.u32 %v3838, 16
      %v3981 = vrot.slane %v3979, 1
      %v3982 = vsel %vm3842, %v3977, %v3981
      %v3983 = vshrl.u32 %v3838, 16
      %v3985 = vor.u32 %v3983, %v3981
      %v3987 = vshll.u32 %v3841, 16
      %v3989 = vrot.slane %v3987, 1
      %v3990 = vsel %vm3842, %v3985, %v3989
      %3991 = vrot.lane.b32.xlu0 %v3854, 4
      %v3992 = vpop.permute.xlu0 %3991
      %3993 = vrot.lane.b32.xlu0 %v3862, 4
      %v3994 = vpop.permute.xlu0 %3993
      %3995 = vrot.lane.b32.xlu0 %v3870, 4
      %v3996 = vpop.permute.xlu0 %3995
      %3997 = vrot.lane.b32.xlu0 %v3878, 4
      %v3998 = vpop.permute.xlu0 %3997
      %3999 = vrot.lane.b32.xlu0 %v3886, 4
      %v4000 = vpop.permute.xlu0 %3999
      %4001 = vrot.lane.b32.xlu0 %v3894, 4
      %v4002 = vpop.permute.xlu0 %4001
      %4003 = vrot.lane.b32.xlu0 %v3902, 4
      %v4004 = vpop.permute.xlu0 %4003
      %4005 = vrot.lane.b32.xlu0 %v3910, 4
      %v4006 = vpop.permute.xlu0 %4005
      %4007 = vrot.lane.b32.xlu0 %v3918, 4
      %v4008 = vpop.permute.xlu0 %4007
      %4009 = vrot.lane.b32.xlu0 %v3926, 4
      %v4010 = vpop.permute.xlu0 %4009
      %4011 = vrot.lane.b32.xlu0 %v3934, 4
      %v4012 = vpop.permute.xlu0 %4011
      %4013 = vrot.lane.b32.xlu0 %v3942, 4
      %v4014 = vpop.permute.xlu0 %4013
      %4015 = vrot.lane.b32.xlu0 %v3950, 4
      %v4016 = vpop.permute.xlu0 %4015
      %4017 = vrot.lane.b32.xlu0 %v3958, 4
      %v4018 = vpop.permute.xlu0 %4017
      %4019 = vrot.lane.b32.xlu0 %v3966, 4
      %v4020 = vpop.permute.xlu0 %4019
      %4021 = vrot.lane.b32.xlu0 %v3974, 4
      %v4022 = vpop.permute.xlu0 %4021
      %4023 = vrot.lane.b32.xlu0 %v3982, 4
      %v4024 = vpop.permute.xlu0 %4023
      %4025 = vrot.lane.b32.xlu0 %v3990, 4
      %v4026 = vpop.permute.xlu0 %4025
      %v4028 = vunpack.c.l.b16 %v3748
      %v4029 = vpack.c.b16 %v3786, %v4028
      %vm4030 = vcmask 1046528
      %v4031 = vrot.slane %v4029, 1
      %v4032 = vrot.slane %v3822, 1
      %v4033 = vsel %vm4030, %v4031, %v4032
      %v4034 = vrot.slane %v3823, 1
      %v4035 = vsel %vm4030, %v4032, %v4034
      %v4036 = vrot.slane %v3824, 1
      %v4037 = vsel %vm4030, %v4034, %v4036
      %v4038 = vrot.slane %v3825, 1
      %v4039 = vsel %vm4030, %v4036, %v4038
      %v4040 = vrot.slane %v3826, 1
      %v4041 = vsel %vm4030, %v4038, %v4040
      %v4042 = vrot.slane %v3827, 1
      %v4043 = vsel %vm4030, %v4040, %v4042
      %v4044 = vrot.slane %v3828, 1
      %v4045 = vsel %vm4030, %v4042, %v4044
      %v4046 = vrot.slane %v3829, 1
      %v4047 = vsel %vm4030, %v4044, %v4046
      %v4048 = vrot.slane %v3830, 1
      %v4049 = vsel %vm4030, %v4046, %v4048
      %v4050 = vrot.slane %v3831, 1
      %v4051 = vsel %vm4030, %v4048, %v4050
      %v4052 = vrot.slane %v3832, 1
      %v4053 = vsel %vm4030, %v4050, %v4052
      %v4054 = vrot.slane %v3833, 1
      %v4055 = vsel %vm4030, %v4052, %v4054
      %v4056 = vrot.slane %v3834, 1
      %v4057 = vsel %vm4030, %v4054, %v4056
      %v4058 = vrot.slane %v3835, 1
      %v4059 = vsel %vm4030, %v4056, %v4058
      %v4060 = vrot.slane %v3836, 1
      %v4061 = vsel %vm4030, %v4058, %v4060
      %v4062 = vrot.slane %v3837, 1
      %v4063 = vsel %vm4030, %v4060, %v4062
      %v4064 = vrot.slane %v3838, 1
      %v4065 = vsel %vm4030, %v4062, %v4064
      %v4066 = vrot.slane %v3841, 1
      %v4067 = vsel %vm4030, %v4064, %v4066
      %4068 = vrot.lane.b32.xlu0 %v4033, 8
      %v4069 = vpop.permute.xlu0 %4068
      %4070 = vrot.lane.b32.xlu0 %v4035, 8
      %v4071 = vpop.permute.xlu0 %4070
      %4072 = vrot.lane.b32.xlu0 %v4037, 8
      %v4073 = vpop.permute.xlu0 %4072
      %4074 = vrot.lane.b32.xlu0 %v4039, 8
      %v4075 = vpop.permute.xlu0 %4074
      %4076 = vrot.lane.b32.xlu0 %v4041, 8
      %v4077 = vpop.permute.xlu0 %4076
      %4078 = vrot.lane.b32.xlu0 %v4043, 8
      %v4079 = vpop.permute.xlu0 %4078
      %4080 = vrot.lane.b32.xlu0 %v4045, 8
      %v4081 = vpop.permute.xlu0 %4080
      %4082 = vrot.lane.b32.xlu0 %v4047, 8
      %v4083 = vpop.permute.xlu0 %4082
      %4084 = vrot.lane.b32.xlu0 %v4049, 8
      %v4085 = vpop.permute.xlu0 %4084
      %4086 = vrot.lane.b32.xlu0 %v4051, 8
      %v4087 = vpop.permute.xlu0 %4086
      %4088 = vrot.lane.b32.xlu0 %v4053, 8
      %v4089 = vpop.permute.xlu0 %4088
      %4090 = vrot.lane.b32.xlu0 %v4055, 8
      %v4091 = vpop.permute.xlu0 %4090
      %4092 = vrot.lane.b32.xlu0 %v4057, 8
      %v4093 = vpop.permute.xlu0 %4092
      %4094 = vrot.lane.b32.xlu0 %v4059, 8
      %v4095 = vpop.permute.xlu0 %4094
      %4096 = vrot.lane.b32.xlu0 %v4061, 8
      %v4097 = vpop.permute.xlu0 %4096
      %4098 = vrot.lane.b32.xlu0 %v4063, 8
      %v4099 = vpop.permute.xlu0 %4098
      %4100 = vrot.lane.b32.xlu0 %v4065, 8
      %v4101 = vpop.permute.xlu0 %4100
      %4102 = vrot.lane.b32.xlu0 %v4067, 8
      %v4103 = vpop.permute.xlu0 %4102
      %vm4104 = vcmask 31744
      %v4106 = vsel %vm4104, %v3821, %v3992
      %v4108 = vsel %vm4104, %v3822, %v3994
      %v4110 = vsel %vm4104, %v3823, %v3996
      %v4112 = vsel %vm4104, %v3824, %v3998
      %v4114 = vsel %vm4104, %v3825, %v4000
      %v4116 = vsel %vm4104, %v3826, %v4002
      %v4118 = vsel %vm4104, %v3827, %v4004
      %v4120 = vsel %vm4104, %v3828, %v4006
      %v4122 = vsel %vm4104, %v3829, %v4008
      %v4124 = vsel %vm4104, %v3830, %v4010
      %v4126 = vsel %vm4104, %v3831, %v4012
      %v4128 = vsel %vm4104, %v3832, %v4014
      %v4130 = vsel %vm4104, %v3833, %v4016
      %v4132 = vsel %vm4104, %v3834, %v4018
      %v4134 = vsel %vm4104, %v3835, %v4020
      %v4136 = vsel %vm4104, %v3836, %v4022
      %v4138 = vsel %vm4104, %v3837, %v4024
      %v4140 = vsel %vm4104, %v3838, %v4026
      %vm4141 = vcmask 64512
      %v4143 = vsel %vm4141, %v4106, %v4069
      %v4145 = vsel %vm4141, %v4108, %v4071
      %v4147 = vsel %vm4141, %v4110, %v4073
      %v4149 = vsel %vm4141, %v4112, %v4075
      %v4151 = vsel %vm4141, %v4114, %v4077
      %v4153 = vsel %vm4141, %v4116, %v4079
      %v4155 = vsel %vm4141, %v4118, %v4081
      %v4157 = vsel %vm4141, %v4120, %v4083
      %v4159 = vsel %vm4141, %v4122, %v4085
      %v4161 = vsel %vm4141, %v4124, %v4087
      %v4163 = vsel %vm4141, %v4126, %v4089
      %v4165 = vsel %vm4141, %v4128, %v4091
      %v4167 = vsel %vm4141, %v4130, %v4093
      %v4169 = vsel %vm4141, %v4132, %v4095
      %v4171 = vsel %vm4141, %v4134, %v4097
      %v4173 = vsel %vm4141, %v4136, %v4099
      %v4175 = vsel %vm4141, %v4138, %v4101
      %v4177 = vsel %vm4141, %v4140, %v4103
      %v4178 = vld [vmem:[%s354] sm:$0xf]
      %v4179 = vld [vmem:[%s354 + $0x4] sm:$0x3]
      %v4180 = vld [vmem:[#allocation2 + $0x8] sm:$0xe]
      %v4181 = vld [vmem:[#allocation2 + $0x90] sm:$0xf]
      %v4182 = vld [vmem:[#allocation2 + $0x94] sm:$0xf]
      %v4183 = vld [vmem:[#allocation2 + $0x98] sm:$0x1]
      %v4184 = vld [vmem:[#allocation2 + $0x98] sm:$0x3]
      %v4185 = vld [vmem:[#allocation2 + $0x8] sm:$0xc]
      %v4190 = vunpack.c.l.b16 %v4180
      %v4191 = vunpack.c.l.b16 %v4181
      %v4192 = vunpack.c.l.b16 %v4182
      %v4193 = vunpack.c.l.b16 %v4183
      %v4194 = vpack.c.b16 %v3788, %v4190
      %v4195 = vpack.c.b16 %v4192, %v4191
      %v4196 = vpack.c.b16 %v4193, %v4193
      %v4198 = vunpack.c.l.b16 %v4184
      %v4199 = vpack.c.b16 %v4198, %v4198
      %v4201 = vshrl.u32 %v4194, 16
      %v4203 = vshll.u32 %v4194, 16
      %v4205 = vrot.slane %v4203, 1
      %v4206 = vor.u32 %v4201, %v4205
      %v4207 = vsel %vm3842, %v4206, %v3861
      %v4209 = vshll.u32 %v4195, 16
      %v4211 = vrot.slane %v4209, 1
      %v4212 = vsel %vm3842, %v3985, %v4211
      %v4213 = vshrl.u32 %v4195, 16
      %v4215 = vor.u32 %v4213, %v4211
      %v4217 = vshll.u32 %v4199, 16
      %v4219 = vrot.slane %v4217, 1
      %v4220 = vsel %vm3842, %v4215, %v4219
      %v4221 = vshrl.u32 %v4199, 16
      %v4223 = vor.u32 %v4221, %v4219
      %4224 = vrot.lane.b32.xlu0 %v4207, 4
      %v4225 = vpop.permute.xlu0 %4224
      %4226 = vrot.lane.b32.xlu0 %v4212, 4
      %v4227 = vpop.permute.xlu0 %4226
      %4228 = vrot.lane.b32.xlu0 %v4220, 4
      %v4229 = vpop.permute.xlu0 %4228
      %4230 = vrot.lane.b32.xlu0 %v4223, 4
      %v4231 = vpop.permute.xlu0 %4230
      %v4233 = vunpack.c.l.b16 %v4185
      %v4234 = vpack.c.b16 %v3788, %v4233
      %v4235 = vrot.slane %v4234, 1
      %v4236 = vsel %vm4030, %v4235, %v4034
      %v4237 = vrot.slane %v4195, 1
      %v4238 = vsel %vm4030, %v4064, %v4237
      %v4239 = vrot.slane %v4199, 1
      %v4240 = vsel %vm4030, %v4237, %v4239
      %4241 = vrot.lane.b32.xlu0 %v4236, 8
      %v4242 = vpop.permute.xlu0 %4241
      %4243 = vrot.lane.b32.xlu0 %v4238, 8
      %v4244 = vpop.permute.xlu0 %4243
      %4245 = vrot.lane.b32.xlu0 %v4240, 8
      %v4246 = vpop.permute.xlu0 %4245
      %4247 = vrot.lane.b32.xlu0 %v4239, 8
      %v4248 = vpop.permute.xlu0 %4247
      %v4250 = vsel %vm4104, %v4194, %v4225
      %v4252 = vsel %vm4104, %v3838, %v4227
      %v4254 = vsel %vm4104, %v4195, %v4229
      %v4257 = vsel %vm4104, %v4196, %v4231
      %v4259 = vsel %vm4141, %v4250, %v4242
      %v4261 = vsel %vm4141, %v4252, %v4244
      %v4263 = vsel %vm4141, %v4254, %v4246
      %v4265 = vsel %vm4141, %v4257, %v4248
      %s4266 = scalar_lea.vmem %s354, 8
      %v4267 = vld [vmem:[%s4266] sm:$0xf]
      %v4268 = vld [vmem:[%s4266 + $0x4] sm:$0x3]
      %v4288 = vrot.slane %v4259, 1
      %v4289 = vrot.slane %v4147, 1
      %v4290 = vsel %vm4030, %v4288, %v4289
      %v4291 = vrot.slane %v4149, 1
      %v4292 = vsel %vm4030, %v4289, %v4291
      %v4293 = vrot.slane %v4151, 1
      %v4294 = vsel %vm4030, %v4291, %v4293
      %v4295 = vrot.slane %v4153, 1
      %v4296 = vsel %vm4030, %v4293, %v4295
      %v4297 = vrot.slane %v4155, 1
      %v4298 = vsel %vm4030, %v4295, %v4297
      %v4299 = vrot.slane %v4157, 1
      %v4300 = vsel %vm4030, %v4297, %v4299
      %v4301 = vrot.slane %v4159, 1
      %v4302 = vsel %vm4030, %v4299, %v4301
      %v4303 = vrot.slane %v4161, 1
      %v4304 = vsel %vm4030, %v4301, %v4303
      %v4305 = vrot.slane %v4163, 1
      %v4306 = vsel %vm4030, %v4303, %v4305
      %v4307 = vrot.slane %v4165, 1
      %v4308 = vsel %vm4030, %v4305, %v4307
      %v4309 = vrot.slane %v4167, 1
      %v4310 = vsel %vm4030, %v4307, %v4309
      %v4311 = vrot.slane %v4169, 1
      %v4312 = vsel %vm4030, %v4309, %v4311
      %v4313 = vrot.slane %v4171, 1
      %v4314 = vsel %vm4030, %v4311, %v4313
      %v4315 = vrot.slane %v4173, 1
      %v4316 = vsel %vm4030, %v4313, %v4315
      %v4317 = vrot.slane %v4175, 1
      %v4318 = vsel %vm4030, %v4315, %v4317
      %v4319 = vrot.slane %v4261, 1
      %v4320 = vsel %vm4030, %v4317, %v4319
      %v4321 = vrot.slane %v4263, 1
      %v4322 = vsel %vm4030, %v4319, %v4321
      %v4323 = vrot.slane %v4265, 1
      %v4324 = vsel %vm4030, %v4321, %v4323
      %v4327 = vunpack.c.l.b16 %v4267
      %v4328 = vunpack.c.l.b16 %v4268
      %v4329 = vpack.c.b16 %v4328, %v4327
      %vm4330 = vcmask 97280
      %v4332 = vsel %vm4330, %v4290, 0
      %v4335 = vsel %vm4330, %v4292, 0
      %v4338 = vsel %vm4330, %v4294, 0
      %v4341 = vsel %vm4330, %v4296, 0
      %v4344 = vsel %vm4330, %v4298, 0
      %v4347 = vsel %vm4330, %v4300, 0
      %v4350 = vsel %vm4330, %v4302, 0
      %v4353 = vsel %vm4330, %v4304, 0
      %v4356 = vsel %vm4330, %v4306, 0
      %v4359 = vsel %vm4330, %v4308, 0
      %v4362 = vsel %vm4330, %v4310, 0
      %v4365 = vsel %vm4330, %v4312, 0
      %v4368 = vsel %vm4330, %v4314, 0
      %v4371 = vsel %vm4330, %v4316, 0
      %v4374 = vsel %vm4330, %v4318, 0
      %v4377 = vsel %vm4330, %v4320, 0
      %v4380 = vsel %vm4330, %v4322, 0
      %v4383 = vsel %vm4330, %v4324, 0
      %vm4385 = vcmask 1045504
      %v4387 = vsel %vm4385, %v4329, 0
      %4389 = vmatprep.subr.bf16.mxu0 0
      %4390 = vmatpush1.bf16.msra.mxu0 0
      %4391 = vmatprep.subr.bf16.mxu0 0
      %4392 = vmatpush1.bf16.msra.mxu0 0
      %4393 = vmatprep.subr.bf16.mxu0 0
      %4394 = vmatpush1.bf16.msra.mxu0 0
      %4395 = vmatprep.subr.bf16.mxu0 0
      %4396 = vmatpush1.bf16.msra.mxu0 0
      %4397 = vmatprep.subr.bf16.mxu0 0
      %4398 = vmatpush1.bf16.msra.mxu0 0
      %4399 = vmatprep.subr.bf16.mxu0 0
      %4400 = vmatpush1.bf16.msra.mxu0 0
      %4401 = vmatprep.subr.bf16.mxu0 0
      %4402 = vmatpush1.bf16.msra.mxu0 0
      %4403 = vmatprep.subr.bf16.mxu0 0
      %4404 = vmatpush1.bf16.msra.mxu0 %v4387
      %4405 = vmatprep.subr.bf16.mxu0 0
      %4406 = vmatpush2.bf16.msra.mxu0 0
      %4407 = vmatprep.subr.bf16.mxu0 0
      %4408 = vmatpush2.bf16.msra.mxu0 0
      %4409 = vmatprep.subr.bf16.mxu0 0
      %4410 = vmatpush2.bf16.msra.mxu0 0
      %4411 = vmatprep.subr.bf16.mxu0 0
      %4412 = vmatpush2.bf16.msra.mxu0 0
      %4413 = vmatprep.subr.bf16.mxu0 0
      %4414 = vmatpush2.bf16.msra.mxu0 0
      %4415 = vmatprep.subr.bf16.mxu0 0
      %4416 = vmatpush2.bf16.msra.mxu0 0
      %4417 = vmatprep.subr.bf16.mxu0 0
      %4418 = vmatpush2.bf16.msra.mxu0 0
      %4419 = vmatprep.subr.bf16.mxu0 0
      %4420 = vmatpush2.bf16.msra.mxu0 0
      %4421 = vmatprep.mubr.bf16.mxu0 0
      %4422 = vmatmul.mubr.bf16.gmra.mxu0 %v4332
      %v4423 = vpop.f32.mrf.mxu0
      %v4424 = vadd.f32 0.0, %v4423
      %v4425 = vpop.f32.mrf.mxu0
      %v4426 = vpop.f32.mrf.mxu0
      %v4427 = vadd.f32 0.0, %v4426
      %v4428 = vpop.f32.mrf.mxu0
      %4429 = vmatprep.mubr.bf16.mxu0 0
      %4430 = vmatmul.mubr.bf16.gmra.mxu0 %v4335
      %v4431 = vpop.f32.mrf.mxu0
      %v4432 = vadd.f32 0.0, %v4431
      %v4433 = vpop.f32.mrf.mxu0
      %v4434 = vpop.f32.mrf.mxu0
      %v4435 = vadd.f32 0.0, %v4434
      %v4436 = vpop.f32.mrf.mxu0
      %4437 = vmatprep.mubr.bf16.mxu0 0
      %4438 = vmatmul.mubr.bf16.gmra.mxu0 %v4338
      %v4439 = vpop.f32.mrf.mxu0
      %v4440 = vadd.f32 0.0, %v4439
      %v4441 = vpop.f32.mrf.mxu0
      %v4442 = vpop.f32.mrf.mxu0
      %v4443 = vadd.f32 0.0, %v4442
      %v4444 = vpop.f32.mrf.mxu0
      %4445 = vmatprep.mubr.bf16.mxu0 0
      %4446 = vmatmul.mubr.bf16.gmra.mxu0 %v4341
      %v4447 = vpop.f32.mrf.mxu0
      %v4448 = vadd.f32 0.0, %v4447
      %v4449 = vpop.f32.mrf.mxu0
      %v4450 = vpop.f32.mrf.mxu0
      %v4451 = vadd.f32 0.0, %v4450
      %v4452 = vpop.f32.mrf.mxu0
      %4453 = vmatprep.mubr.bf16.mxu0 0
      %4454 = vmatmul.mubr.bf16.gmra.mxu0 %v4344
      %v4455 = vpop.f32.mrf.mxu0
      %v4456 = vadd.f32 0.0, %v4455
      %v4457 = vpop.f32.mrf.mxu0
      %v4458 = vpop.f32.mrf.mxu0
      %v4459 = vadd.f32 0.0, %v4458
      %v4460 = vpop.f32.mrf.mxu0
      %4461 = vmatprep.mubr.bf16.mxu0 0
      %4462 = vmatmul.mubr.bf16.gmra.mxu0 %v4347
      %v4463 = vpop.f32.mrf.mxu0
      %v4464 = vadd.f32 0.0, %v4463
      %v4465 = vpop.f32.mrf.mxu0
      %v4466 = vpop.f32.mrf.mxu0
      %v4467 = vadd.f32 0.0, %v4466
      %v4468 = vpop.f32.mrf.mxu0
      %4469 = vmatprep.mubr.bf16.mxu0 0
      %4470 = vmatmul.mubr.bf16.gmra.mxu0 %v4350
      %v4471 = vpop.f32.mrf.mxu0
      %v4472 = vadd.f32 0.0, %v4471
      %v4473 = vpop.f32.mrf.mxu0
      %v4474 = vpop.f32.mrf.mxu0
      %v4475 = vadd.f32 0.0, %v4474
      %v4476 = vpop.f32.mrf.mxu0
      %4477 = vmatprep.mubr.bf16.mxu0 0
      %4478 = vmatmul.mubr.bf16.gmra.mxu0 %v4353
      %v4479 = vpop.f32.mrf.mxu0
      %v4480 = vadd.f32 0.0, %v4479
      %v4481 = vpop.f32.mrf.mxu0
      %v4482 = vpop.f32.mrf.mxu0
      %v4483 = vadd.f32 0.0, %v4482
      %v4484 = vpop.f32.mrf.mxu0
      %4485 = vmatprep.mubr.bf16.mxu0 0
      %4486 = vmatmul.mubr.bf16.gmra.mxu0 %v4356
      %v4487 = vpop.f32.mrf.mxu0
      %v4488 = vadd.f32 0.0, %v4487
      %v4489 = vpop.f32.mrf.mxu0
      %v4490 = vpop.f32.mrf.mxu0
      %v4491 = vadd.f32 0.0, %v4490
      %v4492 = vpop.f32.mrf.mxu0
      %4493 = vmatprep.mubr.bf16.mxu0 0
      %4494 = vmatmul.mubr.bf16.gmra.mxu0 %v4359
      %v4495 = vpop.f32.mrf.mxu0
      %v4496 = vadd.f32 0.0, %v4495
      %v4497 = vpop.f32.mrf.mxu0
      %v4498 = vpop.f32.mrf.mxu0
      %v4499 = vadd.f32 0.0, %v4498
      %v4500 = vpop.f32.mrf.mxu0
      %4501 = vmatprep.mubr.bf16.mxu0 0
      %4502 = vmatmul.mubr.bf16.gmra.mxu0 %v4362
      %v4503 = vpop.f32.mrf.mxu0
      %v4504 = vadd.f32 0.0, %v4503
      %v4505 = vpop.f32.mrf.mxu0
      %v4506 = vpop.f32.mrf.mxu0
      %v4507 = vadd.f32 0.0, %v4506
      %v4508 = vpop.f32.mrf.mxu0
      %4509 = vmatprep.mubr.bf16.mxu0 0
      %4510 = vmatmul.mubr.bf16.gmra.mxu0 %v4365
      %v4511 = vpop.f32.mrf.mxu0
      %v4512 = vadd.f32 0.0, %v4511
      %v4513 = vpop.f32.mrf.mxu0
      %v4514 = vpop.f32.mrf.mxu0
      %v4515 = vadd.f32 0.0, %v4514
      %v4516 = vpop.f32.mrf.mxu0
      %4517 = vmatprep.mubr.bf16.mxu0 0
      %4518 = vmatmul.mubr.bf16.gmra.mxu0 %v4368
      %v4519 = vpop.f32.mrf.mxu0
      %v4520 = vadd.f32 0.0, %v4519
      %v4521 = vpop.f32.mrf.mxu0
      %v4522 = vpop.f32.mrf.mxu0
      %v4523 = vadd.f32 0.0, %v4522
      %v4524 = vpop.f32.mrf.mxu0
      %4525 = vmatprep.mubr.bf16.mxu0 0
      %4526 = vmatmul.mubr.bf16.gmra.mxu0 %v4371
      %v4527 = vpop.f32.mrf.mxu0
      %v4528 = vadd.f32 0.0, %v4527
      %v4529 = vpop.f32.mrf.mxu0
      %v4530 = vpop.f32.mrf.mxu0
      %v4531 = vadd.f32 0.0, %v4530
      %v4532 = vpop.f32.mrf.mxu0
      %4533 = vmatprep.mubr.bf16.mxu0 0
      %4534 = vmatmul.mubr.bf16.gmra.mxu0 %v4374
      %v4535 = vpop.f32.mrf.mxu0
      %v4536 = vadd.f32 0.0, %v4535
      %v4537 = vpop.f32.mrf.mxu0
      %v4538 = vpop.f32.mrf.mxu0
      %v4539 = vadd.f32 0.0, %v4538
      %v4540 = vpop.f32.mrf.mxu0
      %4541 = vmatprep.mubr.bf16.mxu0 0
      %4542 = vmatmul.mubr.bf16.gmra.mxu0 %v4377
      %v4543 = vpop.f32.mrf.mxu0
      %v4544 = vadd.f32 0.0, %v4543
      %v4545 = vpop.f32.mrf.mxu0
      %v4546 = vpop.f32.mrf.mxu0
      %v4547 = vadd.f32 0.0, %v4546
      %v4548 = vpop.f32.mrf.mxu0
      %4549 = vmatprep.mubr.bf16.mxu0 0
      %4550 = vmatmul.mubr.bf16.gmra.mxu0 %v4380
      %v4551 = vpop.f32.mrf.mxu0
      %v4552 = vadd.f32 0.0, %v4551
      %v4553 = vpop.f32.mrf.mxu0
      %v4554 = vpop.f32.mrf.mxu0
      %v4555 = vadd.f32 0.0, %v4554
      %v4556 = vpop.f32.mrf.mxu0
      %4557 = vmatprep.mubr.bf16.mxu0 0
      %4558 = vmatmul.mubr.bf16.gmra.mxu0 %v4383
      %v4559 = vpop.f32.mrf.mxu0
      %v4560 = vadd.f32 0.0, %v4559
      %v4561 = vpop.f32.mrf.mxu0
      %v4562 = vpop.f32.mrf.mxu0
      %v4563 = vadd.f32 0.0, %v4562
      %v4564 = vpop.f32.mrf.mxu0
      %4565 = vdwg.mxu0
      %v4568 = vunpack.c.l.b16 %v4178
      %v4569 = vunpack.c.l.b16 %v4179
      %v4570 = vpack.c.b16 %v4569, %v4568
      %v4571 = vsel %vm4330, %v4143, 0
      %v4573 = vsel %vm4330, %v4145, 0
      %v4575 = vsel %vm4330, %v4147, 0
      %v4577 = vsel %vm4330, %v4149, 0
      %v4579 = vsel %vm4330, %v4151, 0
      %v4581 = vsel %vm4330, %v4153, 0
      %v4583 = vsel %vm4330, %v4155, 0
      %v4585 = vsel %vm4330, %v4157, 0
      %v4587 = vsel %vm4330, %v4159, 0
      %v4589 = vsel %vm4330, %v4161, 0
      %v4591 = vsel %vm4330, %v4163, 0
      %v4593 = vsel %vm4330, %v4165, 0
      %v4595 = vsel %vm4330, %v4167, 0
      %v4597 = vsel %vm4330, %v4169, 0
      %v4599 = vsel %vm4330, %v4171, 0
      %v4601 = vsel %vm4330, %v4173, 0
      %v4603 = vsel %vm4330, %v4175, 0
      %v4605 = vsel %vm4330, %v4177, 0
      %v4608 = vsel %vm4385, %v4570, 0
      %4610 = vmatprep.subr.bf16.mxu0 0
      %4611 = vmatpush1.bf16.msra.mxu0 0
      %4612 = vmatprep.subr.bf16.mxu0 0
      %4613 = vmatpush1.bf16.msra.mxu0 0
      %4614 = vmatprep.subr.bf16.mxu0 0
      %4615 = vmatpush1.bf16.msra.mxu0 0
      %4616 = vmatprep.subr.bf16.mxu0 0
      %4617 = vmatpush1.bf16.msra.mxu0 0
      %4618 = vmatprep.subr.bf16.mxu0 0
      %4619 = vmatpush1.bf16.msra.mxu0 0
      %4620 = vmatprep.subr.bf16.mxu0 0
      %4621 = vmatpush1.bf16.msra.mxu0 0
      %4622 = vmatprep.subr.bf16.mxu0 0
      %4623 = vmatpush1.bf16.msra.mxu0 0
      %4624 = vmatprep.subr.bf16.mxu0 0
      %4625 = vmatpush1.bf16.msra.mxu0 %v4608
      %4626 = vmatprep.subr.bf16.mxu0 0
      %4627 = vmatpush2.bf16.msra.mxu0 0
      %4628 = vmatprep.subr.bf16.mxu0 0
      %4629 = vmatpush2.bf16.msra.mxu0 0
      %4630 = vmatprep.subr.bf16.mxu0 0
      %4631 = vmatpush2.bf16.msra.mxu0 0
      %4632 = vmatprep.subr.bf16.mxu0 0
      %4633 = vmatpush2.bf16.msra.mxu0 0
      %4634 = vmatprep.subr.bf16.mxu0 0
      %4635 = vmatpush2.bf16.msra.mxu0 0
      %4636 = vmatprep.subr.bf16.mxu0 0
      %4637 = vmatpush2.bf16.msra.mxu0 0
      %4638 = vmatprep.subr.bf16.mxu0 0
      %4639 = vmatpush2.bf16.msra.mxu0 0
      %4640 = vmatprep.subr.bf16.mxu0 0
      %4641 = vmatpush2.bf16.msra.mxu0 0
      %4642 = vmatprep.mubr.bf16.mxu0 0
      %4643 = vmatmul.mubr.bf16.gmra.mxu0 %v4571
      %v4644 = vpop.f32.mrf.mxu0
      %v4645 = vadd.f32 %v4424, %v4644
      %v4646 = vpop.f32.mrf.mxu0
      %v4647 = vpop.f32.mrf.mxu0
      %v4648 = vadd.f32 %v4427, %v4647
      %v4649 = vpop.f32.mrf.mxu0
      %4650 = vmatprep.mubr.bf16.mxu0 0
      %4651 = vmatmul.mubr.bf16.gmra.mxu0 %v4573
      %v4652 = vpop.f32.mrf.mxu0
      %v4653 = vadd.f32 %v4432, %v4652
      %v4654 = vpop.f32.mrf.mxu0
      %v4655 = vpop.f32.mrf.mxu0
      %v4656 = vadd.f32 %v4435, %v4655
      %v4657 = vpop.f32.mrf.mxu0
      %4658 = vmatprep.mubr.bf16.mxu0 0
      %4659 = vmatmul.mubr.bf16.gmra.mxu0 %v4575
      %v4660 = vpop.f32.mrf.mxu0
      %v4661 = vadd.f32 %v4440, %v4660
      %v4662 = vpop.f32.mrf.mxu0
      %v4663 = vpop.f32.mrf.mxu0
      %v4664 = vadd.f32 %v4443, %v4663
      %v4665 = vpop.f32.mrf.mxu0
      %4666 = vmatprep.mubr.bf16.mxu0 0
      %4667 = vmatmul.mubr.bf16.gmra.mxu0 %v4577
      %v4668 = vpop.f32.mrf.mxu0
      %v4669 = vadd.f32 %v4448, %v4668
      %v4670 = vpop.f32.mrf.mxu0
      %v4671 = vpop.f32.mrf.mxu0
      %v4672 = vadd.f32 %v4451, %v4671
      %v4673 = vpop.f32.mrf.mxu0
      %4674 = vmatprep.mubr.bf16.mxu0 0
      %4675 = vmatmul.mubr.bf16.gmra.mxu0 %v4579
      %v4676 = vpop.f32.mrf.mxu0
      %v4677 = vadd.f32 %v4456, %v4676
      %v4678 = vpop.f32.mrf.mxu0
      %v4679 = vpop.f32.mrf.mxu0
      %v4680 = vadd.f32 %v4459, %v4679
      %v4681 = vpop.f32.mrf.mxu0
      %4682 = vmatprep.mubr.bf16.mxu0 0
      %4683 = vmatmul.mubr.bf16.gmra.mxu0 %v4581
      %v4684 = vpop.f32.mrf.mxu0
      %v4685 = vadd.f32 %v4464, %v4684
      %v4686 = vpop.f32.mrf.mxu0
      %v4687 = vpop.f32.mrf.mxu0
      %v4688 = vadd.f32 %v4467, %v4687
      %v4689 = vpop.f32.mrf.mxu0
      %4690 = vmatprep.mubr.bf16.mxu0 0
      %4691 = vmatmul.mubr.bf16.gmra.mxu0 %v4583
      %v4692 = vpop.f32.mrf.mxu0
      %v4693 = vadd.f32 %v4472, %v4692
      %v4694 = vpop.f32.mrf.mxu0
      %v4695 = vpop.f32.mrf.mxu0
      %v4696 = vadd.f32 %v4475, %v4695
      %v4697 = vpop.f32.mrf.mxu0
      %4698 = vmatprep.mubr.bf16.mxu0 0
      %4699 = vmatmul.mubr.bf16.gmra.mxu0 %v4585
      %v4700 = vpop.f32.mrf.mxu0
      %v4701 = vadd.f32 %v4480, %v4700
      %v4702 = vpop.f32.mrf.mxu0
      %v4703 = vpop.f32.mrf.mxu0
      %v4704 = vadd.f32 %v4483, %v4703
      %v4705 = vpop.f32.mrf.mxu0
      %4706 = vmatprep.mubr.bf16.mxu0 0
      %4707 = vmatmul.mubr.bf16.gmra.mxu0 %v4587
      %v4708 = vpop.f32.mrf.mxu0
      %v4709 = vadd.f32 %v4488, %v4708
      %v4710 = vpop.f32.mrf.mxu0
      %v4711 = vpop.f32.mrf.mxu0
      %v4712 = vadd.f32 %v4491, %v4711
      %v4713 = vpop.f32.mrf.mxu0
      %4714 = vmatprep.mubr.bf16.mxu0 0
      %4715 = vmatmul.mubr.bf16.gmra.mxu0 %v4589
      %v4716 = vpop.f32.mrf.mxu0
      %v4717 = vadd.f32 %v4496, %v4716
      %v4718 = vpop.f32.mrf.mxu0
      %v4719 = vpop.f32.mrf.mxu0
      %v4720 = vadd.f32 %v4499, %v4719
      %v4721 = vpop.f32.mrf.mxu0
      %4722 = vmatprep.mubr.bf16.mxu0 0
      %4723 = vmatmul.mubr.bf16.gmra.mxu0 %v4591
      %v4724 = vpop.f32.mrf.mxu0
      %v4725 = vadd.f32 %v4504, %v4724
      %v4726 = vpop.f32.mrf.mxu0
      %v4727 = vpop.f32.mrf.mxu0
      %v4728 = vadd.f32 %v4507, %v4727
      %v4729 = vpop.f32.mrf.mxu0
      %4730 = vmatprep.mubr.bf16.mxu0 0
      %4731 = vmatmul.mubr.bf16.gmra.mxu0 %v4593
      %v4732 = vpop.f32.mrf.mxu0
      %v4733 = vadd.f32 %v4512, %v4732
      %v4734 = vpop.f32.mrf.mxu0
      %v4735 = vpop.f32.mrf.mxu0
      %v4736 = vadd.f32 %v4515, %v4735
      %v4737 = vpop.f32.mrf.mxu0
      %4738 = vmatprep.mubr.bf16.mxu0 0
      %4739 = vmatmul.mubr.bf16.gmra.mxu0 %v4595
      %v4740 = vpop.f32.mrf.mxu0
      %v4741 = vadd.f32 %v4520, %v4740
      %v4742 = vpop.f32.mrf.mxu0
      %v4743 = vpop.f32.mrf.mxu0
      %v4744 = vadd.f32 %v4523, %v4743
      %v4745 = vpop.f32.mrf.mxu0
      %4746 = vmatprep.mubr.bf16.mxu0 0
      %4747 = vmatmul.mubr.bf16.gmra.mxu0 %v4597
      %v4748 = vpop.f32.mrf.mxu0
      %v4749 = vadd.f32 %v4528, %v4748
      %v4750 = vpop.f32.mrf.mxu0
      %v4751 = vpop.f32.mrf.mxu0
      %v4752 = vadd.f32 %v4531, %v4751
      %v4753 = vpop.f32.mrf.mxu0
      %4754 = vmatprep.mubr.bf16.mxu0 0
      %4755 = vmatmul.mubr.bf16.gmra.mxu0 %v4599
      %v4756 = vpop.f32.mrf.mxu0
      %v4757 = vadd.f32 %v4536, %v4756
      %v4758 = vpop.f32.mrf.mxu0
      %v4759 = vpop.f32.mrf.mxu0
      %v4760 = vadd.f32 %v4539, %v4759
      %v4761 = vpop.f32.mrf.mxu0
      %4762 = vmatprep.mubr.bf16.mxu0 0
      %4763 = vmatmul.mubr.bf16.gmra.mxu0 %v4601
      %v4764 = vpop.f32.mrf.mxu0
      %v4765 = vadd.f32 %v4544, %v4764
      %v4766 = vpop.f32.mrf.mxu0
      %v4767 = vpop.f32.mrf.mxu0
      %v4768 = vadd.f32 %v4547, %v4767
      %v4769 = vpop.f32.mrf.mxu0
      %4770 = vmatprep.mubr.bf16.mxu0 0
      %4771 = vmatmul.mubr.bf16.gmra.mxu0 %v4603
      %v4772 = vpop.f32.mrf.mxu0
      %v4773 = vadd.f32 %v4552, %v4772
      %v4774 = vpop.f32.mrf.mxu0
      %v4775 = vpop.f32.mrf.mxu0
      %v4776 = vadd.f32 %v4555, %v4775
      %v4777 = vpop.f32.mrf.mxu0
      %4778 = vmatprep.mubr.bf16.mxu0 0
      %4779 = vmatmul.mubr.bf16.gmra.mxu0 %v4605
      %v4780 = vpop.f32.mrf.mxu0
      %v4781 = vadd.f32 %v4560, %v4780
      %v4782 = vpop.f32.mrf.mxu0
      %v4783 = vpop.f32.mrf.mxu0
      %v4784 = vadd.f32 %v4563, %v4783
      %v4785 = vpop.f32.mrf.mxu0
      %4786 = vdwg.mxu0
      %v4787 = vld [vmem:[#allocation2 + $0x10] sm:$0xc]
      %v4788 = vld [vmem:[#allocation2 + $0x14] sm:$0xf]
      %v4789 = vld [vmem:[#allocation2 + $0x18] sm:$0xf]
      %v4790 = vld [vmem:[#allocation2 + $0x1c] sm:$0xf]
      %v4791 = vld [vmem:[#allocation2 + $0x20] sm:$0xf]
      %v4792 = vld [vmem:[#allocation2 + $0x24] sm:$0xf]
      %v4793 = vld [vmem:[#allocation2 + $0x28] sm:$0xf]
      %v4794 = vld [vmem:[#allocation2 + $0x2c] sm:$0xf]
      %v4795 = vld [vmem:[#allocation2 + $0x30] sm:$0xf]
      %v4796 = vld [vmem:[#allocation2 + $0x34] sm:$0xf]
      %v4797 = vld [vmem:[#allocation2 + $0x38] sm:$0xf]
      %v4798 = vld [vmem:[#allocation2 + $0x3c] sm:$0xf]
      %v4799 = vld [vmem:[#allocation2 + $0x40] sm:$0xf]
      %v4800 = vld [vmem:[#allocation2 + $0x44] sm:$0xf]
      %v4801 = vld [vmem:[#allocation2 + $0x48] sm:$0xf]
      %v4802 = vld [vmem:[#allocation2 + $0x4c] sm:$0xf]
      %v4803 = vld [vmem:[#allocation2 + $0x50] sm:$0xf]
      %v4804 = vld [vmem:[#allocation2 + $0x54] sm:$0xf]
      %v4805 = vld [vmem:[#allocation2 + $0x58] sm:$0xf]
      %v4806 = vld [vmem:[#allocation2 + $0x5c] sm:$0xf]
      %v4807 = vld [vmem:[#allocation2 + $0x60] sm:$0xf]
      %v4808 = vld [vmem:[#allocation2 + $0x64] sm:$0xf]
      %v4809 = vld [vmem:[#allocation2 + $0x68] sm:$0xf]
      %v4810 = vld [vmem:[#allocation2 + $0x6c] sm:$0xf]
      %v4811 = vld [vmem:[#allocation2 + $0x70] sm:$0xf]
      %v4812 = vld [vmem:[#allocation2 + $0x74] sm:$0xf]
      %v4813 = vld [vmem:[#allocation2 + $0x78] sm:$0xf]
      %v4814 = vld [vmem:[#allocation2 + $0x7c] sm:$0xf]
      %v4815 = vld [vmem:[#allocation2 + $0x80] sm:$0xf]
      %v4816 = vld [vmem:[#allocation2 + $0x84] sm:$0xf]
      %v4817 = vld [vmem:[#allocation2 + $0x88] sm:$0xf]
      %v4818 = vld [vmem:[#allocation2 + $0x8c] sm:$0xf]
      %v4819 = vld [vmem:[#allocation2 + $0x90] sm:$0xf]
      %v4820 = vld [vmem:[#allocation2 + $0x94] sm:$0xf]
      %v4821 = vld [vmem:[#allocation2 + $0x98] sm:$0xf]
      %v4822 = vld [vmem:[#allocation2 + $0x9c] sm:$0xf]
      %v4823 = vld [vmem:[#allocation2 + $0xa0] sm:$0x3]
      %v4824 = vld [vmem:[#allocation2 + $0xa0] sm:$0x7]
      %v4825 = vld [vmem:[#allocation2 + $0x10] sm:$0x8]
      %v4863 = vunpack.c.l.b16 %v4787
      %v4864 = vunpack.c.l.b16 %v4788
      %v4865 = vunpack.c.l.b16 %v4789
      %v4866 = vunpack.c.l.b16 %v4790
      %v4867 = vunpack.c.l.b16 %v4791
      %v4868 = vunpack.c.l.b16 %v4792
      %v4869 = vunpack.c.l.b16 %v4793
      %v4870 = vunpack.c.l.b16 %v4794
      %v4871 = vunpack.c.l.b16 %v4795
      %v4872 = vunpack.c.l.b16 %v4796
      %v4873 = vunpack.c.l.b16 %v4797
      %v4874 = vunpack.c.l.b16 %v4798
      %v4875 = vunpack.c.l.b16 %v4799
      %v4876 = vunpack.c.l.b16 %v4800
      %v4877 = vunpack.c.l.b16 %v4801
      %v4878 = vunpack.c.l.b16 %v4802
      %v4879 = vunpack.c.l.b16 %v4803
      %v4880 = vunpack.c.l.b16 %v4804
      %v4881 = vunpack.c.l.b16 %v4805
      %v4882 = vunpack.c.l.b16 %v4806
      %v4883 = vunpack.c.l.b16 %v4807
      %v4884 = vunpack.c.l.b16 %v4808
      %v4885 = vunpack.c.l.b16 %v4809
      %v4886 = vunpack.c.l.b16 %v4810
      %v4887 = vunpack.c.l.b16 %v4811
      %v4888 = vunpack.c.l.b16 %v4812
      %v4889 = vunpack.c.l.b16 %v4813
      %v4890 = vunpack.c.l.b16 %v4814
      %v4891 = vunpack.c.l.b16 %v4815
      %v4892 = vunpack.c.l.b16 %v4816
      %v4893 = vunpack.c.l.b16 %v4817
      %v4894 = vunpack.c.l.b16 %v4818
      %v4895 = vunpack.c.l.b16 %v4819
      %v4896 = vunpack.c.l.b16 %v4820
      %v4897 = vunpack.c.l.b16 %v4821
      %v4898 = vunpack.c.l.b16 %v4822
      %v4899 = vunpack.c.l.b16 %v4823
      %v4900 = vpack.c.b16 %v4864, %v4863
      %v4901 = vpack.c.b16 %v4866, %v4865
      %v4902 = vpack.c.b16 %v4868, %v4867
      %v4903 = vpack.c.b16 %v4870, %v4869
      %v4904 = vpack.c.b16 %v4872, %v4871
      %v4905 = vpack.c.b16 %v4874, %v4873
      %v4906 = vpack.c.b16 %v4876, %v4875
      %v4907 = vpack.c.b16 %v4878, %v4877
      %v4908 = vpack.c.b16 %v4880, %v4879
      %v4909 = vpack.c.b16 %v4882, %v4881
      %v4910 = vpack.c.b16 %v4884, %v4883
      %v4911 = vpack.c.b16 %v4886, %v4885
      %v4912 = vpack.c.b16 %v4888, %v4887
      %v4913 = vpack.c.b16 %v4890, %v4889
      %v4914 = vpack.c.b16 %v4892, %v4891
      %v4915 = vpack.c.b16 %v4894, %v4893
      %v4916 = vpack.c.b16 %v4896, %v4895
      %v4917 = vpack.c.b16 %v4898, %v4897
      %v4918 = vpack.c.b16 %v4899, %v4899
      %v4920 = vunpack.c.l.b16 %v4824
      %v4921 = vpack.c.b16 %v4920, %v4920
      %v4923 = vshrl.u32 %v4900, 16
      %v4925 = vshll.u32 %v4900, 16
      %v4927 = vrot.slane %v4925, 1
      %v4928 = vor.u32 %v4923, %v4927
      %v4930 = vshll.u32 %v4901, 16
      %v4932 = vrot.slane %v4930, 1
      %v4933 = vsel %vm3842, %v4928, %v4932
      %v4934 = vshrl.u32 %v4901, 16
      %v4936 = vor.u32 %v4934, %v4932
      %v4938 = vshll.u32 %v4902, 16
      %v4940 = vrot.slane %v4938, 1
      %v4941 = vsel %vm3842, %v4936, %v4940
      %v4942 = vshrl.u32 %v4902, 16
      %v4944 = vor.u32 %v4942, %v4940
      %v4946 = vshll.u32 %v4903, 16
      %v4948 = vrot.slane %v4946, 1
      %v4949 = vsel %vm3842, %v4944, %v4948
      %v4950 = vshrl.u32 %v4903, 16
      %v4952 = vor.u32 %v4950, %v4948
      %v4954 = vshll.u32 %v4904, 16
      %v4956 = vrot.slane %v4954, 1
      %v4957 = vsel %vm3842, %v4952, %v4956
      %v4958 = vshrl.u32 %v4904, 16
      %v4960 = vor.u32 %v4958, %v4956
      %v4962 = vshll.u32 %v4905, 16
      %v4964 = vrot.slane %v4962, 1
      %v4965 = vsel %vm3842, %v4960, %v4964
      %v4966 = vshrl.u32 %v4905, 16
      %v4968 = vor.u32 %v4966, %v4964
      %v4970 = vshll.u32 %v4906, 16
      %v4972 = vrot.slane %v4970, 1
      %v4973 = vsel %vm3842, %v4968, %v4972
      %v4974 = vshrl.u32 %v4906, 16
      %v4976 = vor.u32 %v4974, %v4972
      %v4978 = vshll.u32 %v4907, 16
      %v4980 = vrot.slane %v4978, 1
      %v4981 = vsel %vm3842, %v4976, %v4980
      %v4982 = vshrl.u32 %v4907, 16
      %v4984 = vor.u32 %v4982, %v4980
      %v4986 = vshll.u32 %v4908, 16
      %v4988 = vrot.slane %v4986, 1
      %v4989 = vsel %vm3842, %v4984, %v4988
      %v4990 = vshrl.u32 %v4908, 16
      %v4992 = vor.u32 %v4990, %v4988
      %v4994 = vshll.u32 %v4909, 16
      %v4996 = vrot.slane %v4994, 1
      %v4997 = vsel %vm3842, %v4992, %v4996
      %v4998 = vshrl.u32 %v4909, 16
      %v5000 = vor.u32 %v4998, %v4996
      %v5002 = vshll.u32 %v4910, 16
      %v5004 = vrot.slane %v5002, 1
      %v5005 = vsel %vm3842, %v5000, %v5004
      %v5006 = vshrl.u32 %v4910, 16
      %v5008 = vor.u32 %v5006, %v5004
      %v5010 = vshll.u32 %v4911, 16
      %v5012 = vrot.slane %v5010, 1
      %v5013 = vsel %vm3842, %v5008, %v5012
      %v5014 = vshrl.u32 %v4911, 16
      %v5016 = vor.u32 %v5014, %v5012
      %v5018 = vshll.u32 %v4912, 16
      %v5020 = vrot.slane %v5018, 1
      %v5021 = vsel %vm3842, %v5016, %v5020
      %v5022 = vshrl.u32 %v4912, 16
      %v5024 = vor.u32 %v5022, %v5020
      %v5026 = vshll.u32 %v4913, 16
      %v5028 = vrot.slane %v5026, 1
      %v5029 = vsel %vm3842, %v5024, %v5028
      %v5030 = vshrl.u32 %v4913, 16
      %v5032 = vor.u32 %v5030, %v5028
      %v5034 = vshll.u32 %v4914, 16
      %v5036 = vrot.slane %v5034, 1
      %v5037 = vsel %vm3842, %v5032, %v5036
      %v5038 = vshrl.u32 %v4914, 16
      %v5040 = vor.u32 %v5038, %v5036
      %v5042 = vshll.u32 %v4915, 16
      %v5044 = vrot.slane %v5042, 1
      %v5045 = vsel %vm3842, %v5040, %v5044
      %v5046 = vshrl.u32 %v4915, 16
      %v5048 = vor.u32 %v5046, %v5044
      %v5050 = vshll.u32 %v4916, 16
      %v5052 = vrot.slane %v5050, 1
      %v5053 = vsel %vm3842, %v5048, %v5052
      %v5054 = vshrl.u32 %v4916, 16
      %v5056 = vor.u32 %v5054, %v5052
      %v5058 = vshll.u32 %v4917, 16
      %v5060 = vrot.slane %v5058, 1
      %v5061 = vsel %vm3842, %v5056, %v5060
      %v5062 = vshrl.u32 %v4917, 16
      %v5064 = vor.u32 %v5062, %v5060
      %v5066 = vshll.u32 %v4921, 16
      %v5068 = vrot.slane %v5066, 1
      %v5069 = vsel %vm3842, %v5064, %v5068
      %v5070 = vshrl.u32 %v4921, 16
      %v5072 = vor.u32 %v5070, %v5068
      %5073 = vrot.lane.b32.xlu0 %v4933, 4
      %v5074 = vpop.permute.xlu0 %5073
      %5075 = vrot.lane.b32.xlu0 %v4941, 4
      %v5076 = vpop.permute.xlu0 %5075
      %5077 = vrot.lane.b32.xlu0 %v4949, 4
      %v5078 = vpop.permute.xlu0 %5077
      %5079 = vrot.lane.b32.xlu0 %v4957, 4
      %v5080 = vpop.permute.xlu0 %5079
      %5081 = vrot.lane.b32.xlu0 %v4965, 4
      %v5082 = vpop.permute.xlu0 %5081
      %5083 = vrot.lane.b32.xlu0 %v4973, 4
      %v5084 = vpop.permute.xlu0 %5083
      %5085 = vrot.lane.b32.xlu0 %v4981, 4
      %v5086 = vpop.permute.xlu0 %5085
      %5087 = vrot.lane.b32.xlu0 %v4989, 4
      %v5088 = vpop.permute.xlu0 %5087
      %5089 = vrot.lane.b32.xlu0 %v4997, 4
      %v5090 = vpop.permute.xlu0 %5089
      %5091 = vrot.lane.b32.xlu0 %v5005, 4
      %v5092 = vpop.permute.xlu0 %5091
      %5093 = vrot.lane.b32.xlu0 %v5013, 4
      %v5094 = vpop.permute.xlu0 %5093
      %5095 = vrot.lane.b32.xlu0 %v5021, 4
      %v5096 = vpop.permute.xlu0 %5095
      %5097 = vrot.lane.b32.xlu0 %v5029, 4
      %v5098 = vpop.permute.xlu0 %5097
      %5099 = vrot.lane.b32.xlu0 %v5037, 4
      %v5100 = vpop.permute.xlu0 %5099
      %5101 = vrot.lane.b32.xlu0 %v5045, 4
      %v5102 = vpop.permute.xlu0 %5101
      %5103 = vrot.lane.b32.xlu0 %v5053, 4
      %v5104 = vpop.permute.xlu0 %5103
      %5105 = vrot.lane.b32.xlu0 %v5061, 4
      %v5106 = vpop.permute.xlu0 %5105
      %5107 = vrot.lane.b32.xlu0 %v5069, 4
      %v5108 = vpop.permute.xlu0 %5107
      %5109 = vrot.lane.b32.xlu0 %v5072, 4
      %v5110 = vpop.permute.xlu0 %5109
      %v5112 = vunpack.c.l.b16 %v4825
      %v5113 = vpack.c.b16 %v4864, %v5112
      %v5114 = vrot.slane %v5113, 1
      %v5115 = vrot.slane %v4901, 1
      %v5116 = vsel %vm4030, %v5114, %v5115
      %v5117 = vrot.slane %v4902, 1
      %v5118 = vsel %vm4030, %v5115, %v5117
      %v5119 = vrot.slane %v4903, 1
      %v5120 = vsel %vm4030, %v5117, %v5119
      %v5121 = vrot.slane %v4904, 1
      %v5122 = vsel %vm4030, %v5119, %v5121
      %v5123 = vrot.slane %v4905, 1
      %v5124 = vsel %vm4030, %v5121, %v5123
      %v5125 = vrot.slane %v4906, 1
      %v5126 = vsel %vm4030, %v5123, %v5125
      %v5127 = vrot.slane %v4907, 1
      %v5128 = vsel %vm4030, %v5125, %v5127
      %v5129 = vrot.slane %v4908, 1
      %v5130 = vsel %vm4030, %v5127, %v5129
      %v5131 = vrot.slane %v4909, 1
      %v5132 = vsel %vm4030, %v5129, %v5131
      %v5133 = vrot.slane %v4910, 1
      %v5134 = vsel %vm4030, %v5131, %v5133
      %v5135 = vrot.slane %v4911, 1
      %v5136 = vsel %vm4030, %v5133, %v5135
      %v5137 = vrot.slane %v4912, 1
      %v5138 = vsel %vm4030, %v5135, %v5137
      %v5139 = vrot.slane %v4913, 1
      %v5140 = vsel %vm4030, %v5137, %v5139
      %v5141 = vrot.slane %v4914, 1
      %v5142 = vsel %vm4030, %v5139, %v5141
      %v5143 = vrot.slane %v4915, 1
      %v5144 = vsel %vm4030, %v5141, %v5143
      %v5145 = vrot.slane %v4916, 1
      %v5146 = vsel %vm4030, %v5143, %v5145
      %v5147 = vrot.slane %v4917, 1
      %v5148 = vsel %vm4030, %v5145, %v5147
      %v5149 = vrot.slane %v4921, 1
      %v5150 = vsel %vm4030, %v5147, %v5149
      %5151 = vrot.lane.b32.xlu0 %v5116, 8
      %v5152 = vpop.permute.xlu0 %5151
      %5153 = vrot.lane.b32.xlu0 %v5118, 8
      %v5154 = vpop.permute.xlu0 %5153
      %5155 = vrot.lane.b32.xlu0 %v5120, 8
      %v5156 = vpop.permute.xlu0 %5155
      %5157 = vrot.lane.b32.xlu0 %v5122, 8
      %v5158 = vpop.permute.xlu0 %5157
      %5159 = vrot.lane.b32.xlu0 %v5124, 8
      %v5160 = vpop.permute.xlu0 %5159
      %5161 = vrot.lane.b32.xlu0 %v5126, 8
      %v5162 = vpop.permute.xlu0 %5161
      %5163 = vrot.lane.b32.xlu0 %v5128, 8
      %v5164 = vpop.permute.xlu0 %5163
      %5165 = vrot.lane.b32.xlu0 %v5130, 8
      %v5166 = vpop.permute.xlu0 %5165
      %5167 = vrot.lane.b32.xlu0 %v5132, 8
      %v5168 = vpop.permute.xlu0 %5167
      %5169 = vrot.lane.b32.xlu0 %v5134, 8
      %v5170 = vpop.permute.xlu0 %5169
      %5171 = vrot.lane.b32.xlu0 %v5136, 8
      %v5172 = vpop.permute.xlu0 %5171
      %5173 = vrot.lane.b32.xlu0 %v5138, 8
      %v5174 = vpop.permute.xlu0 %5173
      %5175 = vrot.lane.b32.xlu0 %v5140, 8
      %v5176 = vpop.permute.xlu0 %5175
      %5177 = vrot.lane.b32.xlu0 %v5142, 8
      %v5178 = vpop.permute.xlu0 %5177
      %5179 = vrot.lane.b32.xlu0 %v5144, 8
      %v5180 = vpop.permute.xlu0 %5179
      %5181 = vrot.lane.b32.xlu0 %v5146, 8
      %v5182 = vpop.permute.xlu0 %5181
      %5183 = vrot.lane.b32.xlu0 %v5148, 8
      %v5184 = vpop.permute.xlu0 %5183
      %5185 = vrot.lane.b32.xlu0 %v5150, 8
      %v5186 = vpop.permute.xlu0 %5185
      %5187 = vrot.lane.b32.xlu0 %v5149, 8
      %v5188 = vpop.permute.xlu0 %5187
      %v5190 = vsel %vm4104, %v4900, %v5074
      %v5192 = vsel %vm4104, %v4901, %v5076
      %v5194 = vsel %vm4104, %v4902, %v5078
      %v5196 = vsel %vm4104, %v4903, %v5080
      %v5198 = vsel %vm4104, %v4904, %v5082
      %v5200 = vsel %vm4104, %v4905, %v5084
      %v5202 = vsel %vm4104, %v4906, %v5086
      %v5204 = vsel %vm4104, %v4907, %v5088
      %v5206 = vsel %vm4104, %v4908, %v5090
      %v5208 = vsel %vm4104, %v4909, %v5092
      %v5210 = vsel %vm4104, %v4910, %v5094
      %v5212 = vsel %vm4104, %v4911, %v5096
      %v5214 = vsel %vm4104, %v4912, %v5098
      %v5216 = vsel %vm4104, %v4913, %v5100
      %v5218 = vsel %vm4104, %v4914, %v5102
      %v5220 = vsel %vm4104, %v4915, %v5104
      %v5222 = vsel %vm4104, %v4916, %v5106
      %v5224 = vsel %vm4104, %v4917, %v5108
      %v5227 = vsel %vm4104, %v4918, %v5110
      %v5229 = vsel %vm4141, %v5190, %v5152
      %v5231 = vsel %vm4141, %v5192, %v5154
      %v5233 = vsel %vm4141, %v5194, %v5156
      %v5235 = vsel %vm4141, %v5196, %v5158
      %v5237 = vsel %vm4141, %v5198, %v5160
      %v5239 = vsel %vm4141, %v5200, %v5162
      %v5241 = vsel %vm4141, %v5202, %v5164
      %v5243 = vsel %vm4141, %v5204, %v5166
      %v5245 = vsel %vm4141, %v5206, %v5168
      %v5247 = vsel %vm4141, %v5208, %v5170
      %v5249 = vsel %vm4141, %v5210, %v5172
      %v5251 = vsel %vm4141, %v5212, %v5174
      %v5253 = vsel %vm4141, %v5214, %v5176
      %v5255 = vsel %vm4141, %v5216, %v5178
      %v5257 = vsel %vm4141, %v5218, %v5180
      %v5259 = vsel %vm4141, %v5220, %v5182
      %v5261 = vsel %vm4141, %v5222, %v5184
      %v5263 = vsel %vm4141, %v5224, %v5186
      %v5265 = vsel %vm4141, %v5227, %v5188
      %s5266 = scalar_lea.vmem %s354, 16
      %v5267 = vld [vmem:[%s5266] sm:$0xf]
      %v5268 = vld [vmem:[%s5266 + $0x4] sm:$0x3]
      %vm5288 = vcmask 1045504
      %v5289 = vrot.slane %v5229, 2
      %v5290 = vrot.slane %v5231, 2
      %v5291 = vsel %vm5288, %v5289, %v5290
      %v5292 = vrot.slane %v5233, 2
      %v5293 = vsel %vm5288, %v5290, %v5292
      %v5294 = vrot.slane %v5235, 2
      %v5295 = vsel %vm5288, %v5292, %v5294
      %v5296 = vrot.slane %v5237, 2
      %v5297 = vsel %vm5288, %v5294, %v5296
      %v5298 = vrot.slane %v5239, 2
      %v5299 = vsel %vm5288, %v5296, %v5298
      %v5300 = vrot.slane %v5241, 2
      %v5301 = vsel %vm5288, %v5298, %v5300
      %v5302 = vrot.slane %v5243, 2
      %v5303 = vsel %vm5288, %v5300, %v5302
      %v5304 = vrot.slane %v5245, 2
      %v5305 = vsel %vm5288, %v5302, %v5304
      %v5306 = vrot.slane %v5247, 2
      %v5307 = vsel %vm5288, %v5304, %v5306
      %v5308 = vrot.slane %v5249, 2
      %v5309 = vsel %vm5288, %v5306, %v5308
      %v5310 = vrot.slane %v5251, 2
      %v5311 = vsel %vm5288, %v5308, %v5310
      %v5312 = vrot.slane %v5253, 2
      %v5313 = vsel %vm5288, %v5310, %v5312
      %v5314 = vrot.slane %v5255, 2
      %v5315 = vsel %vm5288, %v5312, %v5314
      %v5316 = vrot.slane %v5257, 2
      %v5317 = vsel %vm5288, %v5314, %v5316
      %v5318 = vrot.slane %v5259, 2
      %v5319 = vsel %vm5288, %v5316, %v5318
      %v5320 = vrot.slane %v5261, 2
      %v5321 = vsel %vm5288, %v5318, %v5320
      %v5322 = vrot.slane %v5263, 2
      %v5323 = vsel %vm5288, %v5320, %v5322
      %v5324 = vrot.slane %v5265, 2
      %v5325 = vsel %vm5288, %v5322, %v5324
      %v5328 = vunpack.c.l.b16 %v5267
      %v5329 = vunpack.c.l.b16 %v5268
      %v5330 = vpack.c.b16 %v5329, %v5328
      %v5332 = vsel %vm4330, %v5291, 0
      %v5335 = vsel %vm4330, %v5293, 0
      %v5338 = vsel %vm4330, %v5295, 0
      %v5341 = vsel %vm4330, %v5297, 0
      %v5344 = vsel %vm4330, %v5299, 0
      %v5347 = vsel %vm4330, %v5301, 0
      %v5350 = vsel %vm4330, %v5303, 0
      %v5353 = vsel %vm4330, %v5305, 0
      %v5356 = vsel %vm4330, %v5307, 0
      %v5359 = vsel %vm4330, %v5309, 0
      %v5362 = vsel %vm4330, %v5311, 0
      %v5365 = vsel %vm4330, %v5313, 0
      %v5368 = vsel %vm4330, %v5315, 0
      %v5371 = vsel %vm4330, %v5317, 0
      %v5374 = vsel %vm4330, %v5319, 0
      %v5377 = vsel %vm4330, %v5321, 0
      %v5380 = vsel %vm4330, %v5323, 0
      %v5383 = vsel %vm4330, %v5325, 0
      %v5386 = vsel %vm4385, %v5330, 0
      %5388 = vmatprep.subr.bf16.mxu0 0
      %5389 = vmatpush1.bf16.msra.mxu0 0
      %5390 = vmatprep.subr.bf16.mxu0 0
      %5391 = vmatpush1.bf16.msra.mxu0 0
      %5392 = vmatprep.subr.bf16.mxu0 0
      %5393 = vmatpush1.bf16.msra.mxu0 0
      %5394 = vmatprep.subr.bf16.mxu0 0
      %5395 = vmatpush1.bf16.msra.mxu0 0
      %5396 = vmatprep.subr.bf16.mxu0 0
      %5397 = vmatpush1.bf16.msra.mxu0 0
      %5398 = vmatprep.subr.bf16.mxu0 0
      %5399 = vmatpush1.bf16.msra.mxu0 0
      %5400 = vmatprep.subr.bf16.mxu0 0
      %5401 = vmatpush1.bf16.msra.mxu0 0
      %5402 = vmatprep.subr.bf16.mxu0 0
      %5403 = vmatpush1.bf16.msra.mxu0 %v5386
      %5404 = vmatprep.subr.bf16.mxu0 0
      %5405 = vmatpush2.bf16.msra.mxu0 0
      %5406 = vmatprep.subr.bf16.mxu0 0
      %5407 = vmatpush2.bf16.msra.mxu0 0
      %5408 = vmatprep.subr.bf16.mxu0 0
      %5409 = vmatpush2.bf16.msra.mxu0 0
      %5410 = vmatprep.subr.bf16.mxu0 0
      %5411 = vmatpush2.bf16.msra.mxu0 0
      %5412 = vmatprep.subr.bf16.mxu0 0
      %5413 = vmatpush2.bf16.msra.mxu0 0
      %5414 = vmatprep.subr.bf16.mxu0 0
      %5415 = vmatpush2.bf16.msra.mxu0 0
      %5416 = vmatprep.subr.bf16.mxu0 0
      %5417 = vmatpush2.bf16.msra.mxu0 0
      %5418 = vmatprep.subr.bf16.mxu0 0
      %5419 = vmatpush2.bf16.msra.mxu0 0
      %5420 = vmatprep.mubr.bf16.mxu0 0
      %5421 = vmatmul.mubr.bf16.gmra.mxu0 %v5332
      %v5422 = vpop.f32.mrf.mxu0
      %v5423 = vadd.f32 0.0, %v5422
      %v5424 = vpop.f32.mrf.mxu0
      %v5425 = vpop.f32.mrf.mxu0
      %v5426 = vadd.f32 0.0, %v5425
      %v5427 = vpop.f32.mrf.mxu0
      %5428 = vmatprep.mubr.bf16.mxu0 0
      %5429 = vmatmul.mubr.bf16.gmra.mxu0 %v5335
      %v5430 = vpop.f32.mrf.mxu0
      %v5431 = vadd.f32 0.0, %v5430
      %v5432 = vpop.f32.mrf.mxu0
      %v5433 = vpop.f32.mrf.mxu0
      %v5434 = vadd.f32 0.0, %v5433
      %v5435 = vpop.f32.mrf.mxu0
      %5436 = vmatprep.mubr.bf16.mxu0 0
      %5437 = vmatmul.mubr.bf16.gmra.mxu0 %v5338
      %v5438 = vpop.f32.mrf.mxu0
      %v5439 = vadd.f32 0.0, %v5438
      %v5440 = vpop.f32.mrf.mxu0
      %v5441 = vpop.f32.mrf.mxu0
      %v5442 = vadd.f32 0.0, %v5441
      %v5443 = vpop.f32.mrf.mxu0
      %5444 = vmatprep.mubr.bf16.mxu0 0
      %5445 = vmatmul.mubr.bf16.gmra.mxu0 %v5341
      %v5446 = vpop.f32.mrf.mxu0
      %v5447 = vadd.f32 0.0, %v5446
      %v5448 = vpop.f32.mrf.mxu0
      %v5449 = vpop.f32.mrf.mxu0
      %v5450 = vadd.f32 0.0, %v5449
      %v5451 = vpop.f32.mrf.mxu0
      %5452 = vmatprep.mubr.bf16.mxu0 0
      %5453 = vmatmul.mubr.bf16.gmra.mxu0 %v5344
      %v5454 = vpop.f32.mrf.mxu0
      %v5455 = vadd.f32 0.0, %v5454
      %v5456 = vpop.f32.mrf.mxu0
      %v5457 = vpop.f32.mrf.mxu0
      %v5458 = vadd.f32 0.0, %v5457
      %v5459 = vpop.f32.mrf.mxu0
      %5460 = vmatprep.mubr.bf16.mxu0 0
      %5461 = vmatmul.mubr.bf16.gmra.mxu0 %v5347
      %v5462 = vpop.f32.mrf.mxu0
      %v5463 = vadd.f32 0.0, %v5462
      %v5464 = vpop.f32.mrf.mxu0
      %v5465 = vpop.f32.mrf.mxu0
      %v5466 = vadd.f32 0.0, %v5465
      %v5467 = vpop.f32.mrf.mxu0
      %5468 = vmatprep.mubr.bf16.mxu0 0
      %5469 = vmatmul.mubr.bf16.gmra.mxu0 %v5350
      %v5470 = vpop.f32.mrf.mxu0
      %v5471 = vadd.f32 0.0, %v5470
      %v5472 = vpop.f32.mrf.mxu0
      %v5473 = vpop.f32.mrf.mxu0
      %v5474 = vadd.f32 0.0, %v5473
      %v5475 = vpop.f32.mrf.mxu0
      %5476 = vmatprep.mubr.bf16.mxu0 0
      %5477 = vmatmul.mubr.bf16.gmra.mxu0 %v5353
      %v5478 = vpop.f32.mrf.mxu0
      %v5479 = vadd.f32 0.0, %v5478
      %v5480 = vpop.f32.mrf.mxu0
      %v5481 = vpop.f32.mrf.mxu0
      %v5482 = vadd.f32 0.0, %v5481
      %v5483 = vpop.f32.mrf.mxu0
      %5484 = vmatprep.mubr.bf16.mxu0 0
      %5485 = vmatmul.mubr.bf16.gmra.mxu0 %v5356
      %v5486 = vpop.f32.mrf.mxu0
      %v5487 = vadd.f32 0.0, %v5486
      %v5488 = vpop.f32.mrf.mxu0
      %v5489 = vpop.f32.mrf.mxu0
      %v5490 = vadd.f32 0.0, %v5489
      %v5491 = vpop.f32.mrf.mxu0
      %5492 = vmatprep.mubr.bf16.mxu0 0
      %5493 = vmatmul.mubr.bf16.gmra.mxu0 %v5359
      %v5494 = vpop.f32.mrf.mxu0
      %v5495 = vadd.f32 0.0, %v5494
      %v5496 = vpop.f32.mrf.mxu0
      %v5497 = vpop.f32.mrf.mxu0
      %v5498 = vadd.f32 0.0, %v5497
      %v5499 = vpop.f32.mrf.mxu0
      %5500 = vmatprep.mubr.bf16.mxu0 0
      %5501 = vmatmul.mubr.bf16.gmra.mxu0 %v5362
      %v5502 = vpop.f32.mrf.mxu0
      %v5503 = vadd.f32 0.0, %v5502
      %v5504 = vpop.f32.mrf.mxu0
      %v5505 = vpop.f32.mrf.mxu0
      %v5506 = vadd.f32 0.0, %v5505
      %v5507 = vpop.f32.mrf.mxu0
      %5508 = vmatprep.mubr.bf16.mxu0 0
      %5509 = vmatmul.mubr.bf16.gmra.mxu0 %v5365
      %v5510 = vpop.f32.mrf.mxu0
      %v5511 = vadd.f32 0.0, %v5510
      %v5512 = vpop.f32.mrf.mxu0
      %v5513 = vpop.f32.mrf.mxu0
      %v5514 = vadd.f32 0.0, %v5513
      %v5515 = vpop.f32.mrf.mxu0
      %5516 = vmatprep.mubr.bf16.mxu0 0
      %5517 = vmatmul.mubr.bf16.gmra.mxu0 %v5368
      %v5518 = vpop.f32.mrf.mxu0
      %v5519 = vadd.f32 0.0, %v5518
      %v5520 = vpop.f32.mrf.mxu0
      %v5521 = vpop.f32.mrf.mxu0
      %v5522 = vadd.f32 0.0, %v5521
      %v5523 = vpop.f32.mrf.mxu0
      %5524 = vmatprep.mubr.bf16.mxu0 0
      %5525 = vmatmul.mubr.bf16.gmra.mxu0 %v5371
      %v5526 = vpop.f32.mrf.mxu0
      %v5527 = vadd.f32 0.0, %v5526
      %v5528 = vpop.f32.mrf.mxu0
      %v5529 = vpop.f32.mrf.mxu0
      %v5530 = vadd.f32 0.0, %v5529
      %v5531 = vpop.f32.mrf.mxu0
      %5532 = vmatprep.mubr.bf16.mxu0 0
      %5533 = vmatmul.mubr.bf16.gmra.mxu0 %v5374
      %v5534 = vpop.f32.mrf.mxu0
      %v5535 = vadd.f32 0.0, %v5534
      %v5536 = vpop.f32.mrf.mxu0
      %v5537 = vpop.f32.mrf.mxu0
      %v5538 = vadd.f32 0.0, %v5537
      %v5539 = vpop.f32.mrf.mxu0
      %5540 = vmatprep.mubr.bf16.mxu0 0
      %5541 = vmatmul.mubr.bf16.gmra.mxu0 %v5377
      %v5542 = vpop.f32.mrf.mxu0
      %v5543 = vadd.f32 0.0, %v5542
      %v5544 = vpop.f32.mrf.mxu0
      %v5545 = vpop.f32.mrf.mxu0
      %v5546 = vadd.f32 0.0, %v5545
      %v5547 = vpop.f32.mrf.mxu0
      %5548 = vmatprep.mubr.bf16.mxu0 0
      %5549 = vmatmul.mubr.bf16.gmra.mxu0 %v5380
      %v5550 = vpop.f32.mrf.mxu0
      %v5551 = vadd.f32 0.0, %v5550
      %v5552 = vpop.f32.mrf.mxu0
      %v5553 = vpop.f32.mrf.mxu0
      %v5554 = vadd.f32 0.0, %v5553
      %v5555 = vpop.f32.mrf.mxu0
      %5556 = vmatprep.mubr.bf16.mxu0 0
      %5557 = vmatmul.mubr.bf16.gmra.mxu0 %v5383
      %v5558 = vpop.f32.mrf.mxu0
      %v5559 = vadd.f32 0.0, %v5558
      %v5560 = vpop.f32.mrf.mxu0
      %v5561 = vpop.f32.mrf.mxu0
      %v5562 = vadd.f32 0.0, %v5561
      %v5563 = vpop.f32.mrf.mxu0
      %5564 = vdwg.mxu0
      %v5565 = vadd.f32 %v4645, %v5423
      %v5566 = vadd.f32 %v4648, %v5426
      %v5567 = vadd.f32 %v4653, %v5431
      %v5568 = vadd.f32 %v4656, %v5434
      %v5569 = vadd.f32 %v4661, %v5439
      %v5570 = vadd.f32 %v4664, %v5442
      %v5571 = vadd.f32 %v4669, %v5447
      %v5572 = vadd.f32 %v4672, %v5450
      %v5573 = vadd.f32 %v4677, %v5455
      %v5574 = vadd.f32 %v4680, %v5458
      %v5575 = vadd.f32 %v4685, %v5463
      %v5576 = vadd.f32 %v4688, %v5466
      %v5577 = vadd.f32 %v4693, %v5471
      %v5578 = vadd.f32 %v4696, %v5474
      %v5579 = vadd.f32 %v4701, %v5479
      %v5580 = vadd.f32 %v4704, %v5482
      %v5581 = vadd.f32 %v4709, %v5487
      %v5582 = vadd.f32 %v4712, %v5490
      %v5583 = vadd.f32 %v4717, %v5495
      %v5584 = vadd.f32 %v4720, %v5498
      %v5585 = vadd.f32 %v4725, %v5503
      %v5586 = vadd.f32 %v4728, %v5506
      %v5587 = vadd.f32 %v4733, %v5511
      %v5588 = vadd.f32 %v4736, %v5514
      %v5589 = vadd.f32 %v4741, %v5519
      %v5590 = vadd.f32 %v4744, %v5522
      %v5591 = vadd.f32 %v4749, %v5527
      %v5592 = vadd.f32 %v4752, %v5530
      %v5593 = vadd.f32 %v4757, %v5535
      %v5594 = vadd.f32 %v4760, %v5538
      %v5595 = vadd.f32 %v4765, %v5543
      %v5596 = vadd.f32 %v4768, %v5546
      %v5597 = vadd.f32 %v4773, %v5551
      %v5598 = vadd.f32 %v4776, %v5554
      %v5599 = vadd.f32 %v4781, %v5559
      %v5600 = vadd.f32 %v4784, %v5562
      %v5601 = vld [vmem:[%s357] sm:$0x1]
      %v5603 = vlaneseq
      %v5604 = vshrl.u32 %v5603, 7
      %v5605 = vsub.s32 0, %v5604
      %v5606 = vrot.slane %v5601, %v5605
      %v5608 = vadd.f32 %v5565, %v5606
      %v5609 = vadd.f32 %v5566, %v5606
      %v5610 = vadd.f32 %v5567, %v5606
      %v5611 = vadd.f32 %v5568, %v5606
      %v5612 = vadd.f32 %v5569, %v5606
      %v5613 = vadd.f32 %v5570, %v5606
      %v5614 = vadd.f32 %v5571, %v5606
      %v5615 = vadd.f32 %v5572, %v5606
      %v5616 = vadd.f32 %v5573, %v5606
      %v5617 = vadd.f32 %v5574, %v5606
      %v5618 = vadd.f32 %v5575, %v5606
      %v5619 = vadd.f32 %v5576, %v5606
      %v5620 = vadd.f32 %v5577, %v5606
      %v5621 = vadd.f32 %v5578, %v5606
      %v5622 = vadd.f32 %v5579, %v5606
      %v5623 = vadd.f32 %v5580, %v5606
      %v5624 = vadd.f32 %v5581, %v5606
      %v5625 = vadd.f32 %v5582, %v5606
      %v5626 = vadd.f32 %v5583, %v5606
      %v5627 = vadd.f32 %v5584, %v5606
      %v5628 = vadd.f32 %v5585, %v5606
      %v5629 = vadd.f32 %v5586, %v5606
      %v5630 = vadd.f32 %v5587, %v5606
      %v5631 = vadd.f32 %v5588, %v5606
      %v5632 = vadd.f32 %v5589, %v5606
      %v5633 = vadd.f32 %v5590, %v5606
      %v5634 = vadd.f32 %v5591, %v5606
      %v5635 = vadd.f32 %v5592, %v5606
      %v5636 = vadd.f32 %v5593, %v5606
      %v5637 = vadd.f32 %v5594, %v5606
      %v5638 = vadd.f32 %v5595, %v5606
      %v5639 = vadd.f32 %v5596, %v5606
      %v5640 = vadd.f32 %v5597, %v5606
      %v5641 = vadd.f32 %v5598, %v5606
      %v5642 = vadd.f32 %v5599, %v5606
      %v5643 = vadd.f32 %v5600, %v5606
      %v5644 = vld [vmem:[%s365] sm:$0xf]
      %v5645 = vld [vmem:[%s365 + $0x4] sm:$0xf]
      %v5646 = vld [vmem:[%s365 + $0x8] sm:$0xf]
      %v5647 = vld [vmem:[%s365 + $0xc] sm:$0xf]
      %v5648 = vld [vmem:[%s365 + $0x10] sm:$0xf]
      %v5649 = vld [vmem:[%s365 + $0x14] sm:$0xf]
      %v5650 = vld [vmem:[%s365 + $0x18] sm:$0xf]
      %v5651 = vld [vmem:[%s365 + $0x1c] sm:$0xf]
      %v5652 = vld [vmem:[%s365 + $0x20] sm:$0xf]
      %v5653 = vld [vmem:[%s365 + $0x24] sm:$0xf]
      %v5654 = vld [vmem:[%s365 + $0x28] sm:$0xf]
      %v5655 = vld [vmem:[%s365 + $0x2c] sm:$0xf]
      %v5656 = vld [vmem:[%s365 + $0x30] sm:$0xf]
      %v5657 = vld [vmem:[%s365 + $0x34] sm:$0xf]
      %v5658 = vld [vmem:[%s365 + $0x38] sm:$0xf]
      %v5659 = vld [vmem:[%s365 + $0x3c] sm:$0xf]
      %v5660 = vld [vmem:[%s365 + $0x40] sm:$0xf]
      %v5661 = vld [vmem:[%s365 + $0x44] sm:$0xf]
      %v5662 = vld [vmem:[%s365 + $0x48] sm:$0xf]
      %v5663 = vld [vmem:[%s365 + $0x4c] sm:$0xf]
      %v5664 = vld [vmem:[%s365 + $0x50] sm:$0xf]
      %v5665 = vld [vmem:[%s365 + $0x54] sm:$0xf]
      %v5666 = vld [vmem:[%s365 + $0x58] sm:$0xf]
      %v5667 = vld [vmem:[%s365 + $0x5c] sm:$0xf]
      %v5668 = vld [vmem:[%s365 + $0x60] sm:$0xf]
      %v5669 = vld [vmem:[%s365 + $0x64] sm:$0xf]
      %v5670 = vld [vmem:[%s365 + $0x68] sm:$0xf]
      %v5671 = vld [vmem:[%s365 + $0x6c] sm:$0xf]
      %v5672 = vld [vmem:[%s365 + $0x70] sm:$0xf]
      %v5673 = vld [vmem:[%s365 + $0x74] sm:$0xf]
      %v5674 = vld [vmem:[%s365 + $0x78] sm:$0xf]
      %v5675 = vld [vmem:[%s365 + $0x7c] sm:$0xf]
      %v5676 = vld [vmem:[%s365 + $0x80] sm:$0xf]
      %v5677 = vld [vmem:[%s365 + $0x84] sm:$0xf]
      %v5678 = vld [vmem:[%s365 + $0x88] sm:$0xf]
      %v5679 = vld [vmem:[%s365 + $0x8c] sm:$0xf]
      %v5680 = vunpack.c.l.bf16 %v5644
      %v5681 = vunpack.c.l.bf16 %v5645
      %v5682 = vunpack.c.l.bf16 %v5646
      %v5683 = vunpack.c.l.bf16 %v5647
      %v5684 = vunpack.c.l.bf16 %v5648
      %v5685 = vunpack.c.l.bf16 %v5649
      %v5686 = vunpack.c.l.bf16 %v5650
      %v5687 = vunpack.c.l.bf16 %v5651
      %v5688 = vunpack.c.l.bf16 %v5652
      %v5689 = vunpack.c.l.bf16 %v5653
      %v5690 = vunpack.c.l.bf16 %v5654
      %v5691 = vunpack.c.l.bf16 %v5655
      %v5692 = vunpack.c.l.bf16 %v5656
      %v5693 = vunpack.c.l.bf16 %v5657
      %v5694 = vunpack.c.l.bf16 %v5658
      %v5695 = vunpack.c.l.bf16 %v5659
      %v5696 = vunpack.c.l.bf16 %v5660
      %v5697 = vunpack.c.l.bf16 %v5661
      %v5698 = vunpack.c.l.bf16 %v5662
      %v5699 = vunpack.c.l.bf16 %v5663
      %v5700 = vunpack.c.l.bf16 %v5664
      %v5701 = vunpack.c.l.bf16 %v5665
      %v5702 = vunpack.c.l.bf16 %v5666
      %v5703 = vunpack.c.l.bf16 %v5667
      %v5704 = vunpack.c.l.bf16 %v5668
      %v5705 = vunpack.c.l.bf16 %v5669
      %v5706 = vunpack.c.l.bf16 %v5670
      %v5707 = vunpack.c.l.bf16 %v5671
      %v5708 = vunpack.c.l.bf16 %v5672
      %v5709 = vunpack.c.l.bf16 %v5673
      %v5710 = vunpack.c.l.bf16 %v5674
      %v5711 = vunpack.c.l.bf16 %v5675
      %v5712 = vunpack.c.l.bf16 %v5676
      %v5713 = vunpack.c.l.bf16 %v5677
      %v5714 = vunpack.c.l.bf16 %v5678
      %v5715 = vunpack.c.l.bf16 %v5679
      %v5716 = vadd.f32 %v5608, %v5680
      %v5717 = vadd.f32 %v5609, %v5681
      %v5718 = vadd.f32 %v5610, %v5682
      %v5719 = vadd.f32 %v5611, %v5683
      %v5720 = vadd.f32 %v5612, %v5684
      %v5721 = vadd.f32 %v5613, %v5685
      %v5722 = vadd.f32 %v5614, %v5686
      %v5723 = vadd.f32 %v5615, %v5687
      %v5724 = vadd.f32 %v5616, %v5688
      %v5725 = vadd.f32 %v5617, %v5689
      %v5726 = vadd.f32 %v5618, %v5690
      %v5727 = vadd.f32 %v5619, %v5691
      %v5728 = vadd.f32 %v5620, %v5692
      %v5729 = vadd.f32 %v5621, %v5693
      %v5730 = vadd.f32 %v5622, %v5694
      %v5731 = vadd.f32 %v5623, %v5695
      %v5732 = vadd.f32 %v5624, %v5696
      %v5733 = vadd.f32 %v5625, %v5697
      %v5734 = vadd.f32 %v5626, %v5698
      %v5735 = vadd.f32 %v5627, %v5699
      %v5736 = vadd.f32 %v5628, %v5700
      %v5737 = vadd.f32 %v5629, %v5701
      %v5738 = vadd.f32 %v5630, %v5702
      %v5739 = vadd.f32 %v5631, %v5703
      %v5740 = vadd.f32 %v5632, %v5704
      %v5741 = vadd.f32 %v5633, %v5705
      %v5742 = vadd.f32 %v5634, %v5706
      %v5743 = vadd.f32 %v5635, %v5707
      %v5744 = vadd.f32 %v5636, %v5708
      %v5745 = vadd.f32 %v5637, %v5709
      %v5746 = vadd.f32 %v5638, %v5710
      %v5747 = vadd.f32 %v5639, %v5711
      %v5748 = vadd.f32 %v5640, %v5712
      %v5749 = vadd.f32 %v5641, %v5713
      %v5750 = vadd.f32 %v5642, %v5714
      %v5751 = vadd.f32 %v5643, %v5715
      %5752 = vst.msk [vmem:[%s381] sm:$0xff] %vm4104, %v5716
      %5753 = vst.msk [vmem:[%s381 + $0x8] sm:$0xff] %vm4104, %v5717
      %5754 = vst.msk [vmem:[%s381 + $0x10] sm:$0xff] %vm4104, %v5718
      %5755 = vst.msk [vmem:[%s381 + $0x18] sm:$0xff] %vm4104, %v5719
      %5756 = vst.msk [vmem:[%s381 + $0x20] sm:$0xff] %vm4104, %v5720
      %5757 = vst.msk [vmem:[%s381 + $0x28] sm:$0xff] %vm4104, %v5721
      %5758 = vst.msk [vmem:[%s381 + $0x30] sm:$0xff] %vm4104, %v5722
      %5759 = vst.msk [vmem:[%s381 + $0x38] sm:$0xff] %vm4104, %v5723
      %5760 = vst.msk [vmem:[%s381 + $0x40] sm:$0xff] %vm4104, %v5724
      %5761 = vst.msk [vmem:[%s381 + $0x48] sm:$0xff] %vm4104, %v5725
      %5762 = vst.msk [vmem:[%s381 + $0x50] sm:$0xff] %vm4104, %v5726
      %5763 = vst.msk [vmem:[%s381 + $0x58] sm:$0xff] %vm4104, %v5727
      %5764 = vst.msk [vmem:[%s381 + $0x60] sm:$0xff] %vm4104, %v5728
      %5765 = vst.msk [vmem:[%s381 + $0x68] sm:$0xff] %vm4104, %v5729
      %5766 = vst.msk [vmem:[%s381 + $0x70] sm:$0xff] %vm4104, %v5730
      %5767 = vst.msk [vmem:[%s381 + $0x78] sm:$0xff] %vm4104, %v5731
      %5768 = vst.msk [vmem:[%s381 + $0x80] sm:$0xff] %vm4104, %v5732
      %5769 = vst.msk [vmem:[%s381 + $0x88] sm:$0xff] %vm4104, %v5733
      %5770 = vst.msk [vmem:[%s381 + $0x90] sm:$0xff] %vm4104, %v5734
      %5771 = vst.msk [vmem:[%s381 + $0x98] sm:$0xff] %vm4104, %v5735
      %5772 = vst.msk [vmem:[%s381 + $0xa0] sm:$0xff] %vm4104, %v5736
      %5773 = vst.msk [vmem:[%s381 + $0xa8] sm:$0xff] %vm4104, %v5737
      %5774 = vst.msk [vmem:[%s381 + $0xb0] sm:$0xff] %vm4104, %v5738
      %5775 = vst.msk [vmem:[%s381 + $0xb8] sm:$0xff] %vm4104, %v5739
      %5776 = vst.msk [vmem:[%s381 + $0xc0] sm:$0xff] %vm4104, %v5740
      %5777 = vst.msk [vmem:[%s381 + $0xc8] sm:$0xff] %vm4104, %v5741
      %5778 = vst.msk [vmem:[%s381 + $0xd0] sm:$0xff] %vm4104, %v5742
      %5779 = vst.msk [vmem:[%s381 + $0xd8] sm:$0xff] %vm4104, %v5743
      %5780 = vst.msk [vmem:[%s381 + $0xe0] sm:$0xff] %vm4104, %v5744
      %5781 = vst.msk [vmem:[%s381 + $0xe8] sm:$0xff] %vm4104, %v5745
      %5782 = vst.msk [vmem:[%s381 + $0xf0] sm:$0xff] %vm4104, %v5746
      %5783 = vst.msk [vmem:[%s381 + $0xf8] sm:$0xff] %vm4104, %v5747
      %5784 = vst.msk [vmem:[%s381 + $0x100] sm:$0xff] %vm4104, %v5748
      %5785 = vst.msk [vmem:[%s381 + $0x108] sm:$0xff] %vm4104, %v5749
      %5786 = vst.msk [vmem:[%s381 + $0x110] sm:$0xff] %vm4104, %v5750
      %5787 = vst.msk [vmem:[%s381 + $0x118] sm:$0xff] %vm4104, %v5751
      %v5788 = vmax.f32 %v5716, 0.0
      %v5789 = vmax.f32 %v5717, 0.0
      %v5790 = vmax.f32 %v5718, 0.0
      %v5791 = vmax.f32 %v5719, 0.0
      %v5792 = vmax.f32 %v5720, 0.0
      %v5793 = vmax.f32 %v5721, 0.0
      %v5794 = vmax.f32 %v5722, 0.0
      %v5795 = vmax.f32 %v5723, 0.0
      %v5796 = vmax.f32 %v5724, 0.0
      %v5797 = vmax.f32 %v5725, 0.0
      %v5798 = vmax.f32 %v5726, 0.0
      %v5799 = vmax.f32 %v5727, 0.0
      %v5800 = vmax.f32 %v5728, 0.0
      %v5801 = vmax.f32 %v5729, 0.0
      %v5802 = vmax.f32 %v5730, 0.0
      %v5803 = vmax.f32 %v5731, 0.0
      %v5804 = vmax.f32 %v5732, 0.0
      %v5805 = vmax.f32 %v5733, 0.0
      %v5806 = vmax.f32 %v5734, 0.0
      %v5807 = vmax.f32 %v5735, 0.0
      %v5808 = vmax.f32 %v5736, 0.0
      %v5809 = vmax.f32 %v5737, 0.0
      %v5810 = vmax.f32 %v5738, 0.0
      %v5811 = vmax.f32 %v5739, 0.0
      %v5812 = vmax.f32 %v5740, 0.0
      %v5813 = vmax.f32 %v5741, 0.0
      %v5814 = vmax.f32 %v5742, 0.0
      %v5815 = vmax.f32 %v5743, 0.0
      %v5816 = vmax.f32 %v5744, 0.0
      %v5817 = vmax.f32 %v5745, 0.0
      %v5818 = vmax.f32 %v5746, 0.0
      %v5819 = vmax.f32 %v5747, 0.0
      %v5820 = vmax.f32 %v5748, 0.0
      %v5821 = vmax.f32 %v5749, 0.0
      %v5822 = vmax.f32 %v5750, 0.0
      %v5823 = vmax.f32 %v5751, 0.0
      %v5824 = vpack.c.bf16 %v5789, %v5788
      %v5825 = vpack.c.bf16 %v5791, %v5790
      %v5826 = vpack.c.bf16 %v5793, %v5792
      %v5827 = vpack.c.bf16 %v5795, %v5794
      %v5828 = vpack.c.bf16 %v5797, %v5796
      %v5829 = vpack.c.bf16 %v5799, %v5798
      %v5830 = vpack.c.bf16 %v5801, %v5800
      %v5831 = vpack.c.bf16 %v5803, %v5802
      %v5832 = vpack.c.bf16 %v5805, %v5804
      %v5833 = vpack.c.bf16 %v5807, %v5806
      %v5834 = vpack.c.bf16 %v5809, %v5808
      %v5835 = vpack.c.bf16 %v5811, %v5810
      %v5836 = vpack.c.bf16 %v5813, %v5812
      %v5837 = vpack.c.bf16 %v5815, %v5814
      %v5838 = vpack.c.bf16 %v5817, %v5816
      %v5839 = vpack.c.bf16 %v5819, %v5818
      %v5840 = vpack.c.bf16 %v5821, %v5820
      %v5841 = vpack.c.bf16 %v5823, %v5822
      %v5860 = vunpack.c.l.b16 %v5824
      %v5861 = vunpack.c.h.b16 %v5824
      %v5862 = vunpack.c.l.b16 %v5825
      %v5863 = vunpack.c.h.b16 %v5825
      %v5864 = vunpack.c.l.b16 %v5826
      %v5865 = vunpack.c.h.b16 %v5826
      %v5866 = vunpack.c.l.b16 %v5827
      %v5867 = vunpack.c.h.b16 %v5827
      %v5868 = vunpack.c.l.b16 %v5828
      %v5869 = vunpack.c.h.b16 %v5828
      %v5870 = vunpack.c.l.b16 %v5829
      %v5871 = vunpack.c.h.b16 %v5829
      %v5872 = vunpack.c.l.b16 %v5830
      %v5873 = vunpack.c.h.b16 %v5830
      %v5874 = vunpack.c.l.b16 %v5831
      %v5875 = vunpack.c.h.b16 %v5831
      %v5876 = vunpack.c.l.b16 %v5832
      %v5877 = vunpack.c.h.b16 %v5832
      %v5878 = vunpack.c.l.b16 %v5833
      %v5879 = vunpack.c.h.b16 %v5833
      %v5880 = vunpack.c.l.b16 %v5834
      %v5881 = vunpack.c.h.b16 %v5834
      %v5882 = vunpack.c.l.b16 %v5835
      %v5883 = vunpack.c.h.b16 %v5835
      %v5884 = vunpack.c.l.b16 %v5836
      %v5885 = vunpack.c.h.b16 %v5836
      %v5886 = vunpack.c.l.b16 %v5837
      %v5887 = vunpack.c.h.b16 %v5837
      %v5888 = vunpack.c.l.b16 %v5838
      %v5889 = vunpack.c.h.b16 %v5838
      %v5890 = vunpack.c.l.b16 %v5839
      %v5891 = vunpack.c.h.b16 %v5839
      %v5892 = vunpack.c.l.b16 %v5840
      %v5893 = vunpack.c.h.b16 %v5840
      %v5894 = vunpack.c.l.b16 %v5841
      %v5895 = vunpack.c.h.b16 %v5841
      %v5896 = vpack.c.b16 %v5860, %v5860
      %v5897 = vpack.c.b16 %v5861, %v5861
      %v5898 = vpack.c.b16 %v5862, %v5862
      %v5899 = vpack.c.b16 %v5863, %v5863
      %v5900 = vpack.c.b16 %v5864, %v5864
      %v5901 = vpack.c.b16 %v5865, %v5865
      %v5902 = vpack.c.b16 %v5866, %v5866
      %v5903 = vpack.c.b16 %v5867, %v5867
      %v5904 = vpack.c.b16 %v5868, %v5868
      %v5905 = vpack.c.b16 %v5869, %v5869
      %v5906 = vpack.c.b16 %v5870, %v5870
      %v5907 = vpack.c.b16 %v5871, %v5871
      %v5908 = vpack.c.b16 %v5872, %v5872
      %v5909 = vpack.c.b16 %v5873, %v5873
      %v5910 = vpack.c.b16 %v5874, %v5874
      %v5911 = vpack.c.b16 %v5875, %v5875
      %v5912 = vpack.c.b16 %v5876, %v5876
      %v5913 = vpack.c.b16 %v5877, %v5877
      %v5914 = vpack.c.b16 %v5878, %v5878
      %v5915 = vpack.c.b16 %v5879, %v5879
      %v5916 = vpack.c.b16 %v5880, %v5880
      %v5917 = vpack.c.b16 %v5881, %v5881
      %v5918 = vpack.c.b16 %v5882, %v5882
      %v5919 = vpack.c.b16 %v5883, %v5883
      %v5920 = vpack.c.b16 %v5884, %v5884
      %v5921 = vpack.c.b16 %v5885, %v5885
      %v5922 = vpack.c.b16 %v5886, %v5886
      %v5923 = vpack.c.b16 %v5887, %v5887
      %v5924 = vpack.c.b16 %v5888, %v5888
      %v5925 = vpack.c.b16 %v5889, %v5889
      %v5926 = vpack.c.b16 %v5890, %v5890
      %v5927 = vpack.c.b16 %v5891, %v5891
      %v5928 = vpack.c.b16 %v5892, %v5892
      %v5929 = vpack.c.b16 %v5893, %v5893
      %v5930 = vpack.c.b16 %v5894, %v5894
      %v5931 = vpack.c.b16 %v5895, %v5895
      %vm5968 = vcmask 27648
      %5969 = vst.msk [vmem:[%s373] sm:$0xf] %vm5968, %v5896
      %5970 = vst.msk [vmem:[%s373 + $0x4] sm:$0xf] %vm5968, %v5897
      %5971 = vst.msk [vmem:[%s373 + $0x8] sm:$0xf] %vm5968, %v5898
      %5972 = vst.msk [vmem:[%s373 + $0xc] sm:$0xf] %vm5968, %v5899
      %5973 = vst.msk [vmem:[%s373 + $0x10] sm:$0xf] %vm5968, %v5900
      %5974 = vst.msk [vmem:[%s373 + $0x14] sm:$0xf] %vm5968, %v5901
      %5975 = vst.msk [vmem:[%s373 + $0x18] sm:$0xf] %vm5968, %v5902
      %5976 = vst.msk [vmem:[%s373 + $0x1c] sm:$0xf] %vm5968, %v5903
      %5977 = vst.msk [vmem:[%s373 + $0x20] sm:$0xf] %vm5968, %v5904
      %5978 = vst.msk [vmem:[%s373 + $0x24] sm:$0xf] %vm5968, %v5905
      %5979 = vst.msk [vmem:[%s373 + $0x28] sm:$0xf] %vm5968, %v5906
      %5980 = vst.msk [vmem:[%s373 + $0x2c] sm:$0xf] %vm5968, %v5907
      %5981 = vst.msk [vmem:[%s373 + $0x30] sm:$0xf] %vm5968, %v5908
      %5982 = vst.msk [vmem:[%s373 + $0x34] sm:$0xf] %vm5968, %v5909
      %5983 = vst.msk [vmem:[%s373 + $0x38] sm:$0xf] %vm5968, %v5910
      %5984 = vst.msk [vmem:[%s373 + $0x3c] sm:$0xf] %vm5968, %v5911
      %5985 = vst.msk [vmem:[%s373 + $0x40] sm:$0xf] %vm5968, %v5912
      %5986 = vst.msk [vmem:[%s373 + $0x44] sm:$0xf] %vm5968, %v5913
      %5987 = vst.msk [vmem:[%s373 + $0x48] sm:$0xf] %vm5968, %v5914
      %5988 = vst.msk [vmem:[%s373 + $0x4c] sm:$0xf] %vm5968, %v5915
      %5989 = vst.msk [vmem:[%s373 + $0x50] sm:$0xf] %vm5968, %v5916
      %5990 = vst.msk [vmem:[%s373 + $0x54] sm:$0xf] %vm5968, %v5917
      %5991 = vst.msk [vmem:[%s373 + $0x58] sm:$0xf] %vm5968, %v5918
      %5992 = vst.msk [vmem:[%s373 + $0x5c] sm:$0xf] %vm5968, %v5919
      %5993 = vst.msk [vmem:[%s373 + $0x60] sm:$0xf] %vm5968, %v5920
      %5994 = vst.msk [vmem:[%s373 + $0x64] sm:$0xf] %vm5968, %v5921
      %5995 = vst.msk [vmem:[%s373 + $0x68] sm:$0xf] %vm5968, %v5922
      %5996 = vst.msk [vmem:[%s373 + $0x6c] sm:$0xf] %vm5968, %v5923
      %5997 = vst.msk [vmem:[%s373 + $0x70] sm:$0xf] %vm5968, %v5924
      %5998 = vst.msk [vmem:[%s373 + $0x74] sm:$0xf] %vm5968, %v5925
      %5999 = vst.msk [vmem:[%s373 + $0x78] sm:$0xf] %vm5968, %v5926
      %6000 = vst.msk [vmem:[%s373 + $0x7c] sm:$0xf] %vm5968, %v5927
      %6001 = vst.msk [vmem:[%s373 + $0x80] sm:$0xf] %vm5968, %v5928
      %6002 = vst.msk [vmem:[%s373 + $0x84] sm:$0xf] %vm5968, %v5929
      %6003 = vst.msk [vmem:[%s373 + $0x88] sm:$0xf] %vm5968, %v5930
      %6004 = vst.msk [vmem:[%s373 + $0x8c] sm:$0xf] %vm5968, %v5931
      %p6005 = scmp.lt.s32.totalorder %s23, 1
      %s6006 = scalar_select %p6005, %s23, 1
      %p6007 = scmp.lt.s32.totalorder %s24, 0
      %s6008 = scalar_select %p6007, %s24, 0
      %s6009 = smul.addr %s6006, 36
      %s6010 = sadd.s32 %s6008, %s6009
      %s6011 = smul.addr %s6010, 4
      %s6012 = scalar_lea.vmem %s6, %s6011
      %p6013 = scmp.lt.s32.totalorder %s23, 1
      %s6014 = scalar_select %p6013, %s23, 1
      %p6015 = scmp.lt.s32.totalorder %s24, 0
      %s6016 = scalar_select %p6015, %s24, 0
      %s6017 = smul.addr %s6014, 36
      %s6018 = sadd.s32 %s6016, %s6017
      %s6019 = smul.addr %s6018, 8
      %s6020 = scalar_lea.vmem %s7, %s6019
      // Predicated region
      $region49: #{basic_block_forward.1} parent=43 // pred_check
        %p6021 = pneg %p199
      $region50: #{basic_block_forward.1} parent=43 // pred_check_branch
        %6023 = sbr.rel (%p6021) target = $region52
      $region51: #{basic_block_forward.1} parent=43 // pred_region
        _
      $region52: #{basic_block_forward.1} parent=43 // pred_fallthru
        _
      // Predicated region
      $region53: #{basic_block_forward.1} parent=43 // pred_check
        %p6024 = pneg %p227
      $region54: #{basic_block_forward.1} parent=43 // pred_check_branch
        %6026 = sbr.rel (%p6024) target = $region56
      $region55: #{basic_block_forward.1} parent=43 // pred_region
        _
      $region56: #{basic_block_forward.1} parent=43 // pred_fallthru
        _
    $region44: #{basic_block_forward.1} parent=5 // pred_fallthru
      _
    %p6027 = scmp.le.s32.totalorder 2, %s14
    // Predicated region
    $region57: #{basic_block_forward.1} parent=5 // pred_check
      %p6028 = pneg %p6027
    $region58: #{basic_block_forward.1} parent=5 // pred_check_branch
      %6030 = sbr.rel (%p6028) target = $region60
    $region59: #{basic_block_forward.1} parent=5 // pred_region
      %s6031 = ssub.s32 %s14, 2
      // Predicated region
      $region61: #{basic_block_forward.1} parent=59 // pred_check
        %p6032 = pneg %p205
      $region62: #{basic_block_forward.1} parent=59 // pred_check_branch
        %6034 = sbr.rel (%p6032) target = $region64
      $region63: #{basic_block_forward.1} parent=59 // pred_region
        %p6035 = scmp.lt.s32.totalorder %s25, 1
        %s6036 = scalar_select %p6035, %s25, 1
        %p6037 = scmp.lt.s32.totalorder %s26, 0
        %s6038 = scalar_select %p6037, %s26, 0
        %s6039 = smul.addr %s6036, 36
        %s6040 = sadd.s32 %s6038, %s6039
        %s6041 = smul.addr %s6040, 4
        %s6042 = scalar_lea.vmem %s6, %s6041
      $region64: #{basic_block_forward.1} parent=59 // pred_fallthru
        _
      // Predicated region
      $region65: #{basic_block_forward.1} parent=59 // pred_check
        %p6043 = pneg %p233
      $region66: #{basic_block_forward.1} parent=59 // pred_check_branch
        %6045 = sbr.rel (%p6043) target = $region68
      $region67: #{basic_block_forward.1} parent=59 // pred_region
        %p6046 = scmp.lt.s32.totalorder %s25, 1
        %s6047 = scalar_select %p6046, %s25, 1
        %p6048 = scmp.lt.s32.totalorder %s26, 0
        %s6049 = scalar_select %p6048, %s26, 0
        %s6050 = smul.addr %s6047, 36
        %s6051 = sadd.s32 %s6049, %s6050
        %s6052 = smul.addr %s6051, 8
        %s6053 = scalar_lea.vmem %s7, %s6052
      $region68: #{basic_block_forward.1} parent=59 // pred_fallthru
        _
    $region60: #{basic_block_forward.1} parent=5 // pred_fallthru
      _
  $region6: #{basic_block_forward.1} parent=0 // loop_footer
    %s18 = sadd.s32 1, %s14
  $region7: #{basic_block_forward.1} parent=0 // loop_footer_branch
    %13 = sbr.rel target = $region3
  $region8: #{basic_block_forward.1} parent=0 // loop_exit
    _

</llo_original>
